<compile_context>
chip_gen: v5e
topology: v5e:2x2
jax: 0.10.0
libtpu: 0.0.40
codegen_flags: <defaults>
</compile_context>

<pallas_src>
import jax
import jax.numpy as jnp
from jax.experimental import pallas as pl
from jax.experimental.pallas import tpu as pltpu

# ---- synthetic model dims ----------------------------------------------------
VOCAB = 128
B = 8            # batch (number of text prompts)
B_TILE = 4       # prompts sharing one weight stream; B//B_TILE >= 2 keeps megacore busy
S = 16           # max_length stand-in (multiple of 8 sublanes; real 77 -> pad 128)
D = 128          # transformer width (lane-dense last dim; real 1024)
H = 4            # attention heads (real 16)
HD = D // H      # head dim
MLP = 4 * D      # mlp hidden
N_LAYERS = 2     # resblocks (real 24)
LAYER = "last"   # 'last' -> layer_idx 0 -> run every resblock
EPS = 1e-5

assert B % B_TILE == 0 and S % 8 == 0 and D % 128 == 0


def _vmem_limit_bytes():
    # Per-generation scoped-VMEM budget: v5e/v6e have 128 MiB physical -> ~100 MiB
    # keeps the double-buffered per-layer bf16 weights + batch-tile activations
    # resident at real ViT-H shapes; v7x has only 64 MiB -> cap at ~56 MiB (and at
    # real shapes additionally chunk wfc/wproj along the 4096 hidden dim or drop
    # them to pipeline_mode=pl.Buffered(1)).
    try:
        phys = pltpu.get_tpu_info().vmem_capacity_bytes
    except Exception:
        phys = 64 * 1024 * 1024
    return int(min(100 * 1024 * 1024, max(phys - 8 * 1024 * 1024, 32 * 1024 * 1024)))


# ---- in-kernel helpers -------------------------------------------------------
def _layernorm(x, w, b):
    mu = jnp.mean(x, axis=-1, keepdims=True)
    var = jnp.mean((x - mu) ** 2, axis=-1, keepdims=True)
    return (x - mu) * jax.lax.rsqrt(var + EPS) * w + b


def _proj(x, w, b):
    """(M, Din) f32 @ (Din, Dout) bf16 -> (M, Dout) f32 (bf16 MXU, f32 accumulate)."""
    y = jnp.dot(x.astype(jnp.bfloat16), w, preferred_element_type=jnp.float32)
    return y + b


# ---- fused resblocks (+ ln_final) kernel -------------------------------------
def resblocks_kernel(x_ref,
                     ln1_w_ref, ln1_b_ref, wqkv_ref, bqkv_ref,
                     wout_ref, bout_ref, ln2_w_ref, ln2_b_ref,
                     wfc_ref, bfc_ref, wproj_ref, bproj_ref,
                     lnf_w_ref, lnf_b_ref,
                     o_ref, mask_ref):
    l = pl.program_id(1)
    M = B_TILE * S

    # Layer 0: seed the carried residual stream and build the causal mask once per
    # batch tile (resident in VMEM scratch across the whole layer sweep).
    @pl.when(l == 0)
    def _():
        o_ref[...] = x_ref[...]
        row = jax.lax.broadcasted_iota(jnp.int32, (S, S), 0)
        col = jax.lax.broadcasted_iota(jnp.int32, (S, S), 1)
        mask_ref[...] = jnp.where(col > row, -1e30, 0.0).astype(jnp.float32)

    neg_mask = mask_ref[...]                              # (S, S) f32
    x = o_ref[...].reshape(M, D)                          # (M, D) f32, carried over l

    # --- multi-head self-attention branch -------------------------------------
    # Projections batched over all B_TILE prompts (M rows) so the per-layer weight
    # stream is amortized; score/PV einsums stay per-prompt.
    h = _layernorm(x, ln1_w_ref[0], ln1_b_ref[0])
    qkv = _proj(h, wqkv_ref[0], bqkv_ref[0]).astype(jnp.bfloat16)    # (M, 3D) bf16

    def split_heads(base):
        # H lane slices over ALL prompts at once (3*H slices per layer step total).
        # TODO(synk): pltpu.einshape could express this relayout in one op.
        return jnp.stack(
            [qkv[:, base + i * HD: base + (i + 1) * HD] for i in range(H)], axis=0)

    q_all = split_heads(0)                                # (H, M, HD) bf16
    k_all = split_heads(D)
    v_all = split_heads(2 * D)

    scale = 1.0 / (HD ** 0.5)
    ctx_rows = []
    for b in range(B_TILE):                               # static unroll, small
        r = slice(b * S, (b + 1) * S)                     # static sublane slice
        q = q_all[:, r, :]                                # (H, S, HD)
        k = k_all[:, r, :]
        v = v_all[:, r, :]
        s = jnp.einsum("hqd,hkd->hqk", q, k,
                       preferred_element_type=jnp.float32) * scale   # (H, S, S) f32
        s = s + neg_mask[None, :, :]
        s = s - jnp.max(s, axis=-1, keepdims=True)        # stable softmax, f32 VPU
        p = jnp.exp(s)
        p = p * pl.reciprocal(jnp.sum(p, axis=-1, keepdims=True), approx=True)
        ctx = jnp.einsum("hqk,hkd->hqd", p.astype(jnp.bfloat16), v,
                         preferred_element_type=jnp.float32)          # (H, S, HD) f32
        ctx_rows.append(jnp.concatenate([ctx[i] for i in range(H)], axis=-1))  # (S, D)
    ctx_all = jnp.concatenate(ctx_rows, axis=0)           # (M, D)

    x = x + _proj(ctx_all, wout_ref[0], bout_ref[0])

    # --- MLP branch ------------------------------------------------------------
    h = _layernorm(x, ln2_w_ref[0], ln2_b_ref[0])
    h = _proj(h, wfc_ref[0], bfc_ref[0])
    # TODO(synk): open_clip uses exact (erf) GELU; tanh-approx GELU used here for
    # guaranteed Mosaic transcendental support (EUP tanh).
    h = jax.nn.gelu(h, approximate=True)
    y = x + _proj(h, wproj_ref[0], bproj_ref[0])          # (M, D)

    is_last = l == pl.num_programs(1) - 1

    # Last layer iteration: fuse ln_final (free filler on open VPU/EUP slots);
    # removes a whole extra HBM round-trip of the activation stream.
    @pl.when(is_last)
    def _():
        o_ref[...] = _layernorm(y, lnf_w_ref[...],
                                lnf_b_ref[...]).reshape(B_TILE, S, D)

    @pl.when(jnp.logical_not(is_last))
    def _():
        o_ref[...] = y.reshape(B_TILE, S, D)


# ---- wrapper ------------------------------------------------------------------
def run_resblocks(x, p, n_run):
    weights = (p["ln1_w"], p["ln1_b"], p["wqkv"], p["bqkv"],
               p["wout"], p["bout"], p["ln2_w"], p["ln2_b"],
               p["wfc"], p["bfc"], p["wproj"], p["bproj"])

    def w_spec(a):
        # Stacked (L, r, c) per-layer weights: select layer l; BlockSpec pipelining
        # double-buffers next-layer weight DMA behind current-layer compute.
        return pl.BlockSpec((1,) + a.shape[1:], lambda b, l: (l, 0, 0))

    lnf_spec = pl.BlockSpec((1, D), lambda b, l: (0, 0))          # constant index
    x_spec = pl.BlockSpec((B_TILE, S, D), lambda b, l: (b, 0, 0))

    return pl.pallas_call(
        resblocks_kernel,
        out_shape=jax.ShapeDtypeStruct(x.shape, x.dtype),
        grid_spec=pltpu.PrefetchScalarGridSpec(
            num_scalar_prefetch=0,
            grid=(x.shape[0] // B_TILE, n_run),      # (batch tiles, layers)
            in_specs=[x_spec] + [w_spec(a) for a in weights] + [lnf_spec, lnf_spec],
            out_specs=x_spec,
            scratch_shapes=[pltpu.VMEM((S, S), jnp.float32)]),     # causal mask
        # residual stream updated in place: no extra HBM buffer / writeback
        input_output_aliases={0: 0},
        compiler_params=pltpu.CompilerParams(
            dimension_semantics=("parallel", "arbitrary"),
            vmem_limit_bytes=_vmem_limit_bytes()),
    )(x, *weights, p["ln_final_w"], p["ln_final_b"])


def encode_with_transformer(tokens, params):
    """tokens: (B, S) int32 -> (B, S, D) float32 (matches FrozenOpenCLIPEmbedder)."""
    x = params["token_embedding"][tokens]                  # (B, S, D) gather (glue)
    x = x + params["positional_embedding"][None, :, :]
    layer_idx = 0 if LAYER == "last" else 1                # 'last' / 'penultimate'
    n_run = N_LAYERS - layer_idx
    # ln_final is fused into the last layer iteration inside the kernel.
    return run_resblocks(x, params, n_run)


# ---- deterministic synthetic parameters ---------------------------------------
def init_params(key):
    k_tok, k_pos, k_blk = jax.random.split(key, 3)
    params = {
        "token_embedding": 0.02 * jax.random.normal(k_tok, (VOCAB, D), jnp.float32),
        "positional_embedding": 0.01 * jax.random.normal(k_pos, (S, D), jnp.float32),
        "ln_final_w": jnp.ones((1, D), jnp.float32),
        "ln_final_b": jnp.zeros((1, D), jnp.float32),
    }
    wqkv, wout, wfc, wproj = [], [], [], []
    lkeys = jax.random.split(k_blk, N_LAYERS)
    for i in range(N_LAYERS):
        ks = jax.random.split(lkeys[i], 4)
        wqkv.append(0.02 * jax.random.normal(ks[0], (D, 3 * D), jnp.float32))
        wout.append(0.02 * jax.random.normal(ks[1], (D, D), jnp.float32))
        wfc.append(0.02 * jax.random.normal(ks[2], (D, MLP), jnp.float32))
        wproj.append(0.02 * jax.random.normal(ks[3], (MLP, D), jnp.float32))
    L = N_LAYERS
    params.update({
        "ln1_w": jnp.ones((L, 1, D), jnp.float32),
        "ln1_b": jnp.zeros((L, 1, D), jnp.float32),
        "ln2_w": jnp.ones((L, 1, D), jnp.float32),
        "ln2_b": jnp.zeros((L, 1, D), jnp.float32),
        # bf16 weight storage: halves HBM traffic / VMEM and uses the bf16 MXU path.
        "wqkv": jnp.stack(wqkv).astype(jnp.bfloat16),
        "bqkv": jnp.zeros((L, 1, 3 * D), jnp.float32),
        "wout": jnp.stack(wout).astype(jnp.bfloat16),
        "bout": jnp.zeros((L, 1, D), jnp.float32),
        "wfc": jnp.stack(wfc).astype(jnp.bfloat16),
        "bfc": jnp.zeros((L, 1, MLP), jnp.float32),
        "wproj": jnp.stack(wproj).astype(jnp.bfloat16),
        "bproj": jnp.zeros((L, 1, D), jnp.float32),
    })
    return params


if __name__ == "__main__":
    key = jax.random.PRNGKey(0)
    pkey, tkey = jax.random.split(key)
    params = init_params(pkey)

    # TODO(synk): open_clip.tokenize (BPE text tokenizer) has no Pallas equivalent;
    # synthetic integer token ids stand in for tokenized text.
    tokens = jax.random.randint(tkey, (B, S), 0, VOCAB, dtype=jnp.int32)

    z = encode_with_transformer(tokens, params)
    z = jax.block_until_ready(z)

    assert z.shape == (B, S, D), z.shape
    assert bool(jnp.all(jnp.isfinite(z)))
    print("KERNEL_OK")
</pallas_src>

<mosaic_0001>
module attributes {stable_mosaic.version = 11 : i64} {
  func.func @resblocks_kernel(%arg0: i32, %arg1: i32, %arg2: memref<4x16x128xf32, #tpu.memory_space<vmem>>, %arg3: memref<1x1x128xf32, #tpu.memory_space<vmem>>, %arg4: memref<1x1x128xf32, #tpu.memory_space<vmem>>, %arg5: memref<1x128x384xbf16, #tpu.memory_space<vmem>>, %arg6: memref<1x1x384xf32, #tpu.memory_space<vmem>>, %arg7: memref<1x128x128xbf16, #tpu.memory_space<vmem>>, %arg8: memref<1x1x128xf32, #tpu.memory_space<vmem>>, %arg9: memref<1x1x128xf32, #tpu.memory_space<vmem>>, %arg10: memref<1x1x128xf32, #tpu.memory_space<vmem>>, %arg11: memref<1x128x512xbf16, #tpu.memory_space<vmem>>, %arg12: memref<1x1x512xf32, #tpu.memory_space<vmem>>, %arg13: memref<1x512x128xbf16, #tpu.memory_space<vmem>>, %arg14: memref<1x1x128xf32, #tpu.memory_space<vmem>>, %arg15: memref<1x128xf32, #tpu.memory_space<vmem>>, %arg16: memref<1x128xf32, #tpu.memory_space<vmem>>, %arg17: memref<4x16x128xf32, #tpu.memory_space<vmem>>, %arg18: memref<16x16xf32, #tpu.memory_space<vmem>>) attributes {dimension_semantics = [#tpu.dimension_semantics<parallel>, #tpu.dimension_semantics<arbitrary>], iteration_bounds = array<i64: 2, 2>, scalar_prefetch = 0 : i64, scratch_operands = 1 : i64, tpu.core_type = #tpu.core_type<tc>, window_params = [{transform_indices = @transform_0, window_bounds = array<i64: 4, 16, 128>}, {transform_indices = @transform_1, window_bounds = array<i64: 1, 1, 128>}, {transform_indices = @transform_2, window_bounds = array<i64: 1, 1, 128>}, {transform_indices = @transform_3, window_bounds = array<i64: 1, 128, 384>}, {transform_indices = @transform_4, window_bounds = array<i64: 1, 1, 384>}, {transform_indices = @transform_5, window_bounds = array<i64: 1, 128, 128>}, {transform_indices = @transform_6, window_bounds = array<i64: 1, 1, 128>}, {transform_indices = @transform_7, window_bounds = array<i64: 1, 1, 128>}, {transform_indices = @transform_8, window_bounds = array<i64: 1, 1, 128>}, {transform_indices = @transform_9, window_bounds = array<i64: 1, 128, 512>}, {transform_indices = @transform_10, window_bounds = array<i64: 1, 1, 512>}, {transform_indices = @transform_11, window_bounds = array<i64: 1, 512, 128>}, {transform_indices = @transform_12, window_bounds = array<i64: 1, 1, 128>}, {pipeline_mode = #tpu.pipeline_mode<synchronous>, transform_indices = @transform_13, window_bounds = array<i64: 1, 128>}, {pipeline_mode = #tpu.pipeline_mode<synchronous>, transform_indices = @transform_14, window_bounds = array<i64: 1, 128>}, {transform_indices = @transform_15, window_bounds = array<i64: 4, 16, 128>}]} {
    %c0_i32 = arith.constant 0 : i32
    %0 = arith.cmpi eq, %arg1, %c0_i32 : i32
    %1 = arith.extui %0 : i1 to i32
    %c0_i32_0 = arith.constant 0 : i32
    %2 = arith.cmpi ne, %1, %c0_i32_0 : i32
    scf.if %2 {
      %c0_80 = arith.constant 0 : index
      %c0_81 = arith.constant 0 : index
      %c0_82 = arith.constant 0 : index
      %260 = vector.load %arg2[%c0_80, %c0_81, %c0_82] : memref<4x16x128xf32, #tpu.memory_space<vmem>>, vector<4x16x128xf32>
      %c0_83 = arith.constant 0 : index
      %c0_84 = arith.constant 0 : index
      %c0_85 = arith.constant 0 : index
      %261 = vector.load %arg17[%c0_83, %c0_84, %c0_85] : memref<4x16x128xf32, #tpu.memory_space<vmem>>, vector<4x16x128xf32>
      tpu.vector_store %arg17[%c0_83, %c0_84, %c0_85], %260 {strides = array<i32>} : memref<4x16x128xf32, #tpu.memory_space<vmem>>, vector<4x16x128xf32>,
      %262 = tpu.iota {dimensions = array<i32: 0>} : vector<16x16xi32>
      %263 = tpu.iota {dimensions = array<i32: 1>} : vector<16x16xi32>
      %264 = arith.cmpi sgt, %263, %262 : vector<16x16xi32>
      %cst_86 = arith.constant -1.000000e+30 : f32
      %cst_87 = arith.constant 0.000000e+00 : f32
      %265 = vector.broadcast %cst_86 : f32 to vector<16x16xf32>
      %266 = vector.broadcast %cst_87 : f32 to vector<16x16xf32>
      %267 = arith.select %264, %265, %266 : vector<16x16xi1>, vector<16x16xf32>
      %c0_88 = arith.constant 0 : index
      %c0_89 = arith.constant 0 : index
      %268 = vector.load %arg18[%c0_88, %c0_89] : memref<16x16xf32, #tpu.memory_space<vmem>>, vector<16x16xf32>
      tpu.vector_store %arg18[%c0_88, %c0_89], %267 {strides = array<i32>} : memref<16x16xf32, #tpu.memory_space<vmem>>, vector<16x16xf32>,
    } else {
    }
    %c0 = arith.constant 0 : index
    %c0_1 = arith.constant 0 : index
    %3 = vector.load %arg18[%c0, %c0_1] : memref<16x16xf32, #tpu.memory_space<vmem>>, vector<16x16xf32>
    %c0_2 = arith.constant 0 : index
    %c0_3 = arith.constant 0 : index
    %c0_4 = arith.constant 0 : index
    %4 = vector.load %arg17[%c0_2, %c0_3, %c0_4] : memref<4x16x128xf32, #tpu.memory_space<vmem>>, vector<4x16x128xf32>
    %5 = vector.shape_cast %4 : vector<4x16x128xf32> to vector<64x128xf32>
    %c0_5 = arith.constant 0 : index
    %c0_6 = arith.constant 0 : index
    %c0_7 = arith.constant 0 : index
    %6 = vector.load %arg3[%c0_5, %c0_6, %c0_7] : memref<1x1x128xf32, #tpu.memory_space<vmem>>, vector<1x1x128xf32>
    %7 = vector.shape_cast %6 : vector<1x1x128xf32> to vector<1x128xf32>
    %c0_8 = arith.constant 0 : index
    %c0_9 = arith.constant 0 : index
    %c0_10 = arith.constant 0 : index
    %8 = vector.load %arg4[%c0_8, %c0_9, %c0_10] : memref<1x1x128xf32, #tpu.memory_space<vmem>>, vector<1x1x128xf32>
    %9 = vector.shape_cast %8 : vector<1x1x128xf32> to vector<1x128xf32>
    %cst = arith.constant dense<0.000000e+00> : vector<64xf32>
    %10 = vector.multi_reduction <add>, %5, %cst [1] : vector<64x128xf32> to vector<64xf32>
    %11 = vector.shape_cast %10 : vector<64xf32> to vector<64x1xf32>
    %cst_11 = arith.constant 1.280000e+02 : f32
    %12 = vector.broadcast %cst_11 : f32 to vector<64x1xf32>
    %13 = arith.divf %11, %12 : vector<64x1xf32>
    %14 = vector.broadcast %13 : vector<64x1xf32> to vector<64x128xf32>
    %15 = arith.subf %5, %14 : vector<64x128xf32>
    %16 = arith.mulf %15, %15 : vector<64x128xf32>
    %cst_12 = arith.constant dense<0.000000e+00> : vector<64xf32>
    %17 = vector.multi_reduction <add>, %16, %cst_12 [1] : vector<64x128xf32> to vector<64xf32>
    %18 = vector.shape_cast %17 : vector<64xf32> to vector<64x1xf32>
    %cst_13 = arith.constant 1.280000e+02 : f32
    %19 = vector.broadcast %cst_13 : f32 to vector<64x1xf32>
    %20 = arith.divf %18, %19 : vector<64x1xf32>
    %21 = vector.broadcast %13 : vector<64x1xf32> to vector<64x128xf32>
    %22 = arith.subf %5, %21 : vector<64x128xf32>
    %cst_14 = arith.constant 9.99999974E-6 : f32
    %23 = vector.broadcast %cst_14 : f32 to vector<64x1xf32>
    %24 = arith.addf %20, %23 : vector<64x1xf32>
    %25 = math.rsqrt %24 : vector<64x1xf32>
    %26 = vector.broadcast %25 : vector<64x1xf32> to vector<64x128xf32>
    %27 = arith.mulf %22, %26 : vector<64x128xf32>
    %28 = vector.broadcast %7 : vector<1x128xf32> to vector<64x128xf32>
    %29 = arith.mulf %27, %28 : vector<64x128xf32>
    %30 = vector.broadcast %9 : vector<1x128xf32> to vector<64x128xf32>
    %31 = arith.addf %29, %30 : vector<64x128xf32>
    %c0_15 = arith.constant 0 : index
    %c0_16 = arith.constant 0 : index
    %c0_17 = arith.constant 0 : index
    %32 = vector.load %arg5[%c0_15, %c0_16, %c0_17] : memref<1x128x384xbf16, #tpu.memory_space<vmem>>, vector<1x128x384xbf16>
    %33 = vector.shape_cast %32 : vector<1x128x384xbf16> to vector<128x384xbf16>
    %c0_18 = arith.constant 0 : index
    %c0_19 = arith.constant 0 : index
    %c0_20 = arith.constant 0 : index
    %34 = vector.load %arg6[%c0_18, %c0_19, %c0_20] : memref<1x1x384xf32, #tpu.memory_space<vmem>>, vector<1x1x384xf32>
    %35 = vector.shape_cast %34 : vector<1x1x384xf32> to vector<1x384xf32>
    %36 = arith.truncf %31 : vector<64x128xf32> to vector<64x128xbf16>
    %cst_21 = arith.constant dense<0.000000e+00> : vector<64x384xf32>
    %37 = tpu.matmul %36, %33, %cst_21 {dimension_numbers = #tpu.dot_dimension_numbers<[1], [0], [0], [1], [0, 0, 1, 1], [], []>} : vector<64x128xbf16>, vector<128x384xbf16>, vector<64x384xf32> -> vector<64x384xf32>
    %38 = vector.broadcast %35 : vector<1x384xf32> to vector<64x384xf32>
    %39 = arith.addf %37, %38 : vector<64x384xf32>
    %40 = arith.truncf %39 : vector<64x384xf32> to vector<64x384xbf16>
    %41 = vector.extract_strided_slice %40 {offsets = [0, 0], sizes = [64, 32], strides = [1, 1]} : vector<64x384xbf16> to vector<64x32xbf16>
    %42 = vector.extract_strided_slice %40 {offsets = [0, 32], sizes = [64, 32], strides = [1, 1]} : vector<64x384xbf16> to vector<64x32xbf16>
    %43 = vector.extract_strided_slice %40 {offsets = [0, 64], sizes = [64, 32], strides = [1, 1]} : vector<64x384xbf16> to vector<64x32xbf16>
    %44 = vector.extract_strided_slice %40 {offsets = [0, 96], sizes = [64, 32], strides = [1, 1]} : vector<64x384xbf16> to vector<64x32xbf16>
    %45 = vector.shape_cast %41 : vector<64x32xbf16> to vector<1x64x32xbf16>
    %46 = vector.shape_cast %42 : vector<64x32xbf16> to vector<1x64x32xbf16>
    %47 = vector.shape_cast %43 : vector<64x32xbf16> to vector<1x64x32xbf16>
    %48 = vector.shape_cast %44 : vector<64x32xbf16> to vector<1x64x32xbf16>
    %49 = tpu.concatenate %45, %46, %47, %48 in 0 : vector<1x64x32xbf16>, vector<1x64x32xbf16>, vector<1x64x32xbf16>, vector<1x64x32xbf16> -> vector<4x64x32xbf16>
    %50 = vector.extract_strided_slice %40 {offsets = [0, 128], sizes = [64, 32], strides = [1, 1]} : vector<64x384xbf16> to vector<64x32xbf16>
    %51 = vector.extract_strided_slice %40 {offsets = [0, 160], sizes = [64, 32], strides = [1, 1]} : vector<64x384xbf16> to vector<64x32xbf16>
    %52 = vector.extract_strided_slice %40 {offsets = [0, 192], sizes = [64, 32], strides = [1, 1]} : vector<64x384xbf16> to vector<64x32xbf16>
    %53 = vector.extract_strided_slice %40 {offsets = [0, 224], sizes = [64, 32], strides = [1, 1]} : vector<64x384xbf16> to vector<64x32xbf16>
    %54 = vector.shape_cast %50 : vector<64x32xbf16> to vector<1x64x32xbf16>
    %55 = vector.shape_cast %51 : vector<64x32xbf16> to vector<1x64x32xbf16>
    %56 = vector.shape_cast %52 : vector<64x32xbf16> to vector<1x64x32xbf16>
    %57 = vector.shape_cast %53 : vector<64x32xbf16> to vector<1x64x32xbf16>
    %58 = tpu.concatenate %54, %55, %56, %57 in 0 : vector<1x64x32xbf16>, vector<1x64x32xbf16>, vector<1x64x32xbf16>, vector<1x64x32xbf16> -> vector<4x64x32xbf16>
    %59 = vector.extract_strided_slice %40 {offsets = [0, 256], sizes = [64, 32], strides = [1, 1]} : vector<64x384xbf16> to vector<64x32xbf16>
    %60 = vector.extract_strided_slice %40 {offsets = [0, 288], sizes = [64, 32], strides = [1, 1]} : vector<64x384xbf16> to vector<64x32xbf16>
    %61 = vector.extract_strided_slice %40 {offsets = [0, 320], sizes = [64, 32], strides = [1, 1]} : vector<64x384xbf16> to vector<64x32xbf16>
    %62 = vector.extract_strided_slice %40 {offsets = [0, 352], sizes = [64, 32], strides = [1, 1]} : vector<64x384xbf16> to vector<64x32xbf16>
    %63 = vector.shape_cast %59 : vector<64x32xbf16> to vector<1x64x32xbf16>
    %64 = vector.shape_cast %60 : vector<64x32xbf16> to vector<1x64x32xbf16>
    %65 = vector.shape_cast %61 : vector<64x32xbf16> to vector<1x64x32xbf16>
    %66 = vector.shape_cast %62 : vector<64x32xbf16> to vector<1x64x32xbf16>
    %67 = tpu.concatenate %63, %64, %65, %66 in 0 : vector<1x64x32xbf16>, vector<1x64x32xbf16>, vector<1x64x32xbf16>, vector<1x64x32xbf16> -> vector<4x64x32xbf16>
    %68 = vector.extract_strided_slice %49 {offsets = [0, 0, 0], sizes = [4, 16, 32], strides = [1, 1, 1]} : vector<4x64x32xbf16> to vector<4x16x32xbf16>
    %69 = vector.extract_strided_slice %58 {offsets = [0, 0, 0], sizes = [4, 16, 32], strides = [1, 1, 1]} : vector<4x64x32xbf16> to vector<4x16x32xbf16>
    %70 = vector.extract_strided_slice %67 {offsets = [0, 0, 0], sizes = [4, 16, 32], strides = [1, 1, 1]} : vector<4x64x32xbf16> to vector<4x16x32xbf16>
    "tpu.trace_start"() <{level = 10 : i32, message = "hqd,hkd->hqk"}> : () -> ()
    %cst_22 = arith.constant dense<0.000000e+00> : vector<4x16x16xf32>
    %71 = tpu.matmul %68, %69, %cst_22 {dimension_numbers = #tpu.dot_dimension_numbers<[2], [2], [1], [1], [0, 0, 0, 1, 1, 1], [0], [0]>} : vector<4x16x32xbf16>, vector<4x16x32xbf16>, vector<4x16x16xf32> -> vector<4x16x16xf32>
    "tpu.trace_stop"() : () -> ()
    %cst_23 = arith.constant 0.176776692 : f32
    %72 = vector.broadcast %cst_23 : f32 to vector<4x16x16xf32>
    %73 = arith.mulf %71, %72 : vector<4x16x16xf32>
    %74 = vector.shape_cast %3 : vector<16x16xf32> to vector<1x16x16xf32>
    %75 = vector.broadcast %74 : vector<1x16x16xf32> to vector<4x16x16xf32>
    %76 = arith.addf %73, %75 : vector<4x16x16xf32>
    %cst_24 = arith.constant dense<0xFF800000> : vector<4x16xf32>
    %77 = vector.multi_reduction <maximumf>, %76, %cst_24 [2] : vector<4x16x16xf32> to vector<4x16xf32>
    %78 = vector.shape_cast %77 : vector<4x16xf32> to vector<4x16x1xf32>
    %79 = vector.broadcast %78 : vector<4x16x1xf32> to vector<4x16x16xf32>
    %80 = arith.subf %76, %79 : vector<4x16x16xf32>
    %81 = math.exp %80 : vector<4x16x16xf32>
    %cst_25 = arith.constant dense<0.000000e+00> : vector<4x16xf32>
    %82 = vector.multi_reduction <add>, %81, %cst_25 [2] : vector<4x16x16xf32> to vector<4x16xf32>
    %83 = vector.shape_cast %82 : vector<4x16xf32> to vector<4x16x1xf32>
    %84 = tpu.reciprocal %83 {approx = true} : vector<4x16x1xf32> -> vector<4x16x1xf32>
    %85 = vector.broadcast %84 : vector<4x16x1xf32> to vector<4x16x16xf32>
    %86 = arith.mulf %81, %85 : vector<4x16x16xf32>
    %87 = arith.truncf %86 : vector<4x16x16xf32> to vector<4x16x16xbf16>
    "tpu.trace_start"() <{level = 10 : i32, message = "hqk,hkd->hqd"}> : () -> ()
    %cst_26 = arith.constant dense<0.000000e+00> : vector<4x16x32xf32>
    %88 = tpu.matmul %87, %70, %cst_26 {dimension_numbers = #tpu.dot_dimension_numbers<[2], [1], [1], [2], [0, 0, 0, 1, 1, 2], [0], [0]>} : vector<4x16x16xbf16>, vector<4x16x32xbf16>, vector<4x16x32xf32> -> vector<4x16x32xf32>
    "tpu.trace_stop"() : () -> ()
    %89 = vector.extract_strided_slice %88 {offsets = [0, 0, 0], sizes = [1, 16, 32], strides = [1, 1, 1]} : vector<4x16x32xf32> to vector<1x16x32xf32>
    %90 = vector.shape_cast %89 : vector<1x16x32xf32> to vector<16x32xf32>
    %91 = vector.extract_strided_slice %88 {offsets = [1, 0, 0], sizes = [1, 16, 32], strides = [1, 1, 1]} : vector<4x16x32xf32> to vector<1x16x32xf32>
    %92 = vector.shape_cast %91 : vector<1x16x32xf32> to vector<16x32xf32>
    %93 = vector.extract_strided_slice %88 {offsets = [2, 0, 0], sizes = [1, 16, 32], strides = [1, 1, 1]} : vector<4x16x32xf32> to vector<1x16x32xf32>
    %94 = vector.shape_cast %93 : vector<1x16x32xf32> to vector<16x32xf32>
    %95 = vector.extract_strided_slice %88 {offsets = [3, 0, 0], sizes = [1, 16, 32], strides = [1, 1, 1]} : vector<4x16x32xf32> to vector<1x16x32xf32>
    %96 = vector.shape_cast %95 : vector<1x16x32xf32> to vector<16x32xf32>
    %97 = tpu.concatenate %90, %92, %94, %96 in 1 : vector<16x32xf32>, vector<16x32xf32>, vector<16x32xf32>, vector<16x32xf32> -> vector<16x128xf32>
    %98 = vector.extract_strided_slice %49 {offsets = [0, 16, 0], sizes = [4, 16, 32], strides = [1, 1, 1]} : vector<4x64x32xbf16> to vector<4x16x32xbf16>
    %99 = vector.extract_strided_slice %58 {offsets = [0, 16, 0], sizes = [4, 16, 32], strides = [1, 1, 1]} : vector<4x64x32xbf16> to vector<4x16x32xbf16>
    %100 = vector.extract_strided_slice %67 {offsets = [0, 16, 0], sizes = [4, 16, 32], strides = [1, 1, 1]} : vector<4x64x32xbf16> to vector<4x16x32xbf16>
    "tpu.trace_start"() <{level = 10 : i32, message = "hqd,hkd->hqk"}> : () -> ()
    %cst_27 = arith.constant dense<0.000000e+00> : vector<4x16x16xf32>
    %101 = tpu.matmul %98, %99, %cst_27 {dimension_numbers = #tpu.dot_dimension_numbers<[2], [2], [1], [1], [0, 0, 0, 1, 1, 1], [0], [0]>} : vector<4x16x32xbf16>, vector<4x16x32xbf16>, vector<4x16x16xf32> -> vector<4x16x16xf32>
    "tpu.trace_stop"() : () -> ()
    %cst_28 = arith.constant 0.176776692 : f32
    %102 = vector.broadcast %cst_28 : f32 to vector<4x16x16xf32>
    %103 = arith.mulf %101, %102 : vector<4x16x16xf32>
    %104 = vector.shape_cast %3 : vector<16x16xf32> to vector<1x16x16xf32>
    %105 = vector.broadcast %104 : vector<1x16x16xf32> to vector<4x16x16xf32>
    %106 = arith.addf %103, %105 : vector<4x16x16xf32>
    %cst_29 = arith.constant dense<0xFF800000> : vector<4x16xf32>
    %107 = vector.multi_reduction <maximumf>, %106, %cst_29 [2] : vector<4x16x16xf32> to vector<4x16xf32>
    %108 = vector.shape_cast %107 : vector<4x16xf32> to vector<4x16x1xf32>
    %109 = vector.broadcast %108 : vector<4x16x1xf32> to vector<4x16x16xf32>
    %110 = arith.subf %106, %109 : vector<4x16x16xf32>
    %111 = math.exp %110 : vector<4x16x16xf32>
    %cst_30 = arith.constant dense<0.000000e+00> : vector<4x16xf32>
    %112 = vector.multi_reduction <add>, %111, %cst_30 [2] : vector<4x16x16xf32> to vector<4x16xf32>
    %113 = vector.shape_cast %112 : vector<4x16xf32> to vector<4x16x1xf32>
    %114 = tpu.reciprocal %113 {approx = true} : vector<4x16x1xf32> -> vector<4x16x1xf32>
    %115 = vector.broadcast %114 : vector<4x16x1xf32> to vector<4x16x16xf32>
    %116 = arith.mulf %111, %115 : vector<4x16x16xf32>
    %117 = arith.truncf %116 : vector<4x16x16xf32> to vector<4x16x16xbf16>
    "tpu.trace_start"() <{level = 10 : i32, message = "hqk,hkd->hqd"}> : () -> ()
    %cst_31 = arith.constant dense<0.000000e+00> : vector<4x16x32xf32>
    %118 = tpu.matmul %117, %100, %cst_31 {dimension_numbers = #tpu.dot_dimension_numbers<[2], [1], [1], [2], [0, 0, 0, 1, 1, 2], [0], [0]>} : vector<4x16x16xbf16>, vector<4x16x32xbf16>, vector<4x16x32xf32> -> vector<4x16x32xf32>
    "tpu.trace_stop"() : () -> ()
    %119 = vector.extract_strided_slice %118 {offsets = [0, 0, 0], sizes = [1, 16, 32], strides = [1, 1, 1]} : vector<4x16x32xf32> to vector<1x16x32xf32>
    %120 = vector.shape_cast %119 : vector<1x16x32xf32> to vector<16x32xf32>
    %121 = vector.extract_strided_slice %118 {offsets = [1, 0, 0], sizes = [1, 16, 32], strides = [1, 1, 1]} : vector<4x16x32xf32> to vector<1x16x32xf32>
    %122 = vector.shape_cast %121 : vector<1x16x32xf32> to vector<16x32xf32>
    %123 = vector.extract_strided_slice %118 {offsets = [2, 0, 0], sizes = [1, 16, 32], strides = [1, 1, 1]} : vector<4x16x32xf32> to vector<1x16x32xf32>
    %124 = vector.shape_cast %123 : vector<1x16x32xf32> to vector<16x32xf32>
    %125 = vector.extract_strided_slice %118 {offsets = [3, 0, 0], sizes = [1, 16, 32], strides = [1, 1, 1]} : vector<4x16x32xf32> to vector<1x16x32xf32>
    %126 = vector.shape_cast %125 : vector<1x16x32xf32> to vector<16x32xf32>
    %127 = tpu.concatenate %120, %122, %124, %126 in 1 : vector<16x32xf32>, vector<16x32xf32>, vector<16x32xf32>, vector<16x32xf32> -> vector<16x128xf32>
    %128 = vector.extract_strided_slice %49 {offsets = [0, 32, 0], sizes = [4, 16, 32], strides = [1, 1, 1]} : vector<4x64x32xbf16> to vector<4x16x32xbf16>
    %129 = vector.extract_strided_slice %58 {offsets = [0, 32, 0], sizes = [4, 16, 32], strides = [1, 1, 1]} : vector<4x64x32xbf16> to vector<4x16x32xbf16>
    %130 = vector.extract_strided_slice %67 {offsets = [0, 32, 0], sizes = [4, 16, 32], strides = [1, 1, 1]} : vector<4x64x32xbf16> to vector<4x16x32xbf16>
    "tpu.trace_start"() <{level = 10 : i32, message = "hqd,hkd->hqk"}> : () -> ()
    %cst_32 = arith.constant dense<0.000000e+00> : vector<4x16x16xf32>
    %131 = tpu.matmul %128, %129, %cst_32 {dimension_numbers = #tpu.dot_dimension_numbers<[2], [2], [1], [1], [0, 0, 0, 1, 1, 1], [0], [0]>} : vector<4x16x32xbf16>, vector<4x16x32xbf16>, vector<4x16x16xf32> -> vector<4x16x16xf32>
    "tpu.trace_stop"() : () -> ()
    %cst_33 = arith.constant 0.176776692 : f32
    %132 = vector.broadcast %cst_33 : f32 to vector<4x16x16xf32>
    %133 = arith.mulf %131, %132 : vector<4x16x16xf32>
    %134 = vector.shape_cast %3 : vector<16x16xf32> to vector<1x16x16xf32>
    %135 = vector.broadcast %134 : vector<1x16x16xf32> to vector<4x16x16xf32>
    %136 = arith.addf %133, %135 : vector<4x16x16xf32>
    %cst_34 = arith.constant dense<0xFF800000> : vector<4x16xf32>
    %137 = vector.multi_reduction <maximumf>, %136, %cst_34 [2] : vector<4x16x16xf32> to vector<4x16xf32>
    %138 = vector.shape_cast %137 : vector<4x16xf32> to vector<4x16x1xf32>
    %139 = vector.broadcast %138 : vector<4x16x1xf32> to vector<4x16x16xf32>
    %140 = arith.subf %136, %139 : vector<4x16x16xf32>
    %141 = math.exp %140 : vector<4x16x16xf32>
    %cst_35 = arith.constant dense<0.000000e+00> : vector<4x16xf32>
    %142 = vector.multi_reduction <add>, %141, %cst_35 [2] : vector<4x16x16xf32> to vector<4x16xf32>
    %143 = vector.shape_cast %142 : vector<4x16xf32> to vector<4x16x1xf32>
    %144 = tpu.reciprocal %143 {approx = true} : vector<4x16x1xf32> -> vector<4x16x1xf32>
    %145 = vector.broadcast %144 : vector<4x16x1xf32> to vector<4x16x16xf32>
    %146 = arith.mulf %141, %145 : vector<4x16x16xf32>
    %147 = arith.truncf %146 : vector<4x16x16xf32> to vector<4x16x16xbf16>
    "tpu.trace_start"() <{level = 10 : i32, message = "hqk,hkd->hqd"}> : () -> ()
    %cst_36 = arith.constant dense<0.000000e+00> : vector<4x16x32xf32>
    %148 = tpu.matmul %147, %130, %cst_36 {dimension_numbers = #tpu.dot_dimension_numbers<[2], [1], [1], [2], [0, 0, 0, 1, 1, 2], [0], [0]>} : vector<4x16x16xbf16>, vector<4x16x32xbf16>, vector<4x16x32xf32> -> vector<4x16x32xf32>
    "tpu.trace_stop"() : () -> ()
    %149 = vector.extract_strided_slice %148 {offsets = [0, 0, 0], sizes = [1, 16, 32], strides = [1, 1, 1]} : vector<4x16x32xf32> to vector<1x16x32xf32>
    %150 = vector.shape_cast %149 : vector<1x16x32xf32> to vector<16x32xf32>
    %151 = vector.extract_strided_slice %148 {offsets = [1, 0, 0], sizes = [1, 16, 32], strides = [1, 1, 1]} : vector<4x16x32xf32> to vector<1x16x32xf32>
    %152 = vector.shape_cast %151 : vector<1x16x32xf32> to vector<16x32xf32>
    %153 = vector.extract_strided_slice %148 {offsets = [2, 0, 0], sizes = [1, 16, 32], strides = [1, 1, 1]} : vector<4x16x32xf32> to vector<1x16x32xf32>
    %154 = vector.shape_cast %153 : vector<1x16x32xf32> to vector<16x32xf32>
    %155 = vector.extract_strided_slice %148 {offsets = [3, 0, 0], sizes = [1, 16, 32], strides = [1, 1, 1]} : vector<4x16x32xf32> to vector<1x16x32xf32>
    %156 = vector.shape_cast %155 : vector<1x16x32xf32> to vector<16x32xf32>
    %157 = tpu.concatenate %150, %152, %154, %156 in 1 : vector<16x32xf32>, vector<16x32xf32>, vector<16x32xf32>, vector<16x32xf32> -> vector<16x128xf32>
    %158 = vector.extract_strided_slice %49 {offsets = [0, 48, 0], sizes = [4, 16, 32], strides = [1, 1, 1]} : vector<4x64x32xbf16> to vector<4x16x32xbf16>
    %159 = vector.extract_strided_slice %58 {offsets = [0, 48, 0], sizes = [4, 16, 32], strides = [1, 1, 1]} : vector<4x64x32xbf16> to vector<4x16x32xbf16>
    %160 = vector.extract_strided_slice %67 {offsets = [0, 48, 0], sizes = [4, 16, 32], strides = [1, 1, 1]} : vector<4x64x32xbf16> to vector<4x16x32xbf16>
    "tpu.trace_start"() <{level = 10 : i32, message = "hqd,hkd->hqk"}> : () -> ()
    %cst_37 = arith.constant dense<0.000000e+00> : vector<4x16x16xf32>
    %161 = tpu.matmul %158, %159, %cst_37 {dimension_numbers = #tpu.dot_dimension_numbers<[2], [2], [1], [1], [0, 0, 0, 1, 1, 1], [0], [0]>} : vector<4x16x32xbf16>, vector<4x16x32xbf16>, vector<4x16x16xf32> -> vector<4x16x16xf32>
    "tpu.trace_stop"() : () -> ()
    %cst_38 = arith.constant 0.176776692 : f32
    %162 = vector.broadcast %cst_38 : f32 to vector<4x16x16xf32>
    %163 = arith.mulf %161, %162 : vector<4x16x16xf32>
    %164 = vector.shape_cast %3 : vector<16x16xf32> to vector<1x16x16xf32>
    %165 = vector.broadcast %164 : vector<1x16x16xf32> to vector<4x16x16xf32>
    %166 = arith.addf %163, %165 : vector<4x16x16xf32>
    %cst_39 = arith.constant dense<0xFF800000> : vector<4x16xf32>
    %167 = vector.multi_reduction <maximumf>, %166, %cst_39 [2] : vector<4x16x16xf32> to vector<4x16xf32>
    %168 = vector.shape_cast %167 : vector<4x16xf32> to vector<4x16x1xf32>
    %169 = vector.broadcast %168 : vector<4x16x1xf32> to vector<4x16x16xf32>
    %170 = arith.subf %166, %169 : vector<4x16x16xf32>
    %171 = math.exp %170 : vector<4x16x16xf32>
    %cst_40 = arith.constant dense<0.000000e+00> : vector<4x16xf32>
    %172 = vector.multi_reduction <add>, %171, %cst_40 [2] : vector<4x16x16xf32> to vector<4x16xf32>
    %173 = vector.shape_cast %172 : vector<4x16xf32> to vector<4x16x1xf32>
    %174 = tpu.reciprocal %173 {approx = true} : vector<4x16x1xf32> -> vector<4x16x1xf32>
    %175 = vector.broadcast %174 : vector<4x16x1xf32> to vector<4x16x16xf32>
    %176 = arith.mulf %171, %175 : vector<4x16x16xf32>
    %177 = arith.truncf %176 : vector<4x16x16xf32> to vector<4x16x16xbf16>
    "tpu.trace_start"() <{level = 10 : i32, message = "hqk,hkd->hqd"}> : () -> ()
    %cst_41 = arith.constant dense<0.000000e+00> : vector<4x16x32xf32>
    %178 = tpu.matmul %177, %160, %cst_41 {dimension_numbers = #tpu.dot_dimension_numbers<[2], [1], [1], [2], [0, 0, 0, 1, 1, 2], [0], [0]>} : vector<4x16x16xbf16>, vector<4x16x32xbf16>, vector<4x16x32xf32> -> vector<4x16x32xf32>
    "tpu.trace_stop"() : () -> ()
    %179 = vector.extract_strided_slice %178 {offsets = [0, 0, 0], sizes = [1, 16, 32], strides = [1, 1, 1]} : vector<4x16x32xf32> to vector<1x16x32xf32>
    %180 = vector.shape_cast %179 : vector<1x16x32xf32> to vector<16x32xf32>
    %181 = vector.extract_strided_slice %178 {offsets = [1, 0, 0], sizes = [1, 16, 32], strides = [1, 1, 1]} : vector<4x16x32xf32> to vector<1x16x32xf32>
    %182 = vector.shape_cast %181 : vector<1x16x32xf32> to vector<16x32xf32>
    %183 = vector.extract_strided_slice %178 {offsets = [2, 0, 0], sizes = [1, 16, 32], strides = [1, 1, 1]} : vector<4x16x32xf32> to vector<1x16x32xf32>
    %184 = vector.shape_cast %183 : vector<1x16x32xf32> to vector<16x32xf32>
    %185 = vector.extract_strided_slice %178 {offsets = [3, 0, 0], sizes = [1, 16, 32], strides = [1, 1, 1]} : vector<4x16x32xf32> to vector<1x16x32xf32>
    %186 = vector.shape_cast %185 : vector<1x16x32xf32> to vector<16x32xf32>
    %187 = tpu.concatenate %180, %182, %184, %186 in 1 : vector<16x32xf32>, vector<16x32xf32>, vector<16x32xf32>, vector<16x32xf32> -> vector<16x128xf32>
    %188 = tpu.concatenate %97, %127, %157, %187 in 0 : vector<16x128xf32>, vector<16x128xf32>, vector<16x128xf32>, vector<16x128xf32> -> vector<64x128xf32>
    %c0_42 = arith.constant 0 : index
    %c0_43 = arith.constant 0 : index
    %c0_44 = arith.constant 0 : index
    %189 = vector.load %arg7[%c0_42, %c0_43, %c0_44] : memref<1x128x128xbf16, #tpu.memory_space<vmem>>, vector<1x128x128xbf16>
    %190 = vector.shape_cast %189 : vector<1x128x128xbf16> to vector<128x128xbf16>
    %c0_45 = arith.constant 0 : index
    %c0_46 = arith.constant 0 : index
    %c0_47 = arith.constant 0 : index
    %191 = vector.load %arg8[%c0_45, %c0_46, %c0_47] : memref<1x1x128xf32, #tpu.memory_space<vmem>>, vector<1x1x128xf32>
    %192 = vector.shape_cast %191 : vector<1x1x128xf32> to vector<1x128xf32>
    %193 = arith.truncf %188 : vector<64x128xf32> to vector<64x128xbf16>
    %cst_48 = arith.constant dense<0.000000e+00> : vector<64x128xf32>
    %194 = tpu.matmul %193, %190, %cst_48 {dimension_numbers = #tpu.dot_dimension_numbers<[1], [0], [0], [1], [0, 0, 1, 1], [], []>} : vector<64x128xbf16>, vector<128x128xbf16>, vector<64x128xf32> -> vector<64x128xf32>
    %195 = vector.broadcast %192 : vector<1x128xf32> to vector<64x128xf32>
    %196 = arith.addf %194, %195 : vector<64x128xf32>
    %197 = arith.addf %5, %196 : vector<64x128xf32>
    %c0_49 = arith.constant 0 : index
    %c0_50 = arith.constant 0 : index
    %c0_51 = arith.constant 0 : index
    %198 = vector.load %arg9[%c0_49, %c0_50, %c0_51] : memref<1x1x128xf32, #tpu.memory_space<vmem>>, vector<1x1x128xf32>
    %199 = vector.shape_cast %198 : vector<1x1x128xf32> to vector<1x128xf32>
    %c0_52 = arith.constant 0 : index
    %c0_53 = arith.constant 0 : index
    %c0_54 = arith.constant 0 : index
    %200 = vector.load %arg10[%c0_52, %c0_53, %c0_54] : memref<1x1x128xf32, #tpu.memory_space<vmem>>, vector<1x1x128xf32>
    %201 = vector.shape_cast %200 : vector<1x1x128xf32> to vector<1x128xf32>
    %cst_55 = arith.constant dense<0.000000e+00> : vector<64xf32>
    %202 = vector.multi_reduction <add>, %197, %cst_55 [1] : vector<64x128xf32> to vector<64xf32>
    %203 = vector.shape_cast %202 : vector<64xf32> to vector<64x1xf32>
    %cst_56 = arith.constant 1.280000e+02 : f32
    %204 = vector.broadcast %cst_56 : f32 to vector<64x1xf32>
    %205 = arith.divf %203, %204 : vector<64x1xf32>
    %206 = vector.broadcast %205 : vector<64x1xf32> to vector<64x128xf32>
    %207 = arith.subf %197, %206 : vector<64x128xf32>
    %208 = arith.mulf %207, %207 : vector<64x128xf32>
    %cst_57 = arith.constant dense<0.000000e+00> : vector<64xf32>
    %209 = vector.multi_reduction <add>, %208, %cst_57 [1] : vector<64x128xf32> to vector<64xf32>
    %210 = vector.shape_cast %209 : vector<64xf32> to vector<64x1xf32>
    %cst_58 = arith.constant 1.280000e+02 : f32
    %211 = vector.broadcast %cst_58 : f32 to vector<64x1xf32>
    %212 = arith.divf %210, %211 : vector<64x1xf32>
    %213 = vector.broadcast %205 : vector<64x1xf32> to vector<64x128xf32>
    %214 = arith.subf %197, %213 : vector<64x128xf32>
    %cst_59 = arith.constant 9.99999974E-6 : f32
    %215 = vector.broadcast %cst_59 : f32 to vector<64x1xf32>
    %216 = arith.addf %212, %215 : vector<64x1xf32>
    %217 = math.rsqrt %216 : vector<64x1xf32>
    %218 = vector.broadcast %217 : vector<64x1xf32> to vector<64x128xf32>
    %219 = arith.mulf %214, %218 : vector<64x128xf32>
    %220 = vector.broadcast %199 : vector<1x128xf32> to vector<64x128xf32>
    %221 = arith.mulf %219, %220 : vector<64x128xf32>
    %222 = vector.broadcast %201 : vector<1x128xf32> to vector<64x128xf32>
    %223 = arith.addf %221, %222 : vector<64x128xf32>
    %c0_60 = arith.constant 0 : index
    %c0_61 = arith.constant 0 : index
    %c0_62 = arith.constant 0 : index
    %224 = vector.load %arg11[%c0_60, %c0_61, %c0_62] : memref<1x128x512xbf16, #tpu.memory_space<vmem>>, vector<1x128x512xbf16>
    %225 = vector.shape_cast %224 : vector<1x128x512xbf16> to vector<128x512xbf16>
    %c0_63 = arith.constant 0 : index
    %c0_64 = arith.constant 0 : index
    %c0_65 = arith.constant 0 : index
    %226 = vector.load %arg12[%c0_63, %c0_64, %c0_65] : memref<1x1x512xf32, #tpu.memory_space<vmem>>, vector<1x1x512xf32>
    %227 = vector.shape_cast %226 : vector<1x1x512xf32> to vector<1x512xf32>
    %228 = arith.truncf %223 : vector<64x128xf32> to vector<64x128xbf16>
    %cst_66 = arith.constant dense<0.000000e+00> : vector<64x512xf32>
    %229 = tpu.matmul %228, %225, %cst_66 {dimension_numbers = #tpu.dot_dimension_numbers<[1], [0], [0], [1], [0, 0, 1, 1], [], []>} : vector<64x128xbf16>, vector<128x512xbf16>, vector<64x512xf32> -> vector<64x512xf32>
    %230 = vector.broadcast %227 : vector<1x512xf32> to vector<64x512xf32>
    %231 = arith.addf %229, %230 : vector<64x512xf32>
    %232 = arith.mulf %231, %231 : vector<64x512xf32>
    %233 = arith.mulf %231, %232 : vector<64x512xf32>
    %cst_67 = arith.constant 4.471500e-02 : f32
    %234 = vector.broadcast %cst_67 : f32 to vector<64x512xf32>
    %235 = arith.mulf %234, %233 : vector<64x512xf32>
    %236 = arith.addf %231, %235 : vector<64x512xf32>
    %cst_68 = arith.constant 0.797884583 : f32
    %237 = vector.broadcast %cst_68 : f32 to vector<64x512xf32>
    %238 = arith.mulf %237, %236 : vector<64x512xf32>
    %239 = math.tanh %238 : vector<64x512xf32>
    %cst_69 = arith.constant 1.000000e+00 : f32
    %240 = vector.broadcast %cst_69 : f32 to vector<64x512xf32>
    %241 = arith.addf %240, %239 : vector<64x512xf32>
    %cst_70 = arith.constant 5.000000e-01 : f32
    %242 = vector.broadcast %cst_70 : f32 to vector<64x512xf32>
    %243 = arith.mulf %242, %241 : vector<64x512xf32>
    %244 = arith.mulf %231, %243 : vector<64x512xf32>
    %c0_71 = arith.constant 0 : index
    %c0_72 = arith.constant 0 : index
    %c0_73 = arith.constant 0 : index
    %245 = vector.load %arg13[%c0_71, %c0_72, %c0_73] : memref<1x512x128xbf16, #tpu.memory_space<vmem>>, vector<1x512x128xbf16>
    %246 = vector.shape_cast %245 : vector<1x512x128xbf16> to vector<512x128xbf16>
    %c0_74 = arith.constant 0 : index
    %c0_75 = arith.constant 0 : index
    %c0_76 = arith.constant 0 : index
    %247 = vector.load %arg14[%c0_74, %c0_75, %c0_76] : memref<1x1x128xf32, #tpu.memory_space<vmem>>, vector<1x1x128xf32>
    %248 = vector.shape_cast %247 : vector<1x1x128xf32> to vector<1x128xf32>
    %249 = arith.truncf %244 : vector<64x512xf32> to vector<64x512xbf16>
    %cst_77 = arith.constant dense<0.000000e+00> : vector<64x128xf32>
    %250 = tpu.matmul %249, %246, %cst_77 {dimension_numbers = #tpu.dot_dimension_numbers<[1], [0], [0], [1], [0, 0, 1, 1], [], []>} : vector<64x512xbf16>, vector<512x128xbf16>, vector<64x128xf32> -> vector<64x128xf32>
    %251 = vector.broadcast %248 : vector<1x128xf32> to vector<64x128xf32>
    %252 = arith.addf %250, %251 : vector<64x128xf32>
    %253 = arith.addf %197, %252 : vector<64x128xf32>
    %c1_i32 = arith.constant 1 : i32
    %254 = arith.cmpi eq, %arg1, %c1_i32 : i32
    %255 = arith.extui %254 : i1 to i32
    %c0_i32_78 = arith.constant 0 : i32
    %256 = arith.cmpi ne, %255, %c0_i32_78 : i32
    scf.if %256 {
      %c0_80 = arith.constant 0 : index
      %c0_81 = arith.constant 0 : index
      %260 = vector.load %arg15[%c0_80, %c0_81] : memref<1x128xf32, #tpu.memory_space<vmem>>, vector<1x128xf32>
      %c0_82 = arith.constant 0 : index
      %c0_83 = arith.constant 0 : index
      %261 = vector.load %arg16[%c0_82, %c0_83] : memref<1x128xf32, #tpu.memory_space<vmem>>, vector<1x128xf32>
      %cst_84 = arith.constant dense<0.000000e+00> : vector<64xf32>
      %262 = vector.multi_reduction <add>, %253, %cst_84 [1] : vector<64x128xf32> to vector<64xf32>
      %263 = vector.shape_cast %262 : vector<64xf32> to vector<64x1xf32>
      %cst_85 = arith.constant 1.280000e+02 : f32
      %264 = vector.broadcast %cst_85 : f32 to vector<64x1xf32>
      %265 = arith.divf %263, %264 : vector<64x1xf32>
      %266 = vector.broadcast %265 : vector<64x1xf32> to vector<64x128xf32>
      %267 = arith.subf %253, %266 : vector<64x128xf32>
      %268 = arith.mulf %267, %267 : vector<64x128xf32>
      %cst_86 = arith.constant dense<0.000000e+00> : vector<64xf32>
      %269 = vector.multi_reduction <add>, %268, %cst_86 [1] : vector<64x128xf32> to vector<64xf32>
      %270 = vector.shape_cast %269 : vector<64xf32> to vector<64x1xf32>
      %cst_87 = arith.constant 1.280000e+02 : f32
      %271 = vector.broadcast %cst_87 : f32 to vector<64x1xf32>
      %272 = arith.divf %270, %271 : vector<64x1xf32>
      %273 = vector.broadcast %265 : vector<64x1xf32> to vector<64x128xf32>
      %274 = arith.subf %253, %273 : vector<64x128xf32>
      %cst_88 = arith.constant 9.99999974E-6 : f32
      %275 = vector.broadcast %cst_88 : f32 to vector<64x1xf32>
      %276 = arith.addf %272, %275 : vector<64x1xf32>
      %277 = math.rsqrt %276 : vector<64x1xf32>
      %278 = vector.broadcast %277 : vector<64x1xf32> to vector<64x128xf32>
      %279 = arith.mulf %274, %278 : vector<64x128xf32>
      %280 = vector.broadcast %260 : vector<1x128xf32> to vector<64x128xf32>
      %281 = arith.mulf %279, %280 : vector<64x128xf32>
      %282 = vector.broadcast %261 : vector<1x128xf32> to vector<64x128xf32>
      %283 = arith.addf %281, %282 : vector<64x128xf32>
      %284 = vector.shape_cast %283 : vector<64x128xf32> to vector<4x16x128xf32>
      %c0_89 = arith.constant 0 : index
      %c0_90 = arith.constant 0 : index
      %c0_91 = arith.constant 0 : index
      %285 = vector.load %arg17[%c0_89, %c0_90, %c0_91] : memref<4x16x128xf32, #tpu.memory_space<vmem>>, vector<4x16x128xf32>
      tpu.vector_store %arg17[%c0_89, %c0_90, %c0_91], %284 {strides = array<i32>} : memref<4x16x128xf32, #tpu.memory_space<vmem>>, vector<4x16x128xf32>,
    } else {
    }
    %true = arith.constant true
    %257 = arith.xori %254, %true : i1
    %258 = arith.extui %257 : i1 to i32
    %c0_i32_79 = arith.constant 0 : i32
    %259 = arith.cmpi ne, %258, %c0_i32_79 : i32
    scf.if %259 {
      %260 = vector.shape_cast %253 : vector<64x128xf32> to vector<4x16x128xf32>
      %c0_80 = arith.constant 0 : index
      %c0_81 = arith.constant 0 : index
      %c0_82 = arith.constant 0 : index
      %261 = vector.load %arg17[%c0_80, %c0_81, %c0_82] : memref<4x16x128xf32, #tpu.memory_space<vmem>>, vector<4x16x128xf32>
      tpu.vector_store %arg17[%c0_80, %c0_81, %c0_82], %260 {strides = array<i32>} : memref<4x16x128xf32, #tpu.memory_space<vmem>>, vector<4x16x128xf32>,
    } else {
    }
    return
  }
  func.func @transform_0(%arg0: i32, %arg1: i32) -> (i32, i32, i32) {
    %c0_i32 = arith.constant 0 : i32
    %c0_i32_0 = arith.constant 0 : i32
    %c0_i32_1 = arith.constant 0 : i32
    return %arg0, %c0_i32, %c0_i32_0 : i32, i32, i32
  }
  func.func @transform_1(%arg0: i32, %arg1: i32) -> (i32, i32, i32) {
    %c0_i32 = arith.constant 0 : i32
    %c0_i32_0 = arith.constant 0 : i32
    %c0_i32_1 = arith.constant 0 : i32
    return %arg1, %c0_i32, %c0_i32_0 : i32, i32, i32
  }
  func.func @transform_2(%arg0: i32, %arg1: i32) -> (i32, i32, i32) {
    %c0_i32 = arith.constant 0 : i32
    %c0_i32_0 = arith.constant 0 : i32
    %c0_i32_1 = arith.constant 0 : i32
    return %arg1, %c0_i32, %c0_i32_0 : i32, i32, i32
  }
  func.func @transform_3(%arg0: i32, %arg1: i32) -> (i32, i32, i32) {
    %c0_i32 = arith.constant 0 : i32
    %c0_i32_0 = arith.constant 0 : i32
    %c0_i32_1 = arith.constant 0 : i32
    return %arg1, %c0_i32, %c0_i32_0 : i32, i32, i32
  }
  func.func @transform_4(%arg0: i32, %arg1: i32) -> (i32, i32, i32) {
    %c0_i32 = arith.constant 0 : i32
    %c0_i32_0 = arith.constant 0 : i32
    %c0_i32_1 = arith.constant 0 : i32
    return %arg1, %c0_i32, %c0_i32_0 : i32, i32, i32
  }
  func.func @transform_5(%arg0: i32, %arg1: i32) -> (i32, i32, i32) {
    %c0_i32 = arith.constant 0 : i32
    %c0_i32_0 = arith.constant 0 : i32
    %c0_i32_1 = arith.constant 0 : i32
    return %arg1, %c0_i32, %c0_i32_0 : i32, i32, i32
  }
  func.func @transform_6(%arg0: i32, %arg1: i32) -> (i32, i32, i32) {
    %c0_i32 = arith.constant 0 : i32
    %c0_i32_0 = arith.constant 0 : i32
    %c0_i32_1 = arith.constant 0 : i32
    return %arg1, %c0_i32, %c0_i32_0 : i32, i32, i32
  }
  func.func @transform_7(%arg0: i32, %arg1: i32) -> (i32, i32, i32) {
    %c0_i32 = arith.constant 0 : i32
    %c0_i32_0 = arith.constant 0 : i32
    %c0_i32_1 = arith.constant 0 : i32
    return %arg1, %c0_i32, %c0_i32_0 : i32, i32, i32
  }
  func.func @transform_8(%arg0: i32, %arg1: i32) -> (i32, i32, i32) {
    %c0_i32 = arith.constant 0 : i32
    %c0_i32_0 = arith.constant 0 : i32
    %c0_i32_1 = arith.constant 0 : i32
    return %arg1, %c0_i32, %c0_i32_0 : i32, i32, i32
  }
  func.func @transform_9(%arg0: i32, %arg1: i32) -> (i32, i32, i32) {
    %c0_i32 = arith.constant 0 : i32
    %c0_i32_0 = arith.constant 0 : i32
    %c0_i32_1 = arith.constant 0 : i32
    return %arg1, %c0_i32, %c0_i32_0 : i32, i32, i32
  }
  func.func @transform_10(%arg0: i32, %arg1: i32) -> (i32, i32, i32) {
    %c0_i32 = arith.constant 0 : i32
    %c0_i32_0 = arith.constant 0 : i32
    %c0_i32_1 = arith.constant 0 : i32
    return %arg1, %c0_i32, %c0_i32_0 : i32, i32, i32
  }
  func.func @transform_11(%arg0: i32, %arg1: i32) -> (i32, i32, i32) {
    %c0_i32 = arith.constant 0 : i32
    %c0_i32_0 = arith.constant 0 : i32
    %c0_i32_1 = arith.constant 0 : i32
    return %arg1, %c0_i32, %c0_i32_0 : i32, i32, i32
  }
  func.func @transform_12(%arg0: i32, %arg1: i32) -> (i32, i32, i32) {
    %c0_i32 = arith.constant 0 : i32
    %c0_i32_0 = arith.constant 0 : i32
    %c0_i32_1 = arith.constant 0 : i32
    return %arg1, %c0_i32, %c0_i32_0 : i32, i32, i32
  }
  func.func @transform_13(%arg0: i32, %arg1: i32) -> (i32, i32) {
    %c0_i32 = arith.constant 0 : i32
    %c0_i32_0 = arith.constant 0 : i32
    %c0_i32_1 = arith.constant 0 : i32
    return %c0_i32, %c0_i32_0 : i32, i32
  }
  func.func @transform_14(%arg0: i32, %arg1: i32) -> (i32, i32) {
    %c0_i32 = arith.constant 0 : i32
    %c0_i32_0 = arith.constant 0 : i32
    %c0_i32_1 = arith.constant 0 : i32
    return %c0_i32, %c0_i32_0 : i32, i32
  }
  func.func @transform_15(%arg0: i32, %arg1: i32) -> (i32, i32, i32) {
    %c0_i32 = arith.constant 0 : i32
    %c0_i32_0 = arith.constant 0 : i32
    %c0_i32_1 = arith.constant 0 : i32
    return %arg0, %c0_i32, %c0_i32_0 : i32, i32, i32
  }
}

</mosaic_0001>

<llo_original>
// kernel: tpu_custom_call.1
$region0: #{tpu_custom_call.1}
  #allocation0 [shape = 'u32[]', space=smem, size = 0x4, offset = 0x4, fixed_abs, tag = 'smem constant byte address 0x4 - core index']
  #allocation1 [shape = 'u32[72,128]{1,0:T(1,128)}', space=vmem, size = 0x9000, scoped, tag = 'internal scratch']
  #allocation2 [shape = 'f32[16,16]{1,0:T(8,128)}', space=vmem, size = 0x2000, scoped, tag = 'scratch operand']
  %s0 = inlined_call_operand.hbm [shape: f32[8,16,128], index: 0, kind: input, shape index: {}, may-alias: {0,15}]
  %s1 = inlined_call_operand.vmem [shape: f32[2,1,128], index: 1, kind: input, shape index: {}]
  %s2 = inlined_call_operand.vmem [shape: f32[2,1,128], index: 2, kind: input, shape index: {}]
  %s3 = inlined_call_operand.hbm [shape: bf16[2,128,384], index: 3, kind: input, shape index: {}]
  %s4 = inlined_call_operand.vmem [shape: f32[2,1,384], index: 4, kind: input, shape index: {}]
  %s5 = inlined_call_operand.vmem [shape: bf16[2,128,128], index: 5, kind: input, shape index: {}]
  %s6 = inlined_call_operand.vmem [shape: f32[2,1,128], index: 6, kind: input, shape index: {}]
  %s7 = inlined_call_operand.vmem [shape: f32[2,1,128], index: 7, kind: input, shape index: {}]
  %s8 = inlined_call_operand.vmem [shape: f32[2,1,128], index: 8, kind: input, shape index: {}]
  %s9 = inlined_call_operand.hbm [shape: bf16[2,128,512], index: 9, kind: input, shape index: {}]
  %s10 = inlined_call_operand.vmem [shape: f32[2,1,512], index: 10, kind: input, shape index: {}]
  %s11 = inlined_call_operand.hbm [shape: bf16[2,512,128], index: 11, kind: input, shape index: {}]
  %s12 = inlined_call_operand.vmem [shape: f32[2,1,128], index: 12, kind: input, shape index: {}]
  %s13 = inlined_call_operand.vmem [shape: f32[1,128], index: 13, kind: input, shape index: {}]
  %s14 = inlined_call_operand.vmem [shape: f32[1,128], index: 14, kind: input, shape index: {}]
  %s15 = inlined_call_operand.hbm [shape: f32[8,16,128], index: 15, kind: output, shape index: {}, may-alias: {0,15}]
  %s16 = sld [smem:[#allocation0]]
  $region121: #{tpu_custom_call.1} parent=0
    _
  %s18 = ssub.s32 1, %s16
  %s19 = scalar_select 0, %s18, %s16
  $region1: #{tpu_custom_call.1} parent=0
    #allocation3 [shape = 'u8[65536]{0}', space=vmem, size = 0x10000, scoped, tag = 'input window, operand 0']
    #allocation4 [shape = 's32[2]{0}', space=sflag, size = 0x8, scoped, tag = 'scoped memory for tpu_custom_call.1']
    #allocation5 [shape = 's32[2]{0}', space=sflag, size = 0x8, scoped, tag = 'scoped memory for tpu_custom_call.1']
    #allocation6 [shape = 'u8[196608]{0}', space=vmem, size = 0x30000, scoped, tag = 'input window, operand 3']
    #allocation7 [shape = 's32[2]{0}', space=sflag, size = 0x8, scoped, tag = 'scoped memory for tpu_custom_call.1']
    #allocation8 [shape = 'u8[262144]{0}', space=vmem, size = 0x40000, scoped, tag = 'input window, operand 9']
    #allocation9 [shape = 'u8[262144]{0}', space=vmem, size = 0x40000, scoped, tag = 'input window, operand 11']
    #allocation10 [shape = 's32[2]{0}', space=sflag, size = 0x8, scoped, tag = 'scoped memory for tpu_custom_call.1']
    #allocation11 [shape = 'u8[65536]{0}', space=vmem, size = 0x10000, scoped, tag = 'output window, operand 0']
    %20 = vsyncpa [#allocation4], 0
    %s21 = scalar_lea.sflag [#allocation4], 1
    %22 = vsyncpa %s21, 0
    %23 = vsyncpa [#allocation7], 0
    %s24 = scalar_lea.sflag [#allocation7], 1
    %25 = vsyncpa %s24, 0
    %26 = vsyncpa [#allocation10], 0
    %s27 = scalar_lea.sflag [#allocation10], 1
    %28 = vsyncpa %s27, 0
    %29 = vsyncpa [#allocation5], 0
    %s30 = scalar_lea.sflag [#allocation5], 1
    %31 = vsyncpa %s30, 0
    loop: start=0, step=1, limit=6
    $region2: #{tpu_custom_call.1} parent=1 // loop_pre_header
      _
    $region3: #{tpu_custom_call.1} parent=1 // loop_header
      %s33 = sphi 0, %s37
      %p34 = scmp.ge.s32.totalorder %s33, 6
      %s40 = sphi 0, %s52
      %s41 = sphi 0, %s48
      %s42 = sphi 0, %s40
      %s43 = sphi 0, %s41
      %s44 = sphi 0, %s42
      %s45 = sphi 0, %s43
      %s55 = sphi 0, %s57
      %s58 = sphi 0, %s55
      %s59 = sphi 0, %s58
      %s75 = sphi 0, %s59
      %s81 = sphi 0, %s83
      %s84 = sphi 0, %s81
      %s85 = sphi 0, %s84
      %s101 = sphi 0, %s85
      %s107 = sphi 0, %s109
      %s110 = sphi 0, %s107
      %s111 = sphi 0, %s110
      %s127 = sphi 0, %s111
      %s133 = sphi 0, %s135
      %s136 = sphi 0, %s133
      %s137 = sphi 0, %s136
      %s153 = sphi 0, %s137
      %s159 = sphi 0, %s161
      %s162 = sphi 0, %s159
      %s163 = sphi 0, %s162
      %s179 = sphi 0, %s163
      %s185 = sphi 0, %s187
      %s188 = sphi 0, %s185
      %s189 = sphi 0, %s188
      %s205 = sphi 0, %s189
      %s211 = sphi 0, %s213
      %s214 = sphi 0, %s211
      %s215 = sphi 0, %s214
      %s231 = sphi 0, %s215
      %s237 = sphi 0, %s239
      %s240 = sphi 0, %s237
      %s241 = sphi 0, %s240
      %s257 = sphi 0, %s241
      %s263 = sphi 0, %s265
      %s266 = sphi 0, %s263
      %s267 = sphi 0, %s266
      %s283 = sphi 0, %s267
      %s289 = sphi 0, %s291
      %s292 = sphi 0, %s289
      %s293 = sphi 0, %s292
      %s309 = sphi 0, %s293
      %s315 = sphi 0, %s317
      %s318 = sphi 0, %s315
      %s319 = sphi 0, %s318
      %s335 = sphi 0, %s319
      %s341 = sphi 0, %s343
      %s344 = sphi 0, %s341
      %s345 = sphi 0, %s344
      %s361 = sphi 0, %s345
      %s367 = sphi 0, %s369
      %s370 = sphi 0, %s367
      %s371 = sphi 0, %s370
      %s387 = sphi 0, %s371
      %s391 = sphi 0, %s391
      %s393 = sphi 0, %s391
      %s394 = sphi 0, %s393
      %s408 = sphi 0, %s394
      %s412 = sphi 0, %s412
      %s414 = sphi 0, %s412
      %s415 = sphi 0, %s414
      %s429 = sphi 0, %s415
      %s435 = sphi 0, %s437
      %s438 = sphi 0, %s435
      %s439 = sphi 0, %s438
      %s455 = sphi 0, %s439
    $region4: #{tpu_custom_call.1} parent=1 // loop_header_branch
      %36 = sbr.rel (%p34) target = $region8
    $region5: #{tpu_custom_call.1} parent=1 // loop_body
      %s38 = ssub.s32 %s33, 1
      %s39 = ssub.s32 %s33, 2
      %s46 = sadd.s32 1, %s41
      %p47 = scmp.ge.s32.totalorder %s46, 2
      %s48 = scalar_select %p47, 0, %s46
      %s49 = sadd.s32 1, %s40
      %s50 = scalar_select %p47, %s49, %s40
      %p51 = scmp.ge.s32.totalorder %s50, 2
      %s52 = scalar_select %p51, 0, %s50
      %s53 = ssub.s32 %s40, %s52
      %p54 = scmp.eq.s32.totalorder %s53, 0
      %s56 = sadd.s32 %s55, 1
      %s57 = scalar_select %p54, %s55, %s56
      %p60 = pneg %p54
      %p61 = scmp.eq.s32.totalorder %s33, 3
      %p62 = por %p60, %p61
      %p63 = scmp.ne.s32.totalorder %s55, %s58
      %p64 = scmp.eq.s32.totalorder %s33, 0
      %p65 = por %p63, %p64
      %p66 = scmp.ne.s32.totalorder %s55, %s58
      %p67 = scmp.eq.s32.totalorder %s38, 3
      %p68 = por %p66, %p67
      %p69 = scmp.ne.s32.totalorder %s58, %s59
      %p70 = scmp.eq.s32.totalorder %s38, 0
      %p71 = por %p69, %p70
      %p72 = scmp.ne.s32.totalorder %s58, %s59
      %p73 = scmp.eq.s32.totalorder %s39, 3
      %p74 = por %p72, %p73
      %p76 = scmp.ne.s32.totalorder %s59, %s75
      %p77 = scmp.eq.s32.totalorder %s39, 0
      %p78 = por %p76, %p77
      %s79 = ssub.s32 %s41, %s48
      %p80 = scmp.eq.s32.totalorder %s79, 0
      %s82 = sadd.s32 %s81, 1
      %s83 = scalar_select %p80, %s81, %s82
      %p86 = pneg %p80
      %p87 = scmp.eq.s32.totalorder %s33, 3
      %p88 = por %p86, %p87
      %p89 = scmp.ne.s32.totalorder %s81, %s84
      %p90 = scmp.eq.s32.totalorder %s33, 0
      %p91 = por %p89, %p90
      %p92 = scmp.ne.s32.totalorder %s81, %s84
      %p93 = scmp.eq.s32.totalorder %s38, 3
      %p94 = por %p92, %p93
      %p95 = scmp.ne.s32.totalorder %s84, %s85
      %p96 = scmp.eq.s32.totalorder %s38, 0
      %p97 = por %p95, %p96
      %p98 = scmp.ne.s32.totalorder %s84, %s85
      %p99 = scmp.eq.s32.totalorder %s39, 3
      %p100 = por %p98, %p99
      %p102 = scmp.ne.s32.totalorder %s85, %s101
      %p103 = scmp.eq.s32.totalorder %s39, 0
      %p104 = por %p102, %p103
      %s105 = ssub.s32 %s41, %s48
      %p106 = scmp.eq.s32.totalorder %s105, 0
      %s108 = sadd.s32 %s107, 1
      %s109 = scalar_select %p106, %s107, %s108
      %p112 = pneg %p106
      %p113 = scmp.eq.s32.totalorder %s33, 3
      %p114 = por %p112, %p113
      %p115 = scmp.ne.s32.totalorder %s107, %s110
      %p116 = scmp.eq.s32.totalorder %s33, 0
      %p117 = por %p115, %p116
      %p118 = scmp.ne.s32.totalorder %s107, %s110
      %p119 = scmp.eq.s32.totalorder %s38, 3
      %p120 = por %p118, %p119
      %p121 = scmp.ne.s32.totalorder %s110, %s111
      %p122 = scmp.eq.s32.totalorder %s38, 0
      %p123 = por %p121, %p122
      %p124 = scmp.ne.s32.totalorder %s110, %s111
      %p125 = scmp.eq.s32.totalorder %s39, 3
      %p126 = por %p124, %p125
      %p128 = scmp.ne.s32.totalorder %s111, %s127
      %p129 = scmp.eq.s32.totalorder %s39, 0
      %p130 = por %p128, %p129
      %s131 = ssub.s32 %s41, %s48
      %p132 = scmp.eq.s32.totalorder %s131, 0
      %s134 = sadd.s32 %s133, 1
      %s135 = scalar_select %p132, %s133, %s134
      %p138 = pneg %p132
      %p139 = scmp.eq.s32.totalorder %s33, 3
      %p140 = por %p138, %p139
      %p141 = scmp.ne.s32.totalorder %s133, %s136
      %p142 = scmp.eq.s32.totalorder %s33, 0
      %p143 = por %p141, %p142
      %p144 = scmp.ne.s32.totalorder %s133, %s136
      %p145 = scmp.eq.s32.totalorder %s38, 3
      %p146 = por %p144, %p145
      %p147 = scmp.ne.s32.totalorder %s136, %s137
      %p148 = scmp.eq.s32.totalorder %s38, 0
      %p149 = por %p147, %p148
      %p150 = scmp.ne.s32.totalorder %s136, %s137
      %p151 = scmp.eq.s32.totalorder %s39, 3
      %p152 = por %p150, %p151
      %p154 = scmp.ne.s32.totalorder %s137, %s153
      %p155 = scmp.eq.s32.totalorder %s39, 0
      %p156 = por %p154, %p155
      %s157 = ssub.s32 %s41, %s48
      %p158 = scmp.eq.s32.totalorder %s157, 0
      %s160 = sadd.s32 %s159, 1
      %s161 = scalar_select %p158, %s159, %s160
      %p164 = pneg %p158
      %p165 = scmp.eq.s32.totalorder %s33, 3
      %p166 = por %p164, %p165
      %p167 = scmp.ne.s32.totalorder %s159, %s162
      %p168 = scmp.eq.s32.totalorder %s33, 0
      %p169 = por %p167, %p168
      %p170 = scmp.ne.s32.totalorder %s159, %s162
      %p171 = scmp.eq.s32.totalorder %s38, 3
      %p172 = por %p170, %p171
      %p173 = scmp.ne.s32.totalorder %s162, %s163
      %p174 = scmp.eq.s32.totalorder %s38, 0
      %p175 = por %p173, %p174
      %p176 = scmp.ne.s32.totalorder %s162, %s163
      %p177 = scmp.eq.s32.totalorder %s39, 3
      %p178 = por %p176, %p177
      %p180 = scmp.ne.s32.totalorder %s163, %s179
      %p181 = scmp.eq.s32.totalorder %s39, 0
      %p182 = por %p180, %p181
      %s183 = ssub.s32 %s41, %s48
      %p184 = scmp.eq.s32.totalorder %s183, 0
      %s186 = sadd.s32 %s185, 1
      %s187 = scalar_select %p184, %s185, %s186
      %p190 = pneg %p184
      %p191 = scmp.eq.s32.totalorder %s33, 3
      %p192 = por %p190, %p191
      %p193 = scmp.ne.s32.totalorder %s185, %s188
      %p194 = scmp.eq.s32.totalorder %s33, 0
      %p195 = por %p193, %p194
      %p196 = scmp.ne.s32.totalorder %s185, %s188
      %p197 = scmp.eq.s32.totalorder %s38, 3
      %p198 = por %p196, %p197
      %p199 = scmp.ne.s32.totalorder %s188, %s189
      %p200 = scmp.eq.s32.totalorder %s38, 0
      %p201 = por %p199, %p200
      %p202 = scmp.ne.s32.totalorder %s188, %s189
      %p203 = scmp.eq.s32.totalorder %s39, 3
      %p204 = por %p202, %p203
      %p206 = scmp.ne.s32.totalorder %s189, %s205
      %p207 = scmp.eq.s32.totalorder %s39, 0
      %p208 = por %p206, %p207
      %s209 = ssub.s32 %s41, %s48
      %p210 = scmp.eq.s32.totalorder %s209, 0
      %s212 = sadd.s32 %s211, 1
      %s213 = scalar_select %p210, %s211, %s212
      %p216 = pneg %p210
      %p217 = scmp.eq.s32.totalorder %s33, 3
      %p218 = por %p216, %p217
      %p219 = scmp.ne.s32.totalorder %s211, %s214
      %p220 = scmp.eq.s32.totalorder %s33, 0
      %p221 = por %p219, %p220
      %p222 = scmp.ne.s32.totalorder %s211, %s214
      %p223 = scmp.eq.s32.totalorder %s38, 3
      %p224 = por %p222, %p223
      %p225 = scmp.ne.s32.totalorder %s214, %s215
      %p226 = scmp.eq.s32.totalorder %s38, 0
      %p227 = por %p225, %p226
      %p228 = scmp.ne.s32.totalorder %s214, %s215
      %p229 = scmp.eq.s32.totalorder %s39, 3
      %p230 = por %p228, %p229
      %p232 = scmp.ne.s32.totalorder %s215, %s231
      %p233 = scmp.eq.s32.totalorder %s39, 0
      %p234 = por %p232, %p233
      %s235 = ssub.s32 %s41, %s48
      %p236 = scmp.eq.s32.totalorder %s235, 0
      %s238 = sadd.s32 %s237, 1
      %s239 = scalar_select %p236, %s237, %s238
      %p242 = pneg %p236
      %p243 = scmp.eq.s32.totalorder %s33, 3
      %p244 = por %p242, %p243
      %p245 = scmp.ne.s32.totalorder %s237, %s240
      %p246 = scmp.eq.s32.totalorder %s33, 0
      %p247 = por %p245, %p246
      %p248 = scmp.ne.s32.totalorder %s237, %s240
      %p249 = scmp.eq.s32.totalorder %s38, 3
      %p250 = por %p248, %p249
      %p251 = scmp.ne.s32.totalorder %s240, %s241
      %p252 = scmp.eq.s32.totalorder %s38, 0
      %p253 = por %p251, %p252
      %p254 = scmp.ne.s32.totalorder %s240, %s241
      %p255 = scmp.eq.s32.totalorder %s39, 3
      %p256 = por %p254, %p255
      %p258 = scmp.ne.s32.totalorder %s241, %s257
      %p259 = scmp.eq.s32.totalorder %s39, 0
      %p260 = por %p258, %p259
      %s261 = ssub.s32 %s41, %s48
      %p262 = scmp.eq.s32.totalorder %s261, 0
      %s264 = sadd.s32 %s263, 1
      %s265 = scalar_select %p262, %s263, %s264
      %p268 = pneg %p262
      %p269 = scmp.eq.s32.totalorder %s33, 3
      %p270 = por %p268, %p269
      %p271 = scmp.ne.s32.totalorder %s263, %s266
      %p272 = scmp.eq.s32.totalorder %s33, 0
      %p273 = por %p271, %p272
      %p274 = scmp.ne.s32.totalorder %s263, %s266
      %p275 = scmp.eq.s32.totalorder %s38, 3
      %p276 = por %p274, %p275
      %p277 = scmp.ne.s32.totalorder %s266, %s267
      %p278 = scmp.eq.s32.totalorder %s38, 0
      %p279 = por %p277, %p278
      %p280 = scmp.ne.s32.totalorder %s266, %s267
      %p281 = scmp.eq.s32.totalorder %s39, 3
      %p282 = por %p280, %p281
      %p284 = scmp.ne.s32.totalorder %s267, %s283
      %p285 = scmp.eq.s32.totalorder %s39, 0
      %p286 = por %p284, %p285
      %s287 = ssub.s32 %s41, %s48
      %p288 = scmp.eq.s32.totalorder %s287, 0
      %s290 = sadd.s32 %s289, 1
      %s291 = scalar_select %p288, %s289, %s290
      %p294 = pneg %p288
      %p295 = scmp.eq.s32.totalorder %s33, 3
      %p296 = por %p294, %p295
      %p297 = scmp.ne.s32.totalorder %s289, %s292
      %p298 = scmp.eq.s32.totalorder %s33, 0
      %p299 = por %p297, %p298
      %p300 = scmp.ne.s32.totalorder %s289, %s292
      %p301 = scmp.eq.s32.totalorder %s38, 3
      %p302 = por %p300, %p301
      %p303 = scmp.ne.s32.totalorder %s292, %s293
      %p304 = scmp.eq.s32.totalorder %s38, 0
      %p305 = por %p303, %p304
      %p306 = scmp.ne.s32.totalorder %s292, %s293
      %p307 = scmp.eq.s32.totalorder %s39, 3
      %p308 = por %p306, %p307
      %p310 = scmp.ne.s32.totalorder %s293, %s309
      %p311 = scmp.eq.s32.totalorder %s39, 0
      %p312 = por %p310, %p311
      %s313 = ssub.s32 %s41, %s48
      %p314 = scmp.eq.s32.totalorder %s313, 0
      %s316 = sadd.s32 %s315, 1
      %s317 = scalar_select %p314, %s315, %s316
      %p320 = pneg %p314
      %p321 = scmp.eq.s32.totalorder %s33, 3
      %p322 = por %p320, %p321
      %p323 = scmp.ne.s32.totalorder %s315, %s318
      %p324 = scmp.eq.s32.totalorder %s33, 0
      %p325 = por %p323, %p324
      %p326 = scmp.ne.s32.totalorder %s315, %s318
      %p327 = scmp.eq.s32.totalorder %s38, 3
      %p328 = por %p326, %p327
      %p329 = scmp.ne.s32.totalorder %s318, %s319
      %p330 = scmp.eq.s32.totalorder %s38, 0
      %p331 = por %p329, %p330
      %p332 = scmp.ne.s32.totalorder %s318, %s319
      %p333 = scmp.eq.s32.totalorder %s39, 3
      %p334 = por %p332, %p333
      %p336 = scmp.ne.s32.totalorder %s319, %s335
      %p337 = scmp.eq.s32.totalorder %s39, 0
      %p338 = por %p336, %p337
      %s339 = ssub.s32 %s41, %s48
      %p340 = scmp.eq.s32.totalorder %s339, 0
      %s342 = sadd.s32 %s341, 1
      %s343 = scalar_select %p340, %s341, %s342
      %p346 = pneg %p340
      %p347 = scmp.eq.s32.totalorder %s33, 3
      %p348 = por %p346, %p347
      %p349 = scmp.ne.s32.totalorder %s341, %s344
      %p350 = scmp.eq.s32.totalorder %s33, 0
      %p351 = por %p349, %p350
      %p352 = scmp.ne.s32.totalorder %s341, %s344
      %p353 = scmp.eq.s32.totalorder %s38, 3
      %p354 = por %p352, %p353
      %p355 = scmp.ne.s32.totalorder %s344, %s345
      %p356 = scmp.eq.s32.totalorder %s38, 0
      %p357 = por %p355, %p356
      %p358 = scmp.ne.s32.totalorder %s344, %s345
      %p359 = scmp.eq.s32.totalorder %s39, 3
      %p360 = por %p358, %p359
      %p362 = scmp.ne.s32.totalorder %s345, %s361
      %p363 = scmp.eq.s32.totalorder %s39, 0
      %p364 = por %p362, %p363
      %s365 = ssub.s32 %s41, %s48
      %p366 = scmp.eq.s32.totalorder %s365, 0
      %s368 = sadd.s32 %s367, 1
      %s369 = scalar_select %p366, %s367, %s368
      %p372 = pneg %p366
      %p373 = scmp.eq.s32.totalorder %s33, 3
      %p374 = por %p372, %p373
      %p375 = scmp.ne.s32.totalorder %s367, %s370
      %p376 = scmp.eq.s32.totalorder %s33, 0
      %p377 = por %p375, %p376
      %p378 = scmp.ne.s32.totalorder %s367, %s370
      %p379 = scmp.eq.s32.totalorder %s38, 3
      %p380 = por %p378, %p379
      %p381 = scmp.ne.s32.totalorder %s370, %s371
      %p382 = scmp.eq.s32.totalorder %s38, 0
      %p383 = por %p381, %p382
      %p384 = scmp.ne.s32.totalorder %s370, %s371
      %p385 = scmp.eq.s32.totalorder %s39, 3
      %p386 = por %p384, %p385
      %p388 = scmp.ne.s32.totalorder %s371, %s387
      %p389 = scmp.eq.s32.totalorder %s39, 0
      %p390 = por %p388, %p389
      %s392 = sadd.s32 %s391, 1
      %p395 = scmp.eq.s32.totalorder %s33, 3
      %p396 = scmp.ne.s32.totalorder %s391, %s393
      %p397 = scmp.eq.s32.totalorder %s33, 0
      %p398 = por %p396, %p397
      %p399 = scmp.ne.s32.totalorder %s391, %s393
      %p400 = scmp.eq.s32.totalorder %s38, 3
      %p401 = por %p399, %p400
      %p402 = scmp.ne.s32.totalorder %s393, %s394
      %p403 = scmp.eq.s32.totalorder %s38, 0
      %p404 = por %p402, %p403
      %p405 = scmp.ne.s32.totalorder %s393, %s394
      %p406 = scmp.eq.s32.totalorder %s39, 3
      %p407 = por %p405, %p406
      %p409 = scmp.ne.s32.totalorder %s394, %s408
      %p410 = scmp.eq.s32.totalorder %s39, 0
      %p411 = por %p409, %p410
      %s413 = sadd.s32 %s412, 1
      %p416 = scmp.eq.s32.totalorder %s33, 3
      %p417 = scmp.ne.s32.totalorder %s412, %s414
      %p418 = scmp.eq.s32.totalorder %s33, 0
      %p419 = por %p417, %p418
      %p420 = scmp.ne.s32.totalorder %s412, %s414
      %p421 = scmp.eq.s32.totalorder %s38, 3
      %p422 = por %p420, %p421
      %p423 = scmp.ne.s32.totalorder %s414, %s415
      %p424 = scmp.eq.s32.totalorder %s38, 0
      %p425 = por %p423, %p424
      %p426 = scmp.ne.s32.totalorder %s414, %s415
      %p427 = scmp.eq.s32.totalorder %s39, 3
      %p428 = por %p426, %p427
      %p430 = scmp.ne.s32.totalorder %s415, %s429
      %p431 = scmp.eq.s32.totalorder %s39, 0
      %p432 = por %p430, %p431
      %s433 = ssub.s32 %s40, %s52
      %p434 = scmp.eq.s32.totalorder %s433, 0
      %s436 = sadd.s32 %s435, 1
      %s437 = scalar_select %p434, %s435, %s436
      %p440 = pneg %p434
      %p441 = scmp.eq.s32.totalorder %s33, 3
      %p442 = por %p440, %p441
      %p443 = scmp.ne.s32.totalorder %s435, %s438
      %p444 = scmp.eq.s32.totalorder %s33, 0
      %p445 = por %p443, %p444
      %p446 = scmp.ne.s32.totalorder %s435, %s438
      %p447 = scmp.eq.s32.totalorder %s38, 3
      %p448 = por %p446, %p447
      %p449 = scmp.ne.s32.totalorder %s438, %s439
      %p450 = scmp.eq.s32.totalorder %s38, 0
      %p451 = por %p449, %p450
      %p452 = scmp.ne.s32.totalorder %s438, %s439
      %p453 = scmp.eq.s32.totalorder %s39, 3
      %p454 = por %p452, %p453
      %p456 = scmp.ne.s32.totalorder %s439, %s455
      %p457 = scmp.eq.s32.totalorder %s39, 0
      %p458 = por %p456, %p457
      %p459 = scmp.le.s32.totalorder 1, %s33
      %p460 = scmp.lt.s32.totalorder %s33, 5
      %p461 = pnand %p459, %p460
      %p462 = pneg %p461
      // Predicated region
      $region9: #{tpu_custom_call.1} parent=5 // pred_check
        _
      $region10: #{tpu_custom_call.1} parent=5 // pred_check_branch
        %464 = sbr.rel (%p461) target = $region12
      $region11: #{tpu_custom_call.1} parent=5 // pred_region
        %s465 = ssub.s32 %s33, 1
        // Predicated region
        $region13: #{tpu_custom_call.1} parent=11 // pred_check
          %p466 = pneg %p404
        $region14: #{tpu_custom_call.1} parent=11 // pred_check_branch
          %468 = sbr.rel (%p466) target = $region16
        $region15: #{tpu_custom_call.1} parent=11 // pred_region
          _
        $region16: #{tpu_custom_call.1} parent=11 // pred_fallthru
          _
        // Predicated region
        $region17: #{tpu_custom_call.1} parent=11 // pred_check
          %p469 = pneg %p425
        $region18: #{tpu_custom_call.1} parent=11 // pred_check_branch
          %471 = sbr.rel (%p469) target = $region20
        $region19: #{tpu_custom_call.1} parent=11 // pred_region
          _
        $region20: #{tpu_custom_call.1} parent=11 // pred_fallthru
          _
      $region12: #{tpu_custom_call.1} parent=5 // pred_fallthru
        _
      %p472 = scmp.lt.s32.totalorder %s33, 4
      // Predicated region
      $region21: #{tpu_custom_call.1} parent=5 // pred_check
        %p473 = pneg %p472
      $region22: #{tpu_custom_call.1} parent=5 // pred_check_branch
        %475 = sbr.rel (%p473) target = $region24
      $region23: #{tpu_custom_call.1} parent=5 // pred_region
        // Predicated region
        $region25: #{tpu_custom_call.1} parent=23 // pred_check
          %p476 = pneg %p65
        $region26: #{tpu_custom_call.1} parent=23 // pred_check_branch
          %478 = sbr.rel (%p476) target = $region28
        $region27: #{tpu_custom_call.1} parent=23 // pred_region
          %s479 = sand.u32 %s55, 1
          %s480 = scalar_lea.sflag [#allocation4], %s479
          %s481 = sand.u32 %s55, 1
          %s482 = smul.addr %s481, 64
          %s483 = scalar_lea.vmem [#allocation3], %s482
          %s484 = smul.u32 4, %s40
          %486 = vsyncadd %s480, 0
          %s487 = smul.addr %s484, 2
          %s488 = smul.addr %s487, 8
          %s489 = scalar_lea.hbm %s0, %s488
          %s490 = sshll.u32 %s489, 4
          %s491 = int_to_ptr.hbm [resolvable:$true] %s490
          %s492 = sshll.u32 %s483, 4
          %s493 = int_to_ptr.vmem [resolvable:$true] %s492
          %498 = dma.hbm_to_vmem [thread:$0]  %s491, 1024, %s493, %s480, 128, 128, 8
        $region28: #{tpu_custom_call.1} parent=23 // pred_fallthru
          _
        // Predicated region
        $region29: #{tpu_custom_call.1} parent=23 // pred_check
          %p499 = pneg %p91
        $region30: #{tpu_custom_call.1} parent=23 // pred_check_branch
          %501 = sbr.rel (%p499) target = $region32
        $region31: #{tpu_custom_call.1} parent=23 // pred_region
          %p502 = scmp.lt.s32.totalorder %s41, 1
          %s503 = scalar_select %p502, %s41, 1
          %s504 = scalar_lea.vmem %s1, %s503
        $region32: #{tpu_custom_call.1} parent=23 // pred_fallthru
          _
        // Predicated region
        $region33: #{tpu_custom_call.1} parent=23 // pred_check
          %p505 = pneg %p117
        $region34: #{tpu_custom_call.1} parent=23 // pred_check_branch
          %507 = sbr.rel (%p505) target = $region36
        $region35: #{tpu_custom_call.1} parent=23 // pred_region
          %p508 = scmp.lt.s32.totalorder %s41, 1
          %s509 = scalar_select %p508, %s41, 1
          %s510 = scalar_lea.vmem %s2, %s509
        $region36: #{tpu_custom_call.1} parent=23 // pred_fallthru
          _
        // Predicated region
        $region37: #{tpu_custom_call.1} parent=23 // pred_check
          %p511 = pneg %p143
        $region38: #{tpu_custom_call.1} parent=23 // pred_check_branch
          %513 = sbr.rel (%p511) target = $region40
        $region39: #{tpu_custom_call.1} parent=23 // pred_region
          %s514 = sand.u32 %s33, 1
          %s515 = scalar_lea.sflag [#allocation7], %s514
          %s516 = sand.u32 %s133, 1
          %s517 = smul.addr %s516, 192
          %s518 = scalar_lea.vmem [#allocation6], %s517
          %520 = vsyncadd %s515, 0
          %s521 = smul.addr %s41, 48
          %s522 = smul.addr %s521, 4
          %s523 = scalar_lea.hbm %s3, %s522
          %s524 = sshll.u32 %s523, 4
          %s525 = int_to_ptr.hbm [resolvable:$true] %s524
          %s526 = sshll.u32 %s518, 4
          %s527 = int_to_ptr.vmem [resolvable:$true] %s526
          %532 = dma.hbm_to_vmem [thread:$0]  %s525, 3072, %s527, %s515, 192, 192, 12
        $region40: #{tpu_custom_call.1} parent=23 // pred_fallthru
          _
        // Predicated region
        $region41: #{tpu_custom_call.1} parent=23 // pred_check
          %p533 = pneg %p169
        $region42: #{tpu_custom_call.1} parent=23 // pred_check_branch
          %535 = sbr.rel (%p533) target = $region44
        $region43: #{tpu_custom_call.1} parent=23 // pred_region
          %p536 = scmp.lt.s32.totalorder %s41, 1
          %s537 = scalar_select %p536, %s41, 1
          %s538 = smul.addr %s537, 3
          %s539 = scalar_lea.vmem %s4, %s538
        $region44: #{tpu_custom_call.1} parent=23 // pred_fallthru
          _
        // Predicated region
        $region45: #{tpu_custom_call.1} parent=23 // pred_check
          %p540 = pneg %p195
        $region46: #{tpu_custom_call.1} parent=23 // pred_check_branch
          %542 = sbr.rel (%p540) target = $region48
        $region47: #{tpu_custom_call.1} parent=23 // pred_region
          %p543 = scmp.lt.s32.totalorder %s41, 1
          %s544 = scalar_select %p543, %s41, 1
          %s545 = smul.addr %s544, 16
          %s546 = smul.addr %s545, 4
          %s547 = scalar_lea.vmem %s5, %s546
        $region48: #{tpu_custom_call.1} parent=23 // pred_fallthru
          _
        // Predicated region
        $region49: #{tpu_custom_call.1} parent=23 // pred_check
          %p548 = pneg %p221
        $region50: #{tpu_custom_call.1} parent=23 // pred_check_branch
          %550 = sbr.rel (%p548) target = $region52
        $region51: #{tpu_custom_call.1} parent=23 // pred_region
          %p551 = scmp.lt.s32.totalorder %s41, 1
          %s552 = scalar_select %p551, %s41, 1
          %s553 = scalar_lea.vmem %s6, %s552
        $region52: #{tpu_custom_call.1} parent=23 // pred_fallthru
          _
        // Predicated region
        $region53: #{tpu_custom_call.1} parent=23 // pred_check
          %p554 = pneg %p247
        $region54: #{tpu_custom_call.1} parent=23 // pred_check_branch
          %556 = sbr.rel (%p554) target = $region56
        $region55: #{tpu_custom_call.1} parent=23 // pred_region
          %p557 = scmp.lt.s32.totalorder %s41, 1
          %s558 = scalar_select %p557, %s41, 1
          %s559 = scalar_lea.vmem %s7, %s558
        $region56: #{tpu_custom_call.1} parent=23 // pred_fallthru
          _
        // Predicated region
        $region57: #{tpu_custom_call.1} parent=23 // pred_check
          %p560 = pneg %p273
        $region58: #{tpu_custom_call.1} parent=23 // pred_check_branch
          %562 = sbr.rel (%p560) target = $region60
        $region59: #{tpu_custom_call.1} parent=23 // pred_region
          %p563 = scmp.lt.s32.totalorder %s41, 1
          %s564 = scalar_select %p563, %s41, 1
          %s565 = scalar_lea.vmem %s8, %s564
        $region60: #{tpu_custom_call.1} parent=23 // pred_fallthru
          _
        // Predicated region
        $region61: #{tpu_custom_call.1} parent=23 // pred_check
          %p566 = pneg %p299
        $region62: #{tpu_custom_call.1} parent=23 // pred_check_branch
          %568 = sbr.rel (%p566) target = $region64
        $region63: #{tpu_custom_call.1} parent=23 // pred_region
          %s569 = sand.u32 %s33, 1
          %s570 = scalar_lea.sflag [#allocation7], %s569
          %s571 = sand.u32 %s289, 1
          %s572 = smul.addr %s571, 256
          %s573 = scalar_lea.vmem [#allocation8], %s572
          %575 = vsyncadd %s570, 0
          %s576 = smul.addr %s41, 64
          %s577 = smul.addr %s576, 4
          %s578 = scalar_lea.hbm %s9, %s577
          %s579 = sshll.u32 %s578, 4
          %s580 = int_to_ptr.hbm [resolvable:$true] %s579
          %s581 = sshll.u32 %s573, 4
          %s582 = int_to_ptr.vmem [resolvable:$true] %s581
          %587 = dma.hbm_to_vmem [thread:$0]  %s580, 4096, %s582, %s570, 256, 256, 16
        $region64: #{tpu_custom_call.1} parent=23 // pred_fallthru
          _
        // Predicated region
        $region65: #{tpu_custom_call.1} parent=23 // pred_check
          %p588 = pneg %p325
        $region66: #{tpu_custom_call.1} parent=23 // pred_check_branch
          %590 = sbr.rel (%p588) target = $region68
        $region67: #{tpu_custom_call.1} parent=23 // pred_region
          %p591 = scmp.lt.s32.totalorder %s41, 1
          %s592 = scalar_select %p591, %s41, 1
          %s593 = smul.addr %s592, 4
          %s594 = scalar_lea.vmem %s10, %s593
        $region68: #{tpu_custom_call.1} parent=23 // pred_fallthru
          _
        // Predicated region
        $region69: #{tpu_custom_call.1} parent=23 // pred_check
          %p595 = pneg %p351
        $region70: #{tpu_custom_call.1} parent=23 // pred_check_branch
          %597 = sbr.rel (%p595) target = $region72
        $region71: #{tpu_custom_call.1} parent=23 // pred_region
          %s598 = sand.u32 %s341, 1
          %s599 = scalar_lea.sflag [#allocation10], %s598
          %s600 = sand.u32 %s341, 1
          %s601 = smul.addr %s600, 256
          %s602 = scalar_lea.vmem [#allocation9], %s601
          %604 = vsyncadd %s599, 0
          %s605 = smul.addr %s41, 64
          %s606 = smul.addr %s605, 4
          %s607 = scalar_lea.hbm %s11, %s606
          %s608 = sshll.u32 %s607, 4
          %s609 = int_to_ptr.hbm [resolvable:$true] %s608
          %s610 = sshll.u32 %s602, 4
          %s611 = int_to_ptr.vmem [resolvable:$true] %s610
          %616 = dma.hbm_to_vmem [thread:$0]  %s609, 4096, %s611, %s599, 64, 64, 4
        $region72: #{tpu_custom_call.1} parent=23 // pred_fallthru
          _
        // Predicated region
        $region73: #{tpu_custom_call.1} parent=23 // pred_check
          %p617 = pneg %p377
        $region74: #{tpu_custom_call.1} parent=23 // pred_check_branch
          %619 = sbr.rel (%p617) target = $region76
        $region75: #{tpu_custom_call.1} parent=23 // pred_region
          %p620 = scmp.lt.s32.totalorder %s41, 1
          %s621 = scalar_select %p620, %s41, 1
          %s622 = scalar_lea.vmem %s12, %s621
        $region76: #{tpu_custom_call.1} parent=23 // pred_fallthru
          _
      $region24: #{tpu_custom_call.1} parent=5 // pred_fallthru
        _
      %p623 = scmp.le.s32.totalorder 1, %s33
      %p624 = scmp.lt.s32.totalorder %s33, 5
      %p625 = pnand %p623, %p624
      %p626 = pneg %p625
      // Predicated region
      $region77: #{tpu_custom_call.1} parent=5 // pred_check
        _
      $region78: #{tpu_custom_call.1} parent=5 // pred_check_branch
        %628 = sbr.rel (%p625) target = $region80
      $region79: #{tpu_custom_call.1} parent=5 // pred_region
        %s629 = ssub.s32 %s33, 1
        %s630 = sand.u32 %s58, 1
        %s631 = scalar_lea.sflag [#allocation4], %s630
        %s632 = sand.u32 %s58, 1
        %s633 = smul.addr %s632, 64
        %s634 = scalar_lea.vmem [#allocation3], %s633
        // Predicated region
        $region81: #{tpu_custom_call.1} parent=79 // pred_check
          %p635 = pneg %p71
        $region82: #{tpu_custom_call.1} parent=79 // pred_check_branch
          %637 = sbr.rel (%p635) target = $region84
        $region83: #{tpu_custom_call.1} parent=79 // pred_region
          %639 = dma.done %s631, 1024
        $region84: #{tpu_custom_call.1} parent=79 // pred_fallthru
          _
        %s640 = sand.u32 %s38, 1
        %s641 = scalar_lea.sflag [#allocation7], %s640
        %s642 = sand.u32 %s136, 1
        %s643 = smul.addr %s642, 192
        %s644 = scalar_lea.vmem [#allocation6], %s643
        // Predicated region
        $region85: #{tpu_custom_call.1} parent=79 // pred_check
          %p645 = pneg %p149
        $region86: #{tpu_custom_call.1} parent=79 // pred_check_branch
          %647 = sbr.rel (%p645) target = $region88
        $region87: #{tpu_custom_call.1} parent=79 // pred_region
          %649 = dma.done %s641, 3072
        $region88: #{tpu_custom_call.1} parent=79 // pred_fallthru
          _
        %s650 = sand.u32 %s38, 1
        %s651 = scalar_lea.sflag [#allocation7], %s650
        %s652 = sand.u32 %s292, 1
        %s653 = smul.addr %s652, 256
        %s654 = scalar_lea.vmem [#allocation8], %s653
        // Predicated region
        $region89: #{tpu_custom_call.1} parent=79 // pred_check
          %p655 = pneg %p305
        $region90: #{tpu_custom_call.1} parent=79 // pred_check_branch
          %657 = sbr.rel (%p655) target = $region92
        $region91: #{tpu_custom_call.1} parent=79 // pred_region
          %659 = dma.done %s651, 4096
        $region92: #{tpu_custom_call.1} parent=79 // pred_fallthru
          _
        %s660 = sand.u32 %s344, 1
        %s661 = scalar_lea.sflag [#allocation10], %s660
        %s662 = sand.u32 %s344, 1
        %s663 = smul.addr %s662, 256
        %s664 = scalar_lea.vmem [#allocation9], %s663
        // Predicated region
        $region93: #{tpu_custom_call.1} parent=79 // pred_check
          %p665 = pneg %p357
        $region94: #{tpu_custom_call.1} parent=79 // pred_check_branch
          %667 = sbr.rel (%p665) target = $region96
        $region95: #{tpu_custom_call.1} parent=79 // pred_region
          %669 = dma.done %s661, 4096
        $region96: #{tpu_custom_call.1} parent=79 // pred_fallthru
          _
        %s670 = sand.u32 %s58, 1
        %s671 = scalar_lea.sflag [#allocation4], %s670
        %s672 = sand.u32 %s58, 1
        %s673 = smul.addr %s672, 64
        %s674 = scalar_lea.vmem [#allocation3], %s673
        %p675 = pneg %p71
        %p676 = pneg %p68
        %p677 = scmp.lt.s32.totalorder %s43, 1
        %s678 = scalar_select %p677, %s43, 1
        %s679 = scalar_lea.vmem %s1, %s678
        %p680 = pneg %p97
        %p681 = pneg %p94
        %p682 = scmp.lt.s32.totalorder %s43, 1
        %s683 = scalar_select %p682, %s43, 1
        %s684 = scalar_lea.vmem %s2, %s683
        %p685 = pneg %p123
        %p686 = pneg %p120
        %s687 = sand.u32 %s38, 1
        %s688 = scalar_lea.sflag [#allocation7], %s687
        %s689 = sand.u32 %s136, 1
        %s690 = smul.addr %s689, 192
        %s691 = scalar_lea.vmem [#allocation6], %s690
        %p692 = pneg %p149
        %p693 = pneg %p146
        %p694 = scmp.lt.s32.totalorder %s43, 1
        %s695 = scalar_select %p694, %s43, 1
        %s696 = smul.addr %s695, 3
        %s697 = scalar_lea.vmem %s4, %s696
        %p698 = pneg %p175
        %p699 = pneg %p172
        %p700 = scmp.lt.s32.totalorder %s43, 1
        %s701 = scalar_select %p700, %s43, 1
        %s702 = smul.addr %s701, 16
        %s703 = smul.addr %s702, 4
        %s704 = scalar_lea.vmem %s5, %s703
        %p705 = pneg %p201
        %p706 = pneg %p198
        %p707 = scmp.lt.s32.totalorder %s43, 1
        %s708 = scalar_select %p707, %s43, 1
        %s709 = scalar_lea.vmem %s6, %s708
        %p710 = pneg %p227
        %p711 = pneg %p224
        %p712 = scmp.lt.s32.totalorder %s43, 1
        %s713 = scalar_select %p712, %s43, 1
        %s714 = scalar_lea.vmem %s7, %s713
        %p715 = pneg %p253
        %p716 = pneg %p250
        %p717 = scmp.lt.s32.totalorder %s43, 1
        %s718 = scalar_select %p717, %s43, 1
        %s719 = scalar_lea.vmem %s8, %s718
        %p720 = pneg %p279
        %p721 = pneg %p276
        %s722 = sand.u32 %s38, 1
        %s723 = scalar_lea.sflag [#allocation7], %s722
        %s724 = sand.u32 %s292, 1
        %s725 = smul.addr %s724, 256
        %s726 = scalar_lea.vmem [#allocation8], %s725
        %p727 = pneg %p305
        %p728 = pneg %p302
        %p729 = scmp.lt.s32.totalorder %s43, 1
        %s730 = scalar_select %p729, %s43, 1
        %s731 = smul.addr %s730, 4
        %s732 = scalar_lea.vmem %s10, %s731
        %p733 = pneg %p331
        %p734 = pneg %p328
        %s735 = sand.u32 %s344, 1
        %s736 = scalar_lea.sflag [#allocation10], %s735
        %s737 = sand.u32 %s344, 1
        %s738 = smul.addr %s737, 256
        %s739 = scalar_lea.vmem [#allocation9], %s738
        %p740 = pneg %p357
        %p741 = pneg %p354
        %p742 = scmp.lt.s32.totalorder %s43, 1
        %s743 = scalar_select %p742, %s43, 1
        %s744 = scalar_lea.vmem %s12, %s743
        %p745 = pneg %p383
        %p746 = pneg %p380
        %p747 = pneg %p404
        %p748 = pneg %p401
        %p749 = pneg %p425
        %p750 = pneg %p422
        %p751 = pneg %p451
        %p752 = pneg %p448
        %s753 = sand.u32 %s438, 1
        %s754 = scalar_lea.sflag [#allocation5], %s753
        %s755 = sand.u32 %s438, 1
        %s756 = smul.addr %s755, 64
        %s757 = scalar_lea.vmem [#allocation11], %s756
        %s758 = smul.u32 4, %s42
        %p759 = scmp.lt.s32.totalorder %s43, 1
        %s760 = scalar_select %p759, %s43, 1
        %s761 = scalar_lea.vmem %s1, %s760
        %p762 = scmp.lt.s32.totalorder %s43, 1
        %s763 = scalar_select %p762, %s43, 1
        %s764 = scalar_lea.vmem %s2, %s763
        %p765 = scmp.lt.s32.totalorder %s43, 1
        %s766 = scalar_select %p765, %s43, 1
        %s767 = smul.addr %s766, 3
        %s768 = scalar_lea.vmem %s4, %s767
        %p769 = scmp.lt.s32.totalorder %s43, 1
        %s770 = scalar_select %p769, %s43, 1
        %s771 = smul.addr %s770, 16
        %s772 = smul.addr %s771, 4
        %s773 = scalar_lea.vmem %s5, %s772
        %p774 = scmp.lt.s32.totalorder %s43, 1
        %s775 = scalar_select %p774, %s43, 1
        %s776 = scalar_lea.vmem %s6, %s775
        %p777 = scmp.lt.s32.totalorder %s43, 1
        %s778 = scalar_select %p777, %s43, 1
        %s779 = scalar_lea.vmem %s7, %s778
        %p780 = scmp.lt.s32.totalorder %s43, 1
        %s781 = scalar_select %p780, %s43, 1
        %s782 = scalar_lea.vmem %s8, %s781
        %p783 = scmp.lt.s32.totalorder %s43, 1
        %s784 = scalar_select %p783, %s43, 1
        %s785 = smul.addr %s784, 4
        %s786 = scalar_lea.vmem %s10, %s785
        %p787 = scmp.lt.s32.totalorder %s43, 1
        %s788 = scalar_select %p787, %s43, 1
        %s789 = scalar_lea.vmem %s12, %s788
        %s790 = smul.u32 4, %s42
        %p792 = scmp.eq.s32.totalorder %s43, 0
        // Predicated region
        $region97: #{tpu_custom_call.1} parent=79 // pred_check
          %p793 = pneg %p792
        $region98: #{tpu_custom_call.1} parent=79 // pred_check_branch
          %795 = sbr.rel (%p793) target = $region100
        $region99: #{tpu_custom_call.1} parent=79 // pred_region
          %v796 = vld [vmem:[%s634] sm:$0xff]
          %v797 = vld [vmem:[%s634 + $0x8] sm:$0xff]
          %v798 = vld [vmem:[%s634 + $0x10] sm:$0xff]
          %v799 = vld [vmem:[%s634 + $0x18] sm:$0xff]
          %v800 = vld [vmem:[%s634 + $0x20] sm:$0xff]
          %v801 = vld [vmem:[%s634 + $0x28] sm:$0xff]
          %v802 = vld [vmem:[%s634 + $0x30] sm:$0xff]
          %v803 = vld [vmem:[%s634 + $0x38] sm:$0xff]
          %804 = vst [vmem:[%s757] sm:$0xff] %v796
          %805 = vst [vmem:[%s757 + $0x8] sm:$0xff] %v797
          %806 = vst [vmem:[%s757 + $0x10] sm:$0xff] %v798
          %807 = vst [vmem:[%s757 + $0x18] sm:$0xff] %v799
          %808 = vst [vmem:[%s757 + $0x20] sm:$0xff] %v800
          %809 = vst [vmem:[%s757 + $0x28] sm:$0xff] %v801
          %810 = vst [vmem:[%s757 + $0x30] sm:$0xff] %v802
          %811 = vst [vmem:[%s757 + $0x38] sm:$0xff] %v803
          %v812 = vlaneseq
          %v813 = vshrl.u32 %v812, 7
          %v814 = vadd.s32 %v813, 8
          %v815 = vlaneseq
          %v816 = vand.u32 %v815, 127
          %vm817 = vcmp.gt.s32.totalorder %v816, %v813
          %vm818 = vcmp.gt.s32.totalorder %v816, %v814
          %v819 = vsel %vm817, -1e+30, 0.0
          %v820 = vsel %vm818, -1e+30, 0.0
          %vm821 = vcmask 130048
          %822 = vst.msk [vmem:[#allocation2] sm:$0xff] %vm821, %v819
          %823 = vst.msk [vmem:[#allocation2 + $0x8] sm:$0xff] %vm821, %v820
        $region100: #{tpu_custom_call.1} parent=79 // pred_fallthru
          _
        %v824 = vld [vmem:[#allocation2] sm:$0xff]
        %v825 = vld [vmem:[#allocation2 + $0x8] sm:$0xff]
        %v826 = vld [vmem:[%s757] sm:$0xff]
        %v827 = vld [vmem:[%s757 + $0x8] sm:$0xff]
        %v828 = vld [vmem:[%s757 + $0x10] sm:$0xff]
        %v829 = vld [vmem:[%s757 + $0x18] sm:$0xff]
        %v830 = vld [vmem:[%s757 + $0x20] sm:$0xff]
        %v831 = vld [vmem:[%s757 + $0x28] sm:$0xff]
        %v832 = vld [vmem:[%s757 + $0x30] sm:$0xff]
        %v833 = vld [vmem:[%s757 + $0x38] sm:$0xff]
        %v834 = vld [vmem:[%s761] sm:$0x1]
        %v835 = vld [vmem:[%s764] sm:$0x1]
        %836 = vadd.xlane.f32.xlu0 %v826
        %v837 = vpop.xlane.xlu0 %836
        %838 = vadd.xlane.f32.xlu0 %v827
        %v839 = vpop.xlane.xlu0 %838
        %840 = vadd.xlane.f32.xlu0 %v828
        %v841 = vpop.xlane.xlu0 %840
        %842 = vadd.xlane.f32.xlu0 %v829
        %v843 = vpop.xlane.xlu0 %842
        %844 = vadd.xlane.f32.xlu0 %v830
        %v845 = vpop.xlane.xlu0 %844
        %846 = vadd.xlane.f32.xlu0 %v831
        %v847 = vpop.xlane.xlu0 %846
        %848 = vadd.xlane.f32.xlu0 %v832
        %v849 = vpop.xlane.xlu0 %848
        %850 = vadd.xlane.f32.xlu0 %v833
        %v851 = vpop.xlane.xlu0 %850
        %v852 = vrcp.pop 128.0
        %v853 = vmul.f32 128.0, %v852
        %v854 = vsub.f32 1.0, %v853
        %v855 = vmul.f32 %v852, %v854
        %v856 = vadd.f32 %v852, %v855
        %vm857 = vweird.f32 %v852
        %v858 = vsel %vm857, %v852, %v856
        %v859 = vmul.f32 %v837, %v858
        %v860 = vmul.f32 %v839, %v858
        %v861 = vmul.f32 %v841, %v858
        %v862 = vmul.f32 %v843, %v858
        %v863 = vmul.f32 %v845, %v858
        %v864 = vmul.f32 %v847, %v858
        %v865 = vmul.f32 %v849, %v858
        %v866 = vmul.f32 %v851, %v858
        %v867 = vsub.f32 %v826, %v859
        %v868 = vsub.f32 %v827, %v860
        %v869 = vsub.f32 %v828, %v861
        %v870 = vsub.f32 %v829, %v862
        %v871 = vsub.f32 %v830, %v863
        %v872 = vsub.f32 %v831, %v864
        %v873 = vsub.f32 %v832, %v865
        %v874 = vsub.f32 %v833, %v866
        %v875 = vmul.f32 %v867, %v867
        %v876 = vmul.f32 %v868, %v868
        %v877 = vmul.f32 %v869, %v869
        %v878 = vmul.f32 %v870, %v870
        %v879 = vmul.f32 %v871, %v871
        %v880 = vmul.f32 %v872, %v872
        %v881 = vmul.f32 %v873, %v873
        %v882 = vmul.f32 %v874, %v874
        %883 = vadd.xlane.f32.xlu0 %v875
        %v884 = vpop.xlane.xlu0 %883
        %885 = vadd.xlane.f32.xlu0 %v876
        %v886 = vpop.xlane.xlu0 %885
        %887 = vadd.xlane.f32.xlu0 %v877
        %v888 = vpop.xlane.xlu0 %887
        %889 = vadd.xlane.f32.xlu0 %v878
        %v890 = vpop.xlane.xlu0 %889
        %891 = vadd.xlane.f32.xlu0 %v879
        %v892 = vpop.xlane.xlu0 %891
        %893 = vadd.xlane.f32.xlu0 %v880
        %v894 = vpop.xlane.xlu0 %893
        %895 = vadd.xlane.f32.xlu0 %v881
        %v896 = vpop.xlane.xlu0 %895
        %897 = vadd.xlane.f32.xlu0 %v882
        %v898 = vpop.xlane.xlu0 %897
        %v899 = vmul.f32 %v884, %v858
        %v900 = vmul.f32 %v886, %v858
        %v901 = vmul.f32 %v888, %v858
        %v902 = vmul.f32 %v890, %v858
        %v903 = vmul.f32 %v892, %v858
        %v904 = vmul.f32 %v894, %v858
        %v905 = vmul.f32 %v896, %v858
        %v906 = vmul.f32 %v898, %v858
        %v907 = vadd.f32 %v899, 1e-05
        %v908 = vadd.f32 %v900, 1e-05
        %v909 = vadd.f32 %v901, 1e-05
        %v910 = vadd.f32 %v902, 1e-05
        %v911 = vadd.f32 %v903, 1e-05
        %v912 = vadd.f32 %v904, 1e-05
        %v913 = vadd.f32 %v905, 1e-05
        %v914 = vadd.f32 %v906, 1e-05
        %v915 = vrsqrt.pop %v907
        %v916 = vmul.f32 %v915, %v907
        %v917 = vmul.f32 %v916, %v915
        %v918 = vmul.f32 0.5, %v917
        %v919 = vsub.f32 1.5, %v918
        %v920 = vmul.f32 %v915, %v919
        %vm921 = vweird.f32 %v907
        %vm922 = vweird.f32 %v915
        %vm923 = vmor %vm921, %vm922
        %v924 = vsel %vm923, %v915, %v920
        %v925 = vrsqrt.pop %v908
        %v926 = vmul.f32 %v925, %v908
        %v927 = vmul.f32 %v926, %v925
        %v928 = vmul.f32 0.5, %v927
        %v929 = vsub.f32 1.5, %v928
        %v930 = vmul.f32 %v925, %v929
        %vm931 = vweird.f32 %v908
        %vm932 = vweird.f32 %v925
        %vm933 = vmor %vm931, %vm932
        %v934 = vsel %vm933, %v925, %v930
        %v935 = vrsqrt.pop %v909
        %v936 = vmul.f32 %v935, %v909
        %v937 = vmul.f32 %v936, %v935
        %v938 = vmul.f32 0.5, %v937
        %v939 = vsub.f32 1.5, %v938
        %v940 = vmul.f32 %v935, %v939
        %vm941 = vweird.f32 %v909
        %vm942 = vweird.f32 %v935
        %vm943 = vmor %vm941, %vm942
        %v944 = vsel %vm943, %v935, %v940
        %v945 = vrsqrt.pop %v910
        %v946 = vmul.f32 %v945, %v910
        %v947 = vmul.f32 %v946, %v945
        %v948 = vmul.f32 0.5, %v947
        %v949 = vsub.f32 1.5, %v948
        %v950 = vmul.f32 %v945, %v949
        %vm951 = vweird.f32 %v910
        %vm952 = vweird.f32 %v945
        %vm953 = vmor %vm951, %vm952
        %v954 = vsel %vm953, %v945, %v950
        %v955 = vrsqrt.pop %v911
        %v956 = vmul.f32 %v955, %v911
        %v957 = vmul.f32 %v956, %v955
        %v958 = vmul.f32 0.5, %v957
        %v959 = vsub.f32 1.5, %v958
        %v960 = vmul.f32 %v955, %v959
        %vm961 = vweird.f32 %v911
        %vm962 = vweird.f32 %v955
        %vm963 = vmor %vm961, %vm962
        %v964 = vsel %vm963, %v955, %v960
        %v965 = vrsqrt.pop %v912
        %v966 = vmul.f32 %v965, %v912
        %v967 = vmul.f32 %v966, %v965
        %v968 = vmul.f32 0.5, %v967
        %v969 = vsub.f32 1.5, %v968
        %v970 = vmul.f32 %v965, %v969
        %vm971 = vweird.f32 %v912
        %vm972 = vweird.f32 %v965
        %vm973 = vmor %vm971, %vm972
        %v974 = vsel %vm973, %v965, %v970
        %v975 = vrsqrt.pop %v913
        %v976 = vmul.f32 %v975, %v913
        %v977 = vmul.f32 %v976, %v975
        %v978 = vmul.f32 0.5, %v977
        %v979 = vsub.f32 1.5, %v978
        %v980 = vmul.f32 %v975, %v979
        %vm981 = vweird.f32 %v913
        %vm982 = vweird.f32 %v975
        %vm983 = vmor %vm981, %vm982
        %v984 = vsel %vm983, %v975, %v980
        %v985 = vrsqrt.pop %v914
        %v986 = vmul.f32 %v985, %v914
        %v987 = vmul.f32 %v986, %v985
        %v988 = vmul.f32 0.5, %v987
        %v989 = vsub.f32 1.5, %v988
        %v990 = vmul.f32 %v985, %v989
        %vm991 = vweird.f32 %v914
        %vm992 = vweird.f32 %v985
        %vm993 = vmor %vm991, %vm992
        %v994 = vsel %vm993, %v985, %v990
        %v995 = vmul.f32 %v867, %v924
        %v996 = vmul.f32 %v868, %v934
        %v997 = vmul.f32 %v869, %v944
        %v998 = vmul.f32 %v870, %v954
        %v999 = vmul.f32 %v871, %v964
        %v1000 = vmul.f32 %v872, %v974
        %v1001 = vmul.f32 %v873, %v984
        %v1002 = vmul.f32 %v874, %v994
        %v1004 = vperm.slane %v834, 0
        %v1006 = vmul.f32 %v995, %v1004
        %v1007 = vmul.f32 %v996, %v1004
        %v1008 = vmul.f32 %v997, %v1004
        %v1009 = vmul.f32 %v998, %v1004
        %v1010 = vmul.f32 %v999, %v1004
        %v1011 = vmul.f32 %v1000, %v1004
        %v1012 = vmul.f32 %v1001, %v1004
        %v1013 = vmul.f32 %v1002, %v1004
        %v1015 = vperm.slane %v835, 0
        %v1017 = vadd.f32 %v1006, %v1015
        %v1018 = vadd.f32 %v1007, %v1015
        %v1019 = vadd.f32 %v1008, %v1015
        %v1020 = vadd.f32 %v1009, %v1015
        %v1021 = vadd.f32 %v1010, %v1015
        %v1022 = vadd.f32 %v1011, %v1015
        %v1023 = vadd.f32 %v1012, %v1015
        %v1024 = vadd.f32 %v1013, %v1015
        %v1025 = vld [vmem:[%s644] sm:$0xff]
        %v1026 = vld [vmem:[%s644 + $0x8] sm:$0xf]
        %v1027 = vld [vmem:[%s644 + $0xc] sm:$0xff]
        %v1028 = vld [vmem:[%s644 + $0x14] sm:$0xf]
        %v1029 = vld [vmem:[%s644 + $0x18] sm:$0xff]
        %v1030 = vld [vmem:[%s644 + $0x20] sm:$0xf]
        %v1031 = vld [vmem:[%s644 + $0x24] sm:$0xff]
        %v1032 = vld [vmem:[%s644 + $0x2c] sm:$0xf]
        %v1033 = vld [vmem:[%s644 + $0x30] sm:$0xff]
        %v1034 = vld [vmem:[%s644 + $0x38] sm:$0xf]
        %v1035 = vld [vmem:[%s644 + $0x3c] sm:$0xff]
        %v1036 = vld [vmem:[%s644 + $0x44] sm:$0xf]
        %v1037 = vld [vmem:[%s644 + $0x48] sm:$0xff]
        %v1038 = vld [vmem:[%s644 + $0x50] sm:$0xf]
        %v1039 = vld [vmem:[%s644 + $0x54] sm:$0xff]
        %v1040 = vld [vmem:[%s644 + $0x5c] sm:$0xf]
        %v1041 = vld [vmem:[%s644 + $0x60] sm:$0xff]
        %v1042 = vld [vmem:[%s644 + $0x68] sm:$0xf]
        %v1043 = vld [vmem:[%s644 + $0x6c] sm:$0xff]
        %v1044 = vld [vmem:[%s644 + $0x74] sm:$0xf]
        %v1045 = vld [vmem:[%s644 + $0x78] sm:$0xff]
        %v1046 = vld [vmem:[%s644 + $0x80] sm:$0xf]
        %v1047 = vld [vmem:[%s644 + $0x84] sm:$0xff]
        %v1048 = vld [vmem:[%s644 + $0x8c] sm:$0xf]
        %v1049 = vld [vmem:[%s644 + $0x90] sm:$0xff]
        %v1050 = vld [vmem:[%s644 + $0x98] sm:$0xf]
        %v1051 = vld [vmem:[%s644 + $0x9c] sm:$0xff]
        %v1052 = vld [vmem:[%s644 + $0xa4] sm:$0xf]
        %v1053 = vld [vmem:[%s644 + $0xa8] sm:$0xff]
        %v1054 = vld [vmem:[%s644 + $0xb0] sm:$0xf]
        %v1055 = vld [vmem:[%s644 + $0xb4] sm:$0xff]
        %v1056 = vld [vmem:[%s644 + $0xbc] sm:$0xf]
        %v1057 = vld [vmem:[%s768] sm:$0x7]
        %v1058 = vpack.c.bf16 %v1018, %v1017
        %v1059 = vpack.c.bf16 %v1020, %v1019
        %v1060 = vpack.c.bf16 %v1022, %v1021
        %v1061 = vpack.c.bf16 %v1024, %v1023
        %v1063 = vperm.slane %v1057, 0
        %v1064 = vperm.slane %v1057, 1
        %v1065 = vperm.slane %v1057, 2
        %v1101 = vunpack.c.l.b16 %v1025
        %v1102 = vunpack.c.h.b16 %v1025
        %v1103 = vunpack.c.l.b16 %v1026
        %v1104 = vunpack.c.l.b16 %v1027
        %v1105 = vunpack.c.h.b16 %v1027
        %v1106 = vunpack.c.l.b16 %v1028
        %v1107 = vunpack.c.l.b16 %v1029
        %v1108 = vunpack.c.h.b16 %v1029
        %v1109 = vunpack.c.l.b16 %v1030
        %v1110 = vunpack.c.l.b16 %v1031
        %v1111 = vunpack.c.h.b16 %v1031
        %v1112 = vunpack.c.l.b16 %v1032
        %v1113 = vunpack.c.l.b16 %v1033
        %v1114 = vunpack.c.h.b16 %v1033
        %v1115 = vunpack.c.l.b16 %v1034
        %v1116 = vunpack.c.l.b16 %v1035
        %v1117 = vunpack.c.h.b16 %v1035
        %v1118 = vunpack.c.l.b16 %v1036
        %v1119 = vunpack.c.l.b16 %v1037
        %v1120 = vunpack.c.h.b16 %v1037
        %v1121 = vunpack.c.l.b16 %v1038
        %v1122 = vunpack.c.l.b16 %v1039
        %v1123 = vunpack.c.h.b16 %v1039
        %v1124 = vunpack.c.l.b16 %v1040
        %v1125 = vunpack.c.l.b16 %v1041
        %v1126 = vunpack.c.h.b16 %v1041
        %v1127 = vunpack.c.l.b16 %v1042
        %v1128 = vunpack.c.l.b16 %v1043
        %v1129 = vunpack.c.h.b16 %v1043
        %v1130 = vunpack.c.l.b16 %v1044
        %v1131 = vunpack.c.l.b16 %v1045
        %v1132 = vunpack.c.h.b16 %v1045
        %v1133 = vunpack.c.l.b16 %v1046
        %v1134 = vunpack.c.l.b16 %v1047
        %v1135 = vunpack.c.h.b16 %v1047
        %v1136 = vunpack.c.l.b16 %v1048
        %v1137 = vunpack.c.l.b16 %v1049
        %v1138 = vunpack.c.h.b16 %v1049
        %v1139 = vunpack.c.l.b16 %v1050
        %v1140 = vunpack.c.l.b16 %v1051
        %v1141 = vunpack.c.h.b16 %v1051
        %v1142 = vunpack.c.l.b16 %v1052
        %v1143 = vunpack.c.l.b16 %v1053
        %v1144 = vunpack.c.h.b16 %v1053
        %v1145 = vunpack.c.l.b16 %v1054
        %v1146 = vunpack.c.l.b16 %v1055
        %v1147 = vunpack.c.h.b16 %v1055
        %v1148 = vunpack.c.l.b16 %v1056
        %v1149 = vpack.c.b16 %v1104, %v1101
        %v1150 = vpack.c.b16 %v1105, %v1102
        %v1151 = vpack.c.b16 %v1106, %v1103
        %v1152 = vpack.c.b16 %v1110, %v1107
        %v1153 = vpack.c.b16 %v1111, %v1108
        %v1154 = vpack.c.b16 %v1112, %v1109
        %v1155 = vpack.c.b16 %v1116, %v1113
        %v1156 = vpack.c.b16 %v1117, %v1114
        %v1157 = vpack.c.b16 %v1118, %v1115
        %v1158 = vpack.c.b16 %v1122, %v1119
        %v1159 = vpack.c.b16 %v1123, %v1120
        %v1160 = vpack.c.b16 %v1124, %v1121
        %v1161 = vpack.c.b16 %v1128, %v1125
        %v1162 = vpack.c.b16 %v1129, %v1126
        %v1163 = vpack.c.b16 %v1130, %v1127
        %v1164 = vpack.c.b16 %v1134, %v1131
        %v1165 = vpack.c.b16 %v1135, %v1132
        %v1166 = vpack.c.b16 %v1136, %v1133
        %v1167 = vpack.c.b16 %v1140, %v1137
        %v1168 = vpack.c.b16 %v1141, %v1138
        %v1169 = vpack.c.b16 %v1142, %v1139
        %v1170 = vpack.c.b16 %v1146, %v1143
        %v1171 = vpack.c.b16 %v1147, %v1144
        %v1172 = vpack.c.b16 %v1148, %v1145
        %1197 = vmatpush.bf16.msra.mxu0 %v1170
        %1198 = vmatpush.bf16.msra.mxu0 %v1167
        %1199 = vmatpush.bf16.msra.mxu0 %v1164
        %1200 = vmatpush.bf16.msra.mxu0 %v1161
        %1201 = vmatpush.bf16.msra.mxu0 %v1158
        %1202 = vmatpush.bf16.msra.mxu0 %v1155
        %1203 = vmatpush.bf16.msra.mxu0 %v1152
        %1204 = vmatpush.bf16.msra.mxu0 %v1149
        %1205 = vmatmul.bf16.gmra.mxu0 %v1058
        %v1206 = vpop.f32.mrf.mxu0
        %v1207 = vadd.f32 %v1063, %v1206
        %v1208 = vpop.f32.mrf.mxu0
        %v1209 = vadd.f32 %v1063, %v1208
        %1210 = vmatmul.bf16.gmra.mxu0 %v1059
        %v1211 = vpop.f32.mrf.mxu0
        %v1212 = vadd.f32 %v1063, %v1211
        %v1213 = vpop.f32.mrf.mxu0
        %v1214 = vadd.f32 %v1063, %v1213
        %1215 = vmatmul.bf16.gmra.mxu0 %v1060
        %v1216 = vpop.f32.mrf.mxu0
        %v1217 = vadd.f32 %v1063, %v1216
        %v1218 = vpop.f32.mrf.mxu0
        %v1219 = vadd.f32 %v1063, %v1218
        %1220 = vmatmul.bf16.gmra.mxu0 %v1061
        %v1221 = vpop.f32.mrf.mxu0
        %v1222 = vadd.f32 %v1063, %v1221
        %v1223 = vpop.f32.mrf.mxu0
        %v1224 = vadd.f32 %v1063, %v1223
        %1225 = vdwg.mxu0
        %1226 = vmatpush.bf16.msra.mxu0 %v1171
        %1227 = vmatpush.bf16.msra.mxu0 %v1168
        %1228 = vmatpush.bf16.msra.mxu0 %v1165
        %1229 = vmatpush.bf16.msra.mxu0 %v1162
        %1230 = vmatpush.bf16.msra.mxu0 %v1159
        %1231 = vmatpush.bf16.msra.mxu0 %v1156
        %1232 = vmatpush.bf16.msra.mxu0 %v1153
        %1233 = vmatpush.bf16.msra.mxu0 %v1150
        %1234 = vmatmul.bf16.gmra.mxu0 %v1058
        %v1235 = vpop.f32.mrf.mxu0
        %v1236 = vadd.f32 %v1064, %v1235
        %v1237 = vpop.f32.mrf.mxu0
        %v1238 = vadd.f32 %v1064, %v1237
        %1239 = vmatmul.bf16.gmra.mxu0 %v1059
        %v1240 = vpop.f32.mrf.mxu0
        %v1241 = vadd.f32 %v1064, %v1240
        %v1242 = vpop.f32.mrf.mxu0
        %v1243 = vadd.f32 %v1064, %v1242
        %1244 = vmatmul.bf16.gmra.mxu0 %v1060
        %v1245 = vpop.f32.mrf.mxu0
        %v1246 = vadd.f32 %v1064, %v1245
        %v1247 = vpop.f32.mrf.mxu0
        %v1248 = vadd.f32 %v1064, %v1247
        %1249 = vmatmul.bf16.gmra.mxu0 %v1061
        %v1250 = vpop.f32.mrf.mxu0
        %v1251 = vadd.f32 %v1064, %v1250
        %v1252 = vpop.f32.mrf.mxu0
        %v1253 = vadd.f32 %v1064, %v1252
        %1254 = vdwg.mxu0
        %1255 = vmatpush.bf16.msra.mxu0 %v1172
        %1256 = vmatpush.bf16.msra.mxu0 %v1169
        %1257 = vmatpush.bf16.msra.mxu0 %v1166
        %1258 = vmatpush.bf16.msra.mxu0 %v1163
        %1259 = vmatpush.bf16.msra.mxu0 %v1160
        %1260 = vmatpush.bf16.msra.mxu0 %v1157
        %1261 = vmatpush.bf16.msra.mxu0 %v1154
        %1262 = vmatpush.bf16.msra.mxu0 %v1151
        %1263 = vmatmul.bf16.gmra.mxu0 %v1058
        %v1264 = vpop.f32.mrf.mxu0
        %v1265 = vadd.f32 %v1065, %v1264
        %v1266 = vpop.f32.mrf.mxu0
        %v1267 = vadd.f32 %v1065, %v1266
        %1268 = vmatmul.bf16.gmra.mxu0 %v1059
        %v1269 = vpop.f32.mrf.mxu0
        %v1270 = vadd.f32 %v1065, %v1269
        %v1271 = vpop.f32.mrf.mxu0
        %v1272 = vadd.f32 %v1065, %v1271
        %1273 = vmatmul.bf16.gmra.mxu0 %v1060
        %v1274 = vpop.f32.mrf.mxu0
        %v1275 = vadd.f32 %v1065, %v1274
        %v1276 = vpop.f32.mrf.mxu0
        %v1277 = vadd.f32 %v1065, %v1276
        %1278 = vmatmul.bf16.gmra.mxu0 %v1061
        %v1279 = vpop.f32.mrf.mxu0
        %v1280 = vadd.f32 %v1065, %v1279
        %v1281 = vpop.f32.mrf.mxu0
        %v1282 = vadd.f32 %v1065, %v1281
        %1283 = vdwg.mxu0
        %v1284 = vpack.c.bf16 %v1236, %v1207
        %v1285 = vpack.c.bf16 %v1265, %v1265
        %v1286 = vpack.c.bf16 %v1238, %v1209
        %v1287 = vpack.c.bf16 %v1267, %v1267
        %v1288 = vpack.c.bf16 %v1241, %v1212
        %v1289 = vpack.c.bf16 %v1270, %v1270
        %v1290 = vpack.c.bf16 %v1243, %v1214
        %v1291 = vpack.c.bf16 %v1272, %v1272
        %v1292 = vpack.c.bf16 %v1246, %v1217
        %v1293 = vpack.c.bf16 %v1275, %v1275
        %v1294 = vpack.c.bf16 %v1248, %v1219
        %v1295 = vpack.c.bf16 %v1277, %v1277
        %v1296 = vpack.c.bf16 %v1251, %v1222
        %v1297 = vpack.c.bf16 %v1280, %v1280
        %v1298 = vpack.c.bf16 %v1253, %v1224
        %v1299 = vpack.c.bf16 %v1282, %v1282
        %1308 = vrot.lane.b32.xlu0 %v1284, 96
        %v1309 = vpop.permute.xlu0 %1308
        %1310 = vrot.lane.b32.xlu0 %v1286, 96
        %v1311 = vpop.permute.xlu0 %1310
        %1312 = vrot.lane.b32.xlu0 %v1288, 96
        %v1313 = vpop.permute.xlu0 %1312
        %1314 = vrot.lane.b32.xlu0 %v1290, 96
        %v1315 = vpop.permute.xlu0 %1314
        %1316 = vrot.lane.b32.xlu0 %v1292, 96
        %v1317 = vpop.permute.xlu0 %1316
        %1318 = vrot.lane.b32.xlu0 %v1294, 96
        %v1319 = vpop.permute.xlu0 %1318
        %1320 = vrot.lane.b32.xlu0 %v1296, 96
        %v1321 = vpop.permute.xlu0 %1320
        %1322 = vrot.lane.b32.xlu0 %v1298, 96
        %v1323 = vpop.permute.xlu0 %1322
        %1324 = vrot.lane.b32.xlu0 %v1284, 64
        %v1325 = vpop.permute.xlu0 %1324
        %1326 = vrot.lane.b32.xlu0 %v1286, 64
        %v1327 = vpop.permute.xlu0 %1326
        %1328 = vrot.lane.b32.xlu0 %v1288, 64
        %v1329 = vpop.permute.xlu0 %1328
        %1330 = vrot.lane.b32.xlu0 %v1290, 64
        %v1331 = vpop.permute.xlu0 %1330
        %1332 = vrot.lane.b32.xlu0 %v1292, 64
        %v1333 = vpop.permute.xlu0 %1332
        %1334 = vrot.lane.b32.xlu0 %v1294, 64
        %v1335 = vpop.permute.xlu0 %1334
        %1336 = vrot.lane.b32.xlu0 %v1296, 64
        %v1337 = vpop.permute.xlu0 %1336
        %1338 = vrot.lane.b32.xlu0 %v1298, 64
        %v1339 = vpop.permute.xlu0 %1338
        %1340 = vrot.lane.b32.xlu0 %v1284, 32
        %v1341 = vpop.permute.xlu0 %1340
        %1342 = vrot.lane.b32.xlu0 %v1286, 32
        %v1343 = vpop.permute.xlu0 %1342
        %1344 = vrot.lane.b32.xlu0 %v1288, 32
        %v1345 = vpop.permute.xlu0 %1344
        %1346 = vrot.lane.b32.xlu0 %v1290, 32
        %v1347 = vpop.permute.xlu0 %1346
        %1348 = vrot.lane.b32.xlu0 %v1292, 32
        %v1349 = vpop.permute.xlu0 %1348
        %1350 = vrot.lane.b32.xlu0 %v1294, 32
        %v1351 = vpop.permute.xlu0 %1350
        %1352 = vrot.lane.b32.xlu0 %v1296, 32
        %v1353 = vpop.permute.xlu0 %1352
        %1354 = vrot.lane.b32.xlu0 %v1298, 32
        %v1355 = vpop.permute.xlu0 %1354
        %v1356 = vrot.slane %v1284, 4
        %v1357 = vrot.slane %v1286, 4
        %v1358 = vrot.slane %v1288, 4
        %v1359 = vrot.slane %v1290, 4
        %v1360 = vrot.slane %v1292, 4
        %v1361 = vrot.slane %v1294, 4
        %v1362 = vrot.slane %v1296, 4
        %v1363 = vrot.slane %v1298, 4
        %v1364 = vrot.slane %v1309, 4
        %v1365 = vrot.slane %v1311, 4
        %v1366 = vrot.slane %v1313, 4
        %v1367 = vrot.slane %v1315, 4
        %v1368 = vrot.slane %v1317, 4
        %v1369 = vrot.slane %v1319, 4
        %v1370 = vrot.slane %v1321, 4
        %v1371 = vrot.slane %v1323, 4
        %v1372 = vrot.slane %v1325, 4
        %v1373 = vrot.slane %v1327, 4
        %v1374 = vrot.slane %v1329, 4
        %v1375 = vrot.slane %v1331, 4
        %v1376 = vrot.slane %v1333, 4
        %v1377 = vrot.slane %v1335, 4
        %v1378 = vrot.slane %v1337, 4
        %v1379 = vrot.slane %v1339, 4
        %v1380 = vrot.slane %v1341, 4
        %v1381 = vrot.slane %v1343, 4
        %v1382 = vrot.slane %v1345, 4
        %v1383 = vrot.slane %v1347, 4
        %v1384 = vrot.slane %v1349, 4
        %v1385 = vrot.slane %v1351, 4
        %v1386 = vrot.slane %v1353, 4
        %v1387 = vrot.slane %v1355, 4
        %1396 = vrot.lane.b32.xlu0 %v1285, 96
        %v1397 = vpop.permute.xlu0 %1396
        %1398 = vrot.lane.b32.xlu0 %v1287, 96
        %v1399 = vpop.permute.xlu0 %1398
        %1400 = vrot.lane.b32.xlu0 %v1289, 96
        %v1401 = vpop.permute.xlu0 %1400
        %1402 = vrot.lane.b32.xlu0 %v1291, 96
        %v1403 = vpop.permute.xlu0 %1402
        %1404 = vrot.lane.b32.xlu0 %v1293, 96
        %v1405 = vpop.permute.xlu0 %1404
        %1406 = vrot.lane.b32.xlu0 %v1295, 96
        %v1407 = vpop.permute.xlu0 %1406
        %1408 = vrot.lane.b32.xlu0 %v1297, 96
        %v1409 = vpop.permute.xlu0 %1408
        %1410 = vrot.lane.b32.xlu0 %v1299, 96
        %v1411 = vpop.permute.xlu0 %1410
        %1412 = vrot.lane.b32.xlu0 %v1285, 64
        %v1413 = vpop.permute.xlu0 %1412
        %1414 = vrot.lane.b32.xlu0 %v1287, 64
        %v1415 = vpop.permute.xlu0 %1414
        %1416 = vrot.lane.b32.xlu0 %v1289, 64
        %v1417 = vpop.permute.xlu0 %1416
        %1418 = vrot.lane.b32.xlu0 %v1291, 64
        %v1419 = vpop.permute.xlu0 %1418
        %1420 = vrot.lane.b32.xlu0 %v1293, 64
        %v1421 = vpop.permute.xlu0 %1420
        %1422 = vrot.lane.b32.xlu0 %v1295, 64
        %v1423 = vpop.permute.xlu0 %1422
        %1424 = vrot.lane.b32.xlu0 %v1297, 64
        %v1425 = vpop.permute.xlu0 %1424
        %1426 = vrot.lane.b32.xlu0 %v1299, 64
        %v1427 = vpop.permute.xlu0 %1426
        %1428 = vrot.lane.b32.xlu0 %v1285, 32
        %v1429 = vpop.permute.xlu0 %1428
        %1430 = vrot.lane.b32.xlu0 %v1287, 32
        %v1431 = vpop.permute.xlu0 %1430
        %1432 = vrot.lane.b32.xlu0 %v1289, 32
        %v1433 = vpop.permute.xlu0 %1432
        %1434 = vrot.lane.b32.xlu0 %v1291, 32
        %v1435 = vpop.permute.xlu0 %1434
        %1436 = vrot.lane.b32.xlu0 %v1293, 32
        %v1437 = vpop.permute.xlu0 %1436
        %1438 = vrot.lane.b32.xlu0 %v1295, 32
        %v1439 = vpop.permute.xlu0 %1438
        %1440 = vrot.lane.b32.xlu0 %v1297, 32
        %v1441 = vpop.permute.xlu0 %1440
        %1442 = vrot.lane.b32.xlu0 %v1299, 32
        %v1443 = vpop.permute.xlu0 %1442
        %v1444 = vunpack.c.l.b16 %v1284
        %v1445 = vunpack.c.l.b16 %v1286
        %v1446 = vpack.c.b16 %v1445, %v1444
        %v1447 = vunpack.c.l.b16 %v1356
        %v1448 = vunpack.c.l.b16 %v1357
        %v1449 = vpack.c.b16 %v1448, %v1447
        %vm1450 = vcmask 261120
        %v1452 = vsel %vm1450, %v1446, 0
        %v1455 = vsel %vm1450, %v1449, 0
        %1457 = vmatpush.bf16.xpose.msra.mxu0 0
        %1458 = vmatpush.bf16.xpose.msra.mxu0 0
        %1459 = vmatpush.bf16.xpose.msra.mxu0 0
        %1460 = vmatpush.bf16.xpose.msra.mxu0 0
        %1461 = vmatpush.bf16.xpose.msra.mxu0 0
        %1462 = vmatpush.bf16.xpose.msra.mxu0 0
        %1463 = vmatpush.bf16.xpose.msra.mxu0 0
        %1464 = vmatpush.bf16.xpose.msra.mxu0 %v1455
        %1465 = vmatmul.bf16.gmra.mxu0 %v1452
        %v1466 = vpop.f32.mrf.mxu0
        %v1467 = vadd.f32 0.0, %v1466
        %v1468 = vpop.f32.mrf.mxu0
        %v1469 = vadd.f32 0.0, %v1468
        %1470 = vdwg.mxu0
        %v1471 = vunpack.c.l.b16 %v1309
        %v1472 = vunpack.c.l.b16 %v1311
        %v1473 = vpack.c.b16 %v1472, %v1471
        %v1474 = vunpack.c.l.b16 %v1364
        %v1475 = vunpack.c.l.b16 %v1365
        %v1476 = vpack.c.b16 %v1475, %v1474
        %v1478 = vsel %vm1450, %v1473, 0
        %v1481 = vsel %vm1450, %v1476, 0
        %1483 = vmatpush.bf16.xpose.msra.mxu0 0
        %1484 = vmatpush.bf16.xpose.msra.mxu0 0
        %1485 = vmatpush.bf16.xpose.msra.mxu0 0
        %1486 = vmatpush.bf16.xpose.msra.mxu0 0
        %1487 = vmatpush.bf16.xpose.msra.mxu0 0
        %1488 = vmatpush.bf16.xpose.msra.mxu0 0
        %1489 = vmatpush.bf16.xpose.msra.mxu0 0
        %1490 = vmatpush.bf16.xpose.msra.mxu0 %v1481
        %1491 = vmatmul.bf16.gmra.mxu0 %v1478
        %v1492 = vpop.f32.mrf.mxu0
        %v1493 = vadd.f32 0.0, %v1492
        %v1494 = vpop.f32.mrf.mxu0
        %v1495 = vadd.f32 0.0, %v1494
        %1496 = vdwg.mxu0
        %v1497 = vunpack.c.l.b16 %v1325
        %v1498 = vunpack.c.l.b16 %v1327
        %v1499 = vpack.c.b16 %v1498, %v1497
        %v1500 = vunpack.c.l.b16 %v1372
        %v1501 = vunpack.c.l.b16 %v1373
        %v1502 = vpack.c.b16 %v1501, %v1500
        %v1504 = vsel %vm1450, %v1499, 0
        %v1507 = vsel %vm1450, %v1502, 0
        %1509 = vmatpush.bf16.xpose.msra.mxu0 0
        %1510 = vmatpush.bf16.xpose.msra.mxu0 0
        %1511 = vmatpush.bf16.xpose.msra.mxu0 0
        %1512 = vmatpush.bf16.xpose.msra.mxu0 0
        %1513 = vmatpush.bf16.xpose.msra.mxu0 0
        %1514 = vmatpush.bf16.xpose.msra.mxu0 0
        %1515 = vmatpush.bf16.xpose.msra.mxu0 0
        %1516 = vmatpush.bf16.xpose.msra.mxu0 %v1507
        %1517 = vmatmul.bf16.gmra.mxu0 %v1504
        %v1518 = vpop.f32.mrf.mxu0
        %v1519 = vadd.f32 0.0, %v1518
        %v1520 = vpop.f32.mrf.mxu0
        %v1521 = vadd.f32 0.0, %v1520
        %1522 = vdwg.mxu0
        %v1523 = vunpack.c.l.b16 %v1341
        %v1524 = vunpack.c.l.b16 %v1343
        %v1525 = vpack.c.b16 %v1524, %v1523
        %v1526 = vunpack.c.l.b16 %v1380
        %v1527 = vunpack.c.l.b16 %v1381
        %v1528 = vpack.c.b16 %v1527, %v1526
        %v1530 = vsel %vm1450, %v1525, 0
        %v1533 = vsel %vm1450, %v1528, 0
        %1535 = vmatpush.bf16.xpose.msra.mxu0 0
        %1536 = vmatpush.bf16.xpose.msra.mxu0 0
        %1537 = vmatpush.bf16.xpose.msra.mxu0 0
        %1538 = vmatpush.bf16.xpose.msra.mxu0 0
        %1539 = vmatpush.bf16.xpose.msra.mxu0 0
        %1540 = vmatpush.bf16.xpose.msra.mxu0 0
        %1541 = vmatpush.bf16.xpose.msra.mxu0 0
        %1542 = vmatpush.bf16.xpose.msra.mxu0 %v1533
        %1543 = vmatmul.bf16.gmra.mxu0 %v1530
        %v1544 = vpop.f32.mrf.mxu0
        %v1545 = vadd.f32 0.0, %v1544
        %v1546 = vpop.f32.mrf.mxu0
        %v1547 = vadd.f32 0.0, %v1546
        %1548 = vdwg.mxu0
        %v1549 = vmul.f32 %v1467, 0.17677669
        %v1550 = vmul.f32 %v1469, 0.17677669
        %v1551 = vmul.f32 %v1493, 0.17677669
        %v1552 = vmul.f32 %v1495, 0.17677669
        %v1553 = vmul.f32 %v1519, 0.17677669
        %v1554 = vmul.f32 %v1521, 0.17677669
        %v1555 = vmul.f32 %v1545, 0.17677669
        %v1556 = vmul.f32 %v1547, 0.17677669
        %v1557 = vadd.f32 %v1549, %v824
        %v1558 = vadd.f32 %v1550, %v825
        %v1559 = vadd.f32 %v1551, %v824
        %v1560 = vadd.f32 %v1552, %v825
        %v1561 = vadd.f32 %v1553, %v824
        %v1562 = vadd.f32 %v1554, %v825
        %v1563 = vadd.f32 %v1555, %v824
        %v1564 = vadd.f32 %v1556, %v825
        %vm1565 = vcmask 130048
        %v1566 = vsel %vm1565, %v1557, -inf
        %1567 = vmax.xlane.f32.xlu0 %v1566
        %v1568 = vpop.xlane.xlu0 %1567
        %v1569 = vsel %vm1565, %v1558, -inf
        %1570 = vmax.xlane.f32.xlu0 %v1569
        %v1571 = vpop.xlane.xlu0 %1570
        %v1572 = vsel %vm1565, %v1559, -inf
        %1573 = vmax.xlane.f32.xlu0 %v1572
        %v1574 = vpop.xlane.xlu0 %1573
        %v1575 = vsel %vm1565, %v1560, -inf
        %1576 = vmax.xlane.f32.xlu0 %v1575
        %v1577 = vpop.xlane.xlu0 %1576
        %v1578 = vsel %vm1565, %v1561, -inf
        %1579 = vmax.xlane.f32.xlu0 %v1578
        %v1580 = vpop.xlane.xlu0 %1579
        %v1581 = vsel %vm1565, %v1562, -inf
        %1582 = vmax.xlane.f32.xlu0 %v1581
        %v1583 = vpop.xlane.xlu0 %1582
        %v1584 = vsel %vm1565, %v1563, -inf
        %1585 = vmax.xlane.f32.xlu0 %v1584
        %v1586 = vpop.xlane.xlu0 %1585
        %v1587 = vsel %vm1565, %v1564, -inf
        %1588 = vmax.xlane.f32.xlu0 %v1587
        %v1589 = vpop.xlane.xlu0 %1588
        %v1590 = vsub.f32 %v1557, %v1568
        %v1591 = vsub.f32 %v1558, %v1571
        %v1592 = vsub.f32 %v1559, %v1574
        %v1593 = vsub.f32 %v1560, %v1577
        %v1594 = vsub.f32 %v1561, %v1580
        %v1595 = vsub.f32 %v1562, %v1583
        %v1596 = vsub.f32 %v1563, %v1586
        %v1597 = vsub.f32 %v1564, %v1589
        %v1598 = vmul.f32 %v1590, 1.442695
        %v1599 = vpow.pop %v1598
        %v1600 = vmul.f32 %v1591, 1.442695
        %v1601 = vpow.pop %v1600
        %v1602 = vmul.f32 %v1592, 1.442695
        %v1603 = vpow.pop %v1602
        %v1604 = vmul.f32 %v1593, 1.442695
        %v1605 = vpow.pop %v1604
        %v1606 = vmul.f32 %v1594, 1.442695
        %v1607 = vpow.pop %v1606
        %v1608 = vmul.f32 %v1595, 1.442695
        %v1609 = vpow.pop %v1608
        %v1610 = vmul.f32 %v1596, 1.442695
        %v1611 = vpow.pop %v1610
        %v1612 = vmul.f32 %v1597, 1.442695
        %v1613 = vpow.pop %v1612
        %v1614 = vsel %vm1565, %v1599, 0.0
        %1615 = vadd.xlane.f32.xlu0 %v1614
        %v1616 = vpop.xlane.xlu0 %1615
        %v1617 = vsel %vm1565, %v1601, 0.0
        %1618 = vadd.xlane.f32.xlu0 %v1617
        %v1619 = vpop.xlane.xlu0 %1618
        %v1620 = vsel %vm1565, %v1603, 0.0
        %1621 = vadd.xlane.f32.xlu0 %v1620
        %v1622 = vpop.xlane.xlu0 %1621
        %v1623 = vsel %vm1565, %v1605, 0.0
        %1624 = vadd.xlane.f32.xlu0 %v1623
        %v1625 = vpop.xlane.xlu0 %1624
        %v1626 = vsel %vm1565, %v1607, 0.0
        %1627 = vadd.xlane.f32.xlu0 %v1626
        %v1628 = vpop.xlane.xlu0 %1627
        %v1629 = vsel %vm1565, %v1609, 0.0
        %1630 = vadd.xlane.f32.xlu0 %v1629
        %v1631 = vpop.xlane.xlu0 %1630
        %v1632 = vsel %vm1565, %v1611, 0.0
        %1633 = vadd.xlane.f32.xlu0 %v1632
        %v1634 = vpop.xlane.xlu0 %1633
        %v1635 = vsel %vm1565, %v1613, 0.0
        %1636 = vadd.xlane.f32.xlu0 %v1635
        %v1637 = vpop.xlane.xlu0 %1636
        %v1638 = vrcp.pop %v1616
        %v1639 = vrcp.pop %v1619
        %v1640 = vrcp.pop %v1622
        %v1641 = vrcp.pop %v1625
        %v1642 = vrcp.pop %v1628
        %v1643 = vrcp.pop %v1631
        %v1644 = vrcp.pop %v1634
        %v1645 = vrcp.pop %v1637
        %v1646 = vmul.f32 %v1599, %v1638
        %v1647 = vmul.f32 %v1601, %v1639
        %v1648 = vmul.f32 %v1603, %v1640
        %v1649 = vmul.f32 %v1605, %v1641
        %v1650 = vmul.f32 %v1607, %v1642
        %v1651 = vmul.f32 %v1609, %v1643
        %v1652 = vmul.f32 %v1611, %v1644
        %v1653 = vmul.f32 %v1613, %v1645
        %v1654 = vpack.c.bf16 %v1646, %v1646
        %v1655 = vpack.c.bf16 %v1647, %v1647
        %v1656 = vpack.c.bf16 %v1648, %v1648
        %v1657 = vpack.c.bf16 %v1649, %v1649
        %v1658 = vpack.c.bf16 %v1650, %v1650
        %v1659 = vpack.c.bf16 %v1651, %v1651
        %v1660 = vpack.c.bf16 %v1652, %v1652
        %v1661 = vpack.c.bf16 %v1653, %v1653
        %v1664 = vunpack.c.l.b16 %v1654
        %v1665 = vunpack.c.l.b16 %v1655
        %v1666 = vpack.c.b16 %v1665, %v1664
        %v1667 = vunpack.c.l.b16 %v1285
        %v1668 = vunpack.c.l.b16 %v1287
        %v1669 = vpack.c.b16 %v1668, %v1667
        %v1672 = vsel %vm1565, %v1666, 0
        %1674 = vmatpush.bf16.msra.mxu0 0
        %1675 = vmatpush.bf16.msra.mxu0 0
        %1676 = vmatpush.bf16.msra.mxu0 0
        %1677 = vmatpush.bf16.msra.mxu0 0
        %1678 = vmatpush.bf16.msra.mxu0 0
        %1679 = vmatpush.bf16.msra.mxu0 0
        %1680 = vmatpush.bf16.msra.mxu0 0
        %1681 = vmatpush.bf16.msra.mxu0 %v1669
        %1682 = vmatmul.bf16.gmra.mxu0 %v1672
        %v1683 = vpop.f32.mrf.mxu0
        %v1684 = vadd.f32 0.0, %v1683
        %v1685 = vpop.f32.mrf.mxu0
        %v1686 = vadd.f32 0.0, %v1685
        %1687 = vdwg.mxu0
        %v1690 = vunpack.c.l.b16 %v1656
        %v1691 = vunpack.c.l.b16 %v1657
        %v1692 = vpack.c.b16 %v1691, %v1690
        %v1693 = vunpack.c.l.b16 %v1397
        %v1694 = vunpack.c.l.b16 %v1399
        %v1695 = vpack.c.b16 %v1694, %v1693
        %v1698 = vsel %vm1565, %v1692, 0
        %1700 = vmatpush.bf16.msra.mxu0 0
        %1701 = vmatpush.bf16.msra.mxu0 0
        %1702 = vmatpush.bf16.msra.mxu0 0
        %1703 = vmatpush.bf16.msra.mxu0 0
        %1704 = vmatpush.bf16.msra.mxu0 0
        %1705 = vmatpush.bf16.msra.mxu0 0
        %1706 = vmatpush.bf16.msra.mxu0 0
        %1707 = vmatpush.bf16.msra.mxu0 %v1695
        %1708 = vmatmul.bf16.gmra.mxu0 %v1698
        %v1709 = vpop.f32.mrf.mxu0
        %v1710 = vadd.f32 0.0, %v1709
        %v1711 = vpop.f32.mrf.mxu0
        %v1712 = vadd.f32 0.0, %v1711
        %1713 = vdwg.mxu0
        %v1716 = vunpack.c.l.b16 %v1658
        %v1717 = vunpack.c.l.b16 %v1659
        %v1718 = vpack.c.b16 %v1717, %v1716
        %v1719 = vunpack.c.l.b16 %v1413
        %v1720 = vunpack.c.l.b16 %v1415
        %v1721 = vpack.c.b16 %v1720, %v1719
        %v1724 = vsel %vm1565, %v1718, 0
        %1726 = vmatpush.bf16.msra.mxu0 0
        %1727 = vmatpush.bf16.msra.mxu0 0
        %1728 = vmatpush.bf16.msra.mxu0 0
        %1729 = vmatpush.bf16.msra.mxu0 0
        %1730 = vmatpush.bf16.msra.mxu0 0
        %1731 = vmatpush.bf16.msra.mxu0 0
        %1732 = vmatpush.bf16.msra.mxu0 0
        %1733 = vmatpush.bf16.msra.mxu0 %v1721
        %1734 = vmatmul.bf16.gmra.mxu0 %v1724
        %v1735 = vpop.f32.mrf.mxu0
        %v1736 = vadd.f32 0.0, %v1735
        %v1737 = vpop.f32.mrf.mxu0
        %v1738 = vadd.f32 0.0, %v1737
        %1739 = vdwg.mxu0
        %v1742 = vunpack.c.l.b16 %v1660
        %v1743 = vunpack.c.l.b16 %v1661
        %v1744 = vpack.c.b16 %v1743, %v1742
        %v1745 = vunpack.c.l.b16 %v1429
        %v1746 = vunpack.c.l.b16 %v1431
        %v1747 = vpack.c.b16 %v1746, %v1745
        %v1750 = vsel %vm1565, %v1744, 0
        %1752 = vmatpush.bf16.msra.mxu0 0
        %1753 = vmatpush.bf16.msra.mxu0 0
        %1754 = vmatpush.bf16.msra.mxu0 0
        %1755 = vmatpush.bf16.msra.mxu0 0
        %1756 = vmatpush.bf16.msra.mxu0 0
        %1757 = vmatpush.bf16.msra.mxu0 0
        %1758 = vmatpush.bf16.msra.mxu0 0
        %1759 = vmatpush.bf16.msra.mxu0 %v1747
        %1760 = vmatmul.bf16.gmra.mxu0 %v1750
        %v1761 = vpop.f32.mrf.mxu0
        %v1762 = vadd.f32 0.0, %v1761
        %v1763 = vpop.f32.mrf.mxu0
        %v1764 = vadd.f32 0.0, %v1763
        %1765 = vdwg.mxu0
        %1768 = vrot.lane.b32.xlu0 %v1710, 32
        %v1769 = vpop.permute.xlu0 %1768
        %1770 = vrot.lane.b32.xlu0 %v1712, 32
        %v1771 = vpop.permute.xlu0 %1770
        %1776 = vrot.lane.b32.xlu0 %v1736, 64
        %v1777 = vpop.permute.xlu0 %1776
        %1778 = vrot.lane.b32.xlu0 %v1738, 64
        %v1779 = vpop.permute.xlu0 %1778
        %1784 = vrot.lane.b32.xlu0 %v1762, 96
        %v1785 = vpop.permute.xlu0 %1784
        %1786 = vrot.lane.b32.xlu0 %v1764, 96
        %v1787 = vpop.permute.xlu0 %1786
        %v1790 = vsel %vm1450, %v1684, %v1769
        %v1791 = vsel %vm1450, %v1686, %v1771
        %vm1792 = vcmask 523264
        %v1793 = vsel %vm1792, %v1790, %v1777
        %v1794 = vsel %vm1792, %v1791, %v1779
        %vm1795 = vcmask 785408
        %v1796 = vsel %vm1795, %v1793, %v1785
        %v1797 = vsel %vm1795, %v1794, %v1787
        %v1798 = vunpack.c.l.b16 %v1288
        %v1799 = vunpack.c.l.b16 %v1290
        %v1800 = vpack.c.b16 %v1799, %v1798
        %v1801 = vunpack.c.l.b16 %v1358
        %v1802 = vunpack.c.l.b16 %v1359
        %v1803 = vpack.c.b16 %v1802, %v1801
        %v1805 = vsel %vm1450, %v1800, 0
        %v1808 = vsel %vm1450, %v1803, 0
        %1810 = vmatpush.bf16.xpose.msra.mxu0 0
        %1811 = vmatpush.bf16.xpose.msra.mxu0 0
        %1812 = vmatpush.bf16.xpose.msra.mxu0 0
        %1813 = vmatpush.bf16.xpose.msra.mxu0 0
        %1814 = vmatpush.bf16.xpose.msra.mxu0 0
        %1815 = vmatpush.bf16.xpose.msra.mxu0 0
        %1816 = vmatpush.bf16.xpose.msra.mxu0 0
        %1817 = vmatpush.bf16.xpose.msra.mxu0 %v1808
        %1818 = vmatmul.bf16.gmra.mxu0 %v1805
        %v1819 = vpop.f32.mrf.mxu0
        %v1820 = vadd.f32 0.0, %v1819
        %v1821 = vpop.f32.mrf.mxu0
        %v1822 = vadd.f32 0.0, %v1821
        %1823 = vdwg.mxu0
        %v1824 = vunpack.c.l.b16 %v1313
        %v1825 = vunpack.c.l.b16 %v1315
        %v1826 = vpack.c.b16 %v1825, %v1824
        %v1827 = vunpack.c.l.b16 %v1366
        %v1828 = vunpack.c.l.b16 %v1367
        %v1829 = vpack.c.b16 %v1828, %v1827
        %v1831 = vsel %vm1450, %v1826, 0
        %v1834 = vsel %vm1450, %v1829, 0
        %1836 = vmatpush.bf16.xpose.msra.mxu0 0
        %1837 = vmatpush.bf16.xpose.msra.mxu0 0
        %1838 = vmatpush.bf16.xpose.msra.mxu0 0
        %1839 = vmatpush.bf16.xpose.msra.mxu0 0
        %1840 = vmatpush.bf16.xpose.msra.mxu0 0
        %1841 = vmatpush.bf16.xpose.msra.mxu0 0
        %1842 = vmatpush.bf16.xpose.msra.mxu0 0
        %1843 = vmatpush.bf16.xpose.msra.mxu0 %v1834
        %1844 = vmatmul.bf16.gmra.mxu0 %v1831
        %v1845 = vpop.f32.mrf.mxu0
        %v1846 = vadd.f32 0.0, %v1845
        %v1847 = vpop.f32.mrf.mxu0
        %v1848 = vadd.f32 0.0, %v1847
        %1849 = vdwg.mxu0
        %v1850 = vunpack.c.l.b16 %v1329
        %v1851 = vunpack.c.l.b16 %v1331
        %v1852 = vpack.c.b16 %v1851, %v1850
        %v1853 = vunpack.c.l.b16 %v1374
        %v1854 = vunpack.c.l.b16 %v1375
        %v1855 = vpack.c.b16 %v1854, %v1853
        %v1857 = vsel %vm1450, %v1852, 0
        %v1860 = vsel %vm1450, %v1855, 0
        %1862 = vmatpush.bf16.xpose.msra.mxu0 0
        %1863 = vmatpush.bf16.xpose.msra.mxu0 0
        %1864 = vmatpush.bf16.xpose.msra.mxu0 0
        %1865 = vmatpush.bf16.xpose.msra.mxu0 0
        %1866 = vmatpush.bf16.xpose.msra.mxu0 0
        %1867 = vmatpush.bf16.xpose.msra.mxu0 0
        %1868 = vmatpush.bf16.xpose.msra.mxu0 0
        %1869 = vmatpush.bf16.xpose.msra.mxu0 %v1860
        %1870 = vmatmul.bf16.gmra.mxu0 %v1857
        %v1871 = vpop.f32.mrf.mxu0
        %v1872 = vadd.f32 0.0, %v1871
        %v1873 = vpop.f32.mrf.mxu0
        %v1874 = vadd.f32 0.0, %v1873
        %1875 = vdwg.mxu0
        %v1876 = vunpack.c.l.b16 %v1345
        %v1877 = vunpack.c.l.b16 %v1347
        %v1878 = vpack.c.b16 %v1877, %v1876
        %v1879 = vunpack.c.l.b16 %v1382
        %v1880 = vunpack.c.l.b16 %v1383
        %v1881 = vpack.c.b16 %v1880, %v1879
        %v1883 = vsel %vm1450, %v1878, 0
        %v1886 = vsel %vm1450, %v1881, 0
        %1888 = vmatpush.bf16.xpose.msra.mxu0 0
        %1889 = vmatpush.bf16.xpose.msra.mxu0 0
        %1890 = vmatpush.bf16.xpose.msra.mxu0 0
        %1891 = vmatpush.bf16.xpose.msra.mxu0 0
        %1892 = vmatpush.bf16.xpose.msra.mxu0 0
        %1893 = vmatpush.bf16.xpose.msra.mxu0 0
        %1894 = vmatpush.bf16.xpose.msra.mxu0 0
        %1895 = vmatpush.bf16.xpose.msra.mxu0 %v1886
        %1896 = vmatmul.bf16.gmra.mxu0 %v1883
        %v1897 = vpop.f32.mrf.mxu0
        %v1898 = vadd.f32 0.0, %v1897
        %v1899 = vpop.f32.mrf.mxu0
        %v1900 = vadd.f32 0.0, %v1899
        %1901 = vdwg.mxu0
        %v1902 = vmul.f32 %v1820, 0.17677669
        %v1903 = vmul.f32 %v1822, 0.17677669
        %v1904 = vmul.f32 %v1846, 0.17677669
        %v1905 = vmul.f32 %v1848, 0.17677669
        %v1906 = vmul.f32 %v1872, 0.17677669
        %v1907 = vmul.f32 %v1874, 0.17677669
        %v1908 = vmul.f32 %v1898, 0.17677669
        %v1909 = vmul.f32 %v1900, 0.17677669
        %v1910 = vadd.f32 %v1902, %v824
        %v1911 = vadd.f32 %v1903, %v825
        %v1912 = vadd.f32 %v1904, %v824
        %v1913 = vadd.f32 %v1905, %v825
        %v1914 = vadd.f32 %v1906, %v824
        %v1915 = vadd.f32 %v1907, %v825
        %v1916 = vadd.f32 %v1908, %v824
        %v1917 = vadd.f32 %v1909, %v825
        %v1918 = vsel %vm1565, %v1910, -inf
        %1919 = vmax.xlane.f32.xlu0 %v1918
        %v1920 = vpop.xlane.xlu0 %1919
        %v1921 = vsel %vm1565, %v1911, -inf
        %1922 = vmax.xlane.f32.xlu0 %v1921
        %v1923 = vpop.xlane.xlu0 %1922
        %v1924 = vsel %vm1565, %v1912, -inf
        %1925 = vmax.xlane.f32.xlu0 %v1924
        %v1926 = vpop.xlane.xlu0 %1925
        %v1927 = vsel %vm1565, %v1913, -inf
        %1928 = vmax.xlane.f32.xlu0 %v1927
        %v1929 = vpop.xlane.xlu0 %1928
        %v1930 = vsel %vm1565, %v1914, -inf
        %1931 = vmax.xlane.f32.xlu0 %v1930
        %v1932 = vpop.xlane.xlu0 %1931
        %v1933 = vsel %vm1565, %v1915, -inf
        %1934 = vmax.xlane.f32.xlu0 %v1933
        %v1935 = vpop.xlane.xlu0 %1934
        %v1936 = vsel %vm1565, %v1916, -inf
        %1937 = vmax.xlane.f32.xlu0 %v1936
        %v1938 = vpop.xlane.xlu0 %1937
        %v1939 = vsel %vm1565, %v1917, -inf
        %1940 = vmax.xlane.f32.xlu0 %v1939
        %v1941 = vpop.xlane.xlu0 %1940
        %v1942 = vsub.f32 %v1910, %v1920
        %v1943 = vsub.f32 %v1911, %v1923
        %v1944 = vsub.f32 %v1912, %v1926
        %v1945 = vsub.f32 %v1913, %v1929
        %v1946 = vsub.f32 %v1914, %v1932
        %v1947 = vsub.f32 %v1915, %v1935
        %v1948 = vsub.f32 %v1916, %v1938
        %v1949 = vsub.f32 %v1917, %v1941
        %v1950 = vmul.f32 %v1942, 1.442695
        %v1951 = vpow.pop %v1950
        %v1952 = vmul.f32 %v1943, 1.442695
        %v1953 = vpow.pop %v1952
        %v1954 = vmul.f32 %v1944, 1.442695
        %v1955 = vpow.pop %v1954
        %v1956 = vmul.f32 %v1945, 1.442695
        %v1957 = vpow.pop %v1956
        %v1958 = vmul.f32 %v1946, 1.442695
        %v1959 = vpow.pop %v1958
        %v1960 = vmul.f32 %v1947, 1.442695
        %v1961 = vpow.pop %v1960
        %v1962 = vmul.f32 %v1948, 1.442695
        %v1963 = vpow.pop %v1962
        %v1964 = vmul.f32 %v1949, 1.442695
        %v1965 = vpow.pop %v1964
        %v1966 = vsel %vm1565, %v1951, 0.0
        %1967 = vadd.xlane.f32.xlu0 %v1966
        %v1968 = vpop.xlane.xlu0 %1967
        %v1969 = vsel %vm1565, %v1953, 0.0
        %1970 = vadd.xlane.f32.xlu0 %v1969
        %v1971 = vpop.xlane.xlu0 %1970
        %v1972 = vsel %vm1565, %v1955, 0.0
        %1973 = vadd.xlane.f32.xlu0 %v1972
        %v1974 = vpop.xlane.xlu0 %1973
        %v1975 = vsel %vm1565, %v1957, 0.0
        %1976 = vadd.xlane.f32.xlu0 %v1975
        %v1977 = vpop.xlane.xlu0 %1976
        %v1978 = vsel %vm1565, %v1959, 0.0
        %1979 = vadd.xlane.f32.xlu0 %v1978
        %v1980 = vpop.xlane.xlu0 %1979
        %v1981 = vsel %vm1565, %v1961, 0.0
        %1982 = vadd.xlane.f32.xlu0 %v1981
        %v1983 = vpop.xlane.xlu0 %1982
        %v1984 = vsel %vm1565, %v1963, 0.0
        %1985 = vadd.xlane.f32.xlu0 %v1984
        %v1986 = vpop.xlane.xlu0 %1985
        %v1987 = vsel %vm1565, %v1965, 0.0
        %1988 = vadd.xlane.f32.xlu0 %v1987
        %v1989 = vpop.xlane.xlu0 %1988
        %v1990 = vrcp.pop %v1968
        %v1991 = vrcp.pop %v1971
        %v1992 = vrcp.pop %v1974
        %v1993 = vrcp.pop %v1977
        %v1994 = vrcp.pop %v1980
        %v1995 = vrcp.pop %v1983
        %v1996 = vrcp.pop %v1986
        %v1997 = vrcp.pop %v1989
        %v1998 = vmul.f32 %v1951, %v1990
        %v1999 = vmul.f32 %v1953, %v1991
        %v2000 = vmul.f32 %v1955, %v1992
        %v2001 = vmul.f32 %v1957, %v1993
        %v2002 = vmul.f32 %v1959, %v1994
        %v2003 = vmul.f32 %v1961, %v1995
        %v2004 = vmul.f32 %v1963, %v1996
        %v2005 = vmul.f32 %v1965, %v1997
        %v2006 = vpack.c.bf16 %v1998, %v1998
        %v2007 = vpack.c.bf16 %v1999, %v1999
        %v2008 = vpack.c.bf16 %v2000, %v2000
        %v2009 = vpack.c.bf16 %v2001, %v2001
        %v2010 = vpack.c.bf16 %v2002, %v2002
        %v2011 = vpack.c.bf16 %v2003, %v2003
        %v2012 = vpack.c.bf16 %v2004, %v2004
        %v2013 = vpack.c.bf16 %v2005, %v2005
        %v2016 = vunpack.c.l.b16 %v2006
        %v2017 = vunpack.c.l.b16 %v2007
        %v2018 = vpack.c.b16 %v2017, %v2016
        %v2019 = vunpack.c.l.b16 %v1289
        %v2020 = vunpack.c.l.b16 %v1291
        %v2021 = vpack.c.b16 %v2020, %v2019
        %v2024 = vsel %vm1565, %v2018, 0
        %2026 = vmatpush.bf16.msra.mxu0 0
        %2027 = vmatpush.bf16.msra.mxu0 0
        %2028 = vmatpush.bf16.msra.mxu0 0
        %2029 = vmatpush.bf16.msra.mxu0 0
        %2030 = vmatpush.bf16.msra.mxu0 0
        %2031 = vmatpush.bf16.msra.mxu0 0
        %2032 = vmatpush.bf16.msra.mxu0 0
        %2033 = vmatpush.bf16.msra.mxu0 %v2021
        %2034 = vmatmul.bf16.gmra.mxu0 %v2024
        %v2035 = vpop.f32.mrf.mxu0
        %v2036 = vadd.f32 0.0, %v2035
        %v2037 = vpop.f32.mrf.mxu0
        %v2038 = vadd.f32 0.0, %v2037
        %2039 = vdwg.mxu0
        %v2042 = vunpack.c.l.b16 %v2008
        %v2043 = vunpack.c.l.b16 %v2009
        %v2044 = vpack.c.b16 %v2043, %v2042
        %v2045 = vunpack.c.l.b16 %v1401
        %v2046 = vunpack.c.l.b16 %v1403
        %v2047 = vpack.c.b16 %v2046, %v2045
        %v2050 = vsel %vm1565, %v2044, 0
        %2052 = vmatpush.bf16.msra.mxu0 0
        %2053 = vmatpush.bf16.msra.mxu0 0
        %2054 = vmatpush.bf16.msra.mxu0 0
        %2055 = vmatpush.bf16.msra.mxu0 0
        %2056 = vmatpush.bf16.msra.mxu0 0
        %2057 = vmatpush.bf16.msra.mxu0 0
        %2058 = vmatpush.bf16.msra.mxu0 0
        %2059 = vmatpush.bf16.msra.mxu0 %v2047
        %2060 = vmatmul.bf16.gmra.mxu0 %v2050
        %v2061 = vpop.f32.mrf.mxu0
        %v2062 = vadd.f32 0.0, %v2061
        %v2063 = vpop.f32.mrf.mxu0
        %v2064 = vadd.f32 0.0, %v2063
        %2065 = vdwg.mxu0
        %v2068 = vunpack.c.l.b16 %v2010
        %v2069 = vunpack.c.l.b16 %v2011
        %v2070 = vpack.c.b16 %v2069, %v2068
        %v2071 = vunpack.c.l.b16 %v1417
        %v2072 = vunpack.c.l.b16 %v1419
        %v2073 = vpack.c.b16 %v2072, %v2071
        %v2076 = vsel %vm1565, %v2070, 0
        %2078 = vmatpush.bf16.msra.mxu0 0
        %2079 = vmatpush.bf16.msra.mxu0 0
        %2080 = vmatpush.bf16.msra.mxu0 0
        %2081 = vmatpush.bf16.msra.mxu0 0
        %2082 = vmatpush.bf16.msra.mxu0 0
        %2083 = vmatpush.bf16.msra.mxu0 0
        %2084 = vmatpush.bf16.msra.mxu0 0
        %2085 = vmatpush.bf16.msra.mxu0 %v2073
        %2086 = vmatmul.bf16.gmra.mxu0 %v2076
        %v2087 = vpop.f32.mrf.mxu0
        %v2088 = vadd.f32 0.0, %v2087
        %v2089 = vpop.f32.mrf.mxu0
        %v2090 = vadd.f32 0.0, %v2089
        %2091 = vdwg.mxu0
        %v2094 = vunpack.c.l.b16 %v2012
        %v2095 = vunpack.c.l.b16 %v2013
        %v2096 = vpack.c.b16 %v2095, %v2094
        %v2097 = vunpack.c.l.b16 %v1433
        %v2098 = vunpack.c.l.b16 %v1435
        %v2099 = vpack.c.b16 %v2098, %v2097
        %v2102 = vsel %vm1565, %v2096, 0
        %2104 = vmatpush.bf16.msra.mxu0 0
        %2105 = vmatpush.bf16.msra.mxu0 0
        %2106 = vmatpush.bf16.msra.mxu0 0
        %2107 = vmatpush.bf16.msra.mxu0 0
        %2108 = vmatpush.bf16.msra.mxu0 0
        %2109 = vmatpush.bf16.msra.mxu0 0
        %2110 = vmatpush.bf16.msra.mxu0 0
        %2111 = vmatpush.bf16.msra.mxu0 %v2099
        %2112 = vmatmul.bf16.gmra.mxu0 %v2102
        %v2113 = vpop.f32.mrf.mxu0
        %v2114 = vadd.f32 0.0, %v2113
        %v2115 = vpop.f32.mrf.mxu0
        %v2116 = vadd.f32 0.0, %v2115
        %2117 = vdwg.mxu0
        %2120 = vrot.lane.b32.xlu0 %v2062, 32
        %v2121 = vpop.permute.xlu0 %2120
        %2122 = vrot.lane.b32.xlu0 %v2064, 32
        %v2123 = vpop.permute.xlu0 %2122
        %2128 = vrot.lane.b32.xlu0 %v2088, 64
        %v2129 = vpop.permute.xlu0 %2128
        %2130 = vrot.lane.b32.xlu0 %v2090, 64
        %v2131 = vpop.permute.xlu0 %2130
        %2136 = vrot.lane.b32.xlu0 %v2114, 96
        %v2137 = vpop.permute.xlu0 %2136
        %2138 = vrot.lane.b32.xlu0 %v2116, 96
        %v2139 = vpop.permute.xlu0 %2138
        %v2142 = vsel %vm1450, %v2036, %v2121
        %v2143 = vsel %vm1450, %v2038, %v2123
        %v2144 = vsel %vm1792, %v2142, %v2129
        %v2145 = vsel %vm1792, %v2143, %v2131
        %v2146 = vsel %vm1795, %v2144, %v2137
        %v2147 = vsel %vm1795, %v2145, %v2139
        %v2148 = vunpack.c.l.b16 %v1292
        %v2149 = vunpack.c.l.b16 %v1294
        %v2150 = vpack.c.b16 %v2149, %v2148
        %v2151 = vunpack.c.l.b16 %v1360
        %v2152 = vunpack.c.l.b16 %v1361
        %v2153 = vpack.c.b16 %v2152, %v2151
        %v2155 = vsel %vm1450, %v2150, 0
        %v2158 = vsel %vm1450, %v2153, 0
        %2160 = vmatpush.bf16.xpose.msra.mxu0 0
        %2161 = vmatpush.bf16.xpose.msra.mxu0 0
        %2162 = vmatpush.bf16.xpose.msra.mxu0 0
        %2163 = vmatpush.bf16.xpose.msra.mxu0 0
        %2164 = vmatpush.bf16.xpose.msra.mxu0 0
        %2165 = vmatpush.bf16.xpose.msra.mxu0 0
        %2166 = vmatpush.bf16.xpose.msra.mxu0 0
        %2167 = vmatpush.bf16.xpose.msra.mxu0 %v2158
        %2168 = vmatmul.bf16.gmra.mxu0 %v2155
        %v2169 = vpop.f32.mrf.mxu0
        %v2170 = vadd.f32 0.0, %v2169
        %v2171 = vpop.f32.mrf.mxu0
        %v2172 = vadd.f32 0.0, %v2171
        %2173 = vdwg.mxu0
        %v2174 = vunpack.c.l.b16 %v1317
        %v2175 = vunpack.c.l.b16 %v1319
        %v2176 = vpack.c.b16 %v2175, %v2174
        %v2177 = vunpack.c.l.b16 %v1368
        %v2178 = vunpack.c.l.b16 %v1369
        %v2179 = vpack.c.b16 %v2178, %v2177
        %v2181 = vsel %vm1450, %v2176, 0
        %v2184 = vsel %vm1450, %v2179, 0
        %2186 = vmatpush.bf16.xpose.msra.mxu0 0
        %2187 = vmatpush.bf16.xpose.msra.mxu0 0
        %2188 = vmatpush.bf16.xpose.msra.mxu0 0
        %2189 = vmatpush.bf16.xpose.msra.mxu0 0
        %2190 = vmatpush.bf16.xpose.msra.mxu0 0
        %2191 = vmatpush.bf16.xpose.msra.mxu0 0
        %2192 = vmatpush.bf16.xpose.msra.mxu0 0
        %2193 = vmatpush.bf16.xpose.msra.mxu0 %v2184
        %2194 = vmatmul.bf16.gmra.mxu0 %v2181
        %v2195 = vpop.f32.mrf.mxu0
        %v2196 = vadd.f32 0.0, %v2195
        %v2197 = vpop.f32.mrf.mxu0
        %v2198 = vadd.f32 0.0, %v2197
        %2199 = vdwg.mxu0
        %v2200 = vunpack.c.l.b16 %v1333
        %v2201 = vunpack.c.l.b16 %v1335
        %v2202 = vpack.c.b16 %v2201, %v2200
        %v2203 = vunpack.c.l.b16 %v1376
        %v2204 = vunpack.c.l.b16 %v1377
        %v2205 = vpack.c.b16 %v2204, %v2203
        %v2207 = vsel %vm1450, %v2202, 0
        %v2210 = vsel %vm1450, %v2205, 0
        %2212 = vmatpush.bf16.xpose.msra.mxu0 0
        %2213 = vmatpush.bf16.xpose.msra.mxu0 0
        %2214 = vmatpush.bf16.xpose.msra.mxu0 0
        %2215 = vmatpush.bf16.xpose.msra.mxu0 0
        %2216 = vmatpush.bf16.xpose.msra.mxu0 0
        %2217 = vmatpush.bf16.xpose.msra.mxu0 0
        %2218 = vmatpush.bf16.xpose.msra.mxu0 0
        %2219 = vmatpush.bf16.xpose.msra.mxu0 %v2210
        %2220 = vmatmul.bf16.gmra.mxu0 %v2207
        %v2221 = vpop.f32.mrf.mxu0
        %v2222 = vadd.f32 0.0, %v2221
        %v2223 = vpop.f32.mrf.mxu0
        %v2224 = vadd.f32 0.0, %v2223
        %2225 = vdwg.mxu0
        %v2226 = vunpack.c.l.b16 %v1349
        %v2227 = vunpack.c.l.b16 %v1351
        %v2228 = vpack.c.b16 %v2227, %v2226
        %v2229 = vunpack.c.l.b16 %v1384
        %v2230 = vunpack.c.l.b16 %v1385
        %v2231 = vpack.c.b16 %v2230, %v2229
        %v2233 = vsel %vm1450, %v2228, 0
        %v2236 = vsel %vm1450, %v2231, 0
        %2238 = vmatpush.bf16.xpose.msra.mxu0 0
        %2239 = vmatpush.bf16.xpose.msra.mxu0 0
        %2240 = vmatpush.bf16.xpose.msra.mxu0 0
        %2241 = vmatpush.bf16.xpose.msra.mxu0 0
        %2242 = vmatpush.bf16.xpose.msra.mxu0 0
        %2243 = vmatpush.bf16.xpose.msra.mxu0 0
        %2244 = vmatpush.bf16.xpose.msra.mxu0 0
        %2245 = vmatpush.bf16.xpose.msra.mxu0 %v2236
        %2246 = vmatmul.bf16.gmra.mxu0 %v2233
        %v2247 = vpop.f32.mrf.mxu0
        %v2248 = vadd.f32 0.0, %v2247
        %v2249 = vpop.f32.mrf.mxu0
        %v2250 = vadd.f32 0.0, %v2249
        %2251 = vdwg.mxu0
        %v2252 = vmul.f32 %v2170, 0.17677669
        %v2253 = vmul.f32 %v2172, 0.17677669
        %v2254 = vmul.f32 %v2196, 0.17677669
        %v2255 = vmul.f32 %v2198, 0.17677669
        %v2256 = vmul.f32 %v2222, 0.17677669
        %v2257 = vmul.f32 %v2224, 0.17677669
        %v2258 = vmul.f32 %v2248, 0.17677669
        %v2259 = vmul.f32 %v2250, 0.17677669
        %v2260 = vadd.f32 %v2252, %v824
        %v2261 = vadd.f32 %v2253, %v825
        %v2262 = vadd.f32 %v2254, %v824
        %v2263 = vadd.f32 %v2255, %v825
        %v2264 = vadd.f32 %v2256, %v824
        %v2265 = vadd.f32 %v2257, %v825
        %v2266 = vadd.f32 %v2258, %v824
        %v2267 = vadd.f32 %v2259, %v825
        %v2268 = vsel %vm1565, %v2260, -inf
        %2269 = vmax.xlane.f32.xlu0 %v2268
        %v2270 = vpop.xlane.xlu0 %2269
        %v2271 = vsel %vm1565, %v2261, -inf
        %2272 = vmax.xlane.f32.xlu0 %v2271
        %v2273 = vpop.xlane.xlu0 %2272
        %v2274 = vsel %vm1565, %v2262, -inf
        %2275 = vmax.xlane.f32.xlu0 %v2274
        %v2276 = vpop.xlane.xlu0 %2275
        %v2277 = vsel %vm1565, %v2263, -inf
        %2278 = vmax.xlane.f32.xlu0 %v2277
        %v2279 = vpop.xlane.xlu0 %2278
        %v2280 = vsel %vm1565, %v2264, -inf
        %2281 = vmax.xlane.f32.xlu0 %v2280
        %v2282 = vpop.xlane.xlu0 %2281
        %v2283 = vsel %vm1565, %v2265, -inf
        %2284 = vmax.xlane.f32.xlu0 %v2283
        %v2285 = vpop.xlane.xlu0 %2284
        %v2286 = vsel %vm1565, %v2266, -inf
        %2287 = vmax.xlane.f32.xlu0 %v2286
        %v2288 = vpop.xlane.xlu0 %2287
        %v2289 = vsel %vm1565, %v2267, -inf
        %2290 = vmax.xlane.f32.xlu0 %v2289
        %v2291 = vpop.xlane.xlu0 %2290
        %v2292 = vsub.f32 %v2260, %v2270
        %v2293 = vsub.f32 %v2261, %v2273
        %v2294 = vsub.f32 %v2262, %v2276
        %v2295 = vsub.f32 %v2263, %v2279
        %v2296 = vsub.f32 %v2264, %v2282
        %v2297 = vsub.f32 %v2265, %v2285
        %v2298 = vsub.f32 %v2266, %v2288
        %v2299 = vsub.f32 %v2267, %v2291
        %v2300 = vmul.f32 %v2292, 1.442695
        %v2301 = vpow.pop %v2300
        %v2302 = vmul.f32 %v2293, 1.442695
        %v2303 = vpow.pop %v2302
        %v2304 = vmul.f32 %v2294, 1.442695
        %v2305 = vpow.pop %v2304
        %v2306 = vmul.f32 %v2295, 1.442695
        %v2307 = vpow.pop %v2306
        %v2308 = vmul.f32 %v2296, 1.442695
        %v2309 = vpow.pop %v2308
        %v2310 = vmul.f32 %v2297, 1.442695
        %v2311 = vpow.pop %v2310
        %v2312 = vmul.f32 %v2298, 1.442695
        %v2313 = vpow.pop %v2312
        %v2314 = vmul.f32 %v2299, 1.442695
        %v2315 = vpow.pop %v2314
        %v2316 = vsel %vm1565, %v2301, 0.0
        %2317 = vadd.xlane.f32.xlu0 %v2316
        %v2318 = vpop.xlane.xlu0 %2317
        %v2319 = vsel %vm1565, %v2303, 0.0
        %2320 = vadd.xlane.f32.xlu0 %v2319
        %v2321 = vpop.xlane.xlu0 %2320
        %v2322 = vsel %vm1565, %v2305, 0.0
        %2323 = vadd.xlane.f32.xlu0 %v2322
        %v2324 = vpop.xlane.xlu0 %2323
        %v2325 = vsel %vm1565, %v2307, 0.0
        %2326 = vadd.xlane.f32.xlu0 %v2325
        %v2327 = vpop.xlane.xlu0 %2326
        %v2328 = vsel %vm1565, %v2309, 0.0
        %2329 = vadd.xlane.f32.xlu0 %v2328
        %v2330 = vpop.xlane.xlu0 %2329
        %v2331 = vsel %vm1565, %v2311, 0.0
        %2332 = vadd.xlane.f32.xlu0 %v2331
        %v2333 = vpop.xlane.xlu0 %2332
        %v2334 = vsel %vm1565, %v2313, 0.0
        %2335 = vadd.xlane.f32.xlu0 %v2334
        %v2336 = vpop.xlane.xlu0 %2335
        %v2337 = vsel %vm1565, %v2315, 0.0
        %2338 = vadd.xlane.f32.xlu0 %v2337
        %v2339 = vpop.xlane.xlu0 %2338
        %v2340 = vrcp.pop %v2318
        %v2341 = vrcp.pop %v2321
        %v2342 = vrcp.pop %v2324
        %v2343 = vrcp.pop %v2327
        %v2344 = vrcp.pop %v2330
        %v2345 = vrcp.pop %v2333
        %v2346 = vrcp.pop %v2336
        %v2347 = vrcp.pop %v2339
        %v2348 = vmul.f32 %v2301, %v2340
        %v2349 = vmul.f32 %v2303, %v2341
        %v2350 = vmul.f32 %v2305, %v2342
        %v2351 = vmul.f32 %v2307, %v2343
        %v2352 = vmul.f32 %v2309, %v2344
        %v2353 = vmul.f32 %v2311, %v2345
        %v2354 = vmul.f32 %v2313, %v2346
        %v2355 = vmul.f32 %v2315, %v2347
        %v2356 = vpack.c.bf16 %v2348, %v2348
        %v2357 = vpack.c.bf16 %v2349, %v2349
        %v2358 = vpack.c.bf16 %v2350, %v2350
        %v2359 = vpack.c.bf16 %v2351, %v2351
        %v2360 = vpack.c.bf16 %v2352, %v2352
        %v2361 = vpack.c.bf16 %v2353, %v2353
        %v2362 = vpack.c.bf16 %v2354, %v2354
        %v2363 = vpack.c.bf16 %v2355, %v2355
        %v2366 = vunpack.c.l.b16 %v2356
        %v2367 = vunpack.c.l.b16 %v2357
        %v2368 = vpack.c.b16 %v2367, %v2366
        %v2369 = vunpack.c.l.b16 %v1293
        %v2370 = vunpack.c.l.b16 %v1295
        %v2371 = vpack.c.b16 %v2370, %v2369
        %v2374 = vsel %vm1565, %v2368, 0
        %2376 = vmatpush.bf16.msra.mxu0 0
        %2377 = vmatpush.bf16.msra.mxu0 0
        %2378 = vmatpush.bf16.msra.mxu0 0
        %2379 = vmatpush.bf16.msra.mxu0 0
        %2380 = vmatpush.bf16.msra.mxu0 0
        %2381 = vmatpush.bf16.msra.mxu0 0
        %2382 = vmatpush.bf16.msra.mxu0 0
        %2383 = vmatpush.bf16.msra.mxu0 %v2371
        %2384 = vmatmul.bf16.gmra.mxu0 %v2374
        %v2385 = vpop.f32.mrf.mxu0
        %v2386 = vadd.f32 0.0, %v2385
        %v2387 = vpop.f32.mrf.mxu0
        %v2388 = vadd.f32 0.0, %v2387
        %2389 = vdwg.mxu0
        %v2392 = vunpack.c.l.b16 %v2358
        %v2393 = vunpack.c.l.b16 %v2359
        %v2394 = vpack.c.b16 %v2393, %v2392
        %v2395 = vunpack.c.l.b16 %v1405
        %v2396 = vunpack.c.l.b16 %v1407
        %v2397 = vpack.c.b16 %v2396, %v2395
        %v2400 = vsel %vm1565, %v2394, 0
        %2402 = vmatpush.bf16.msra.mxu0 0
        %2403 = vmatpush.bf16.msra.mxu0 0
        %2404 = vmatpush.bf16.msra.mxu0 0
        %2405 = vmatpush.bf16.msra.mxu0 0
        %2406 = vmatpush.bf16.msra.mxu0 0
        %2407 = vmatpush.bf16.msra.mxu0 0
        %2408 = vmatpush.bf16.msra.mxu0 0
        %2409 = vmatpush.bf16.msra.mxu0 %v2397
        %2410 = vmatmul.bf16.gmra.mxu0 %v2400
        %v2411 = vpop.f32.mrf.mxu0
        %v2412 = vadd.f32 0.0, %v2411
        %v2413 = vpop.f32.mrf.mxu0
        %v2414 = vadd.f32 0.0, %v2413
        %2415 = vdwg.mxu0
        %v2418 = vunpack.c.l.b16 %v2360
        %v2419 = vunpack.c.l.b16 %v2361
        %v2420 = vpack.c.b16 %v2419, %v2418
        %v2421 = vunpack.c.l.b16 %v1421
        %v2422 = vunpack.c.l.b16 %v1423
        %v2423 = vpack.c.b16 %v2422, %v2421
        %v2426 = vsel %vm1565, %v2420, 0
        %2428 = vmatpush.bf16.msra.mxu0 0
        %2429 = vmatpush.bf16.msra.mxu0 0
        %2430 = vmatpush.bf16.msra.mxu0 0
        %2431 = vmatpush.bf16.msra.mxu0 0
        %2432 = vmatpush.bf16.msra.mxu0 0
        %2433 = vmatpush.bf16.msra.mxu0 0
        %2434 = vmatpush.bf16.msra.mxu0 0
        %2435 = vmatpush.bf16.msra.mxu0 %v2423
        %2436 = vmatmul.bf16.gmra.mxu0 %v2426
        %v2437 = vpop.f32.mrf.mxu0
        %v2438 = vadd.f32 0.0, %v2437
        %v2439 = vpop.f32.mrf.mxu0
        %v2440 = vadd.f32 0.0, %v2439
        %2441 = vdwg.mxu0
        %v2444 = vunpack.c.l.b16 %v2362
        %v2445 = vunpack.c.l.b16 %v2363
        %v2446 = vpack.c.b16 %v2445, %v2444
        %v2447 = vunpack.c.l.b16 %v1437
        %v2448 = vunpack.c.l.b16 %v1439
        %v2449 = vpack.c.b16 %v2448, %v2447
        %v2452 = vsel %vm1565, %v2446, 0
        %2454 = vmatpush.bf16.msra.mxu0 0
        %2455 = vmatpush.bf16.msra.mxu0 0
        %2456 = vmatpush.bf16.msra.mxu0 0
        %2457 = vmatpush.bf16.msra.mxu0 0
        %2458 = vmatpush.bf16.msra.mxu0 0
        %2459 = vmatpush.bf16.msra.mxu0 0
        %2460 = vmatpush.bf16.msra.mxu0 0
        %2461 = vmatpush.bf16.msra.mxu0 %v2449
        %2462 = vmatmul.bf16.gmra.mxu0 %v2452
        %v2463 = vpop.f32.mrf.mxu0
        %v2464 = vadd.f32 0.0, %v2463
        %v2465 = vpop.f32.mrf.mxu0
        %v2466 = vadd.f32 0.0, %v2465
        %2467 = vdwg.mxu0
        %2470 = vrot.lane.b32.xlu0 %v2412, 32
        %v2471 = vpop.permute.xlu0 %2470
        %2472 = vrot.lane.b32.xlu0 %v2414, 32
        %v2473 = vpop.permute.xlu0 %2472
        %2478 = vrot.lane.b32.xlu0 %v2438, 64
        %v2479 = vpop.permute.xlu0 %2478
        %2480 = vrot.lane.b32.xlu0 %v2440, 64
        %v2481 = vpop.permute.xlu0 %2480
        %2486 = vrot.lane.b32.xlu0 %v2464, 96
        %v2487 = vpop.permute.xlu0 %2486
        %2488 = vrot.lane.b32.xlu0 %v2466, 96
        %v2489 = vpop.permute.xlu0 %2488
        %v2492 = vsel %vm1450, %v2386, %v2471
        %v2493 = vsel %vm1450, %v2388, %v2473
        %v2494 = vsel %vm1792, %v2492, %v2479
        %v2495 = vsel %vm1792, %v2493, %v2481
        %v2496 = vsel %vm1795, %v2494, %v2487
        %v2497 = vsel %vm1795, %v2495, %v2489
        %v2498 = vunpack.c.l.b16 %v1296
        %v2499 = vunpack.c.l.b16 %v1298
        %v2500 = vpack.c.b16 %v2499, %v2498
        %v2501 = vunpack.c.l.b16 %v1362
        %v2502 = vunpack.c.l.b16 %v1363
        %v2503 = vpack.c.b16 %v2502, %v2501
        %v2505 = vsel %vm1450, %v2500, 0
        %v2508 = vsel %vm1450, %v2503, 0
        %2510 = vmatpush.bf16.xpose.msra.mxu0 0
        %2511 = vmatpush.bf16.xpose.msra.mxu0 0
        %2512 = vmatpush.bf16.xpose.msra.mxu0 0
        %2513 = vmatpush.bf16.xpose.msra.mxu0 0
        %2514 = vmatpush.bf16.xpose.msra.mxu0 0
        %2515 = vmatpush.bf16.xpose.msra.mxu0 0
        %2516 = vmatpush.bf16.xpose.msra.mxu0 0
        %2517 = vmatpush.bf16.xpose.msra.mxu0 %v2508
        %2518 = vmatmul.bf16.gmra.mxu0 %v2505
        %v2519 = vpop.f32.mrf.mxu0
        %v2520 = vadd.f32 0.0, %v2519
        %v2521 = vpop.f32.mrf.mxu0
        %v2522 = vadd.f32 0.0, %v2521
        %2523 = vdwg.mxu0
        %v2524 = vunpack.c.l.b16 %v1321
        %v2525 = vunpack.c.l.b16 %v1323
        %v2526 = vpack.c.b16 %v2525, %v2524
        %v2527 = vunpack.c.l.b16 %v1370
        %v2528 = vunpack.c.l.b16 %v1371
        %v2529 = vpack.c.b16 %v2528, %v2527
        %v2531 = vsel %vm1450, %v2526, 0
        %v2534 = vsel %vm1450, %v2529, 0
        %2536 = vmatpush.bf16.xpose.msra.mxu0 0
        %2537 = vmatpush.bf16.xpose.msra.mxu0 0
        %2538 = vmatpush.bf16.xpose.msra.mxu0 0
        %2539 = vmatpush.bf16.xpose.msra.mxu0 0
        %2540 = vmatpush.bf16.xpose.msra.mxu0 0
        %2541 = vmatpush.bf16.xpose.msra.mxu0 0
        %2542 = vmatpush.bf16.xpose.msra.mxu0 0
        %2543 = vmatpush.bf16.xpose.msra.mxu0 %v2534
        %2544 = vmatmul.bf16.gmra.mxu0 %v2531
        %v2545 = vpop.f32.mrf.mxu0
        %v2546 = vadd.f32 0.0, %v2545
        %v2547 = vpop.f32.mrf.mxu0
        %v2548 = vadd.f32 0.0, %v2547
        %2549 = vdwg.mxu0
        %v2550 = vunpack.c.l.b16 %v1337
        %v2551 = vunpack.c.l.b16 %v1339
        %v2552 = vpack.c.b16 %v2551, %v2550
        %v2553 = vunpack.c.l.b16 %v1378
        %v2554 = vunpack.c.l.b16 %v1379
        %v2555 = vpack.c.b16 %v2554, %v2553
        %v2557 = vsel %vm1450, %v2552, 0
        %v2560 = vsel %vm1450, %v2555, 0
        %2562 = vmatpush.bf16.xpose.msra.mxu0 0
        %2563 = vmatpush.bf16.xpose.msra.mxu0 0
        %2564 = vmatpush.bf16.xpose.msra.mxu0 0
        %2565 = vmatpush.bf16.xpose.msra.mxu0 0
        %2566 = vmatpush.bf16.xpose.msra.mxu0 0
        %2567 = vmatpush.bf16.xpose.msra.mxu0 0
        %2568 = vmatpush.bf16.xpose.msra.mxu0 0
        %2569 = vmatpush.bf16.xpose.msra.mxu0 %v2560
        %2570 = vmatmul.bf16.gmra.mxu0 %v2557
        %v2571 = vpop.f32.mrf.mxu0
        %v2572 = vadd.f32 0.0, %v2571
        %v2573 = vpop.f32.mrf.mxu0
        %v2574 = vadd.f32 0.0, %v2573
        %2575 = vdwg.mxu0
        %v2576 = vunpack.c.l.b16 %v1353
        %v2577 = vunpack.c.l.b16 %v1355
        %v2578 = vpack.c.b16 %v2577, %v2576
        %v2579 = vunpack.c.l.b16 %v1386
        %v2580 = vunpack.c.l.b16 %v1387
        %v2581 = vpack.c.b16 %v2580, %v2579
        %v2583 = vsel %vm1450, %v2578, 0
        %v2586 = vsel %vm1450, %v2581, 0
        %2588 = vmatpush.bf16.xpose.msra.mxu0 0
        %2589 = vmatpush.bf16.xpose.msra.mxu0 0
        %2590 = vmatpush.bf16.xpose.msra.mxu0 0
        %2591 = vmatpush.bf16.xpose.msra.mxu0 0
        %2592 = vmatpush.bf16.xpose.msra.mxu0 0
        %2593 = vmatpush.bf16.xpose.msra.mxu0 0
        %2594 = vmatpush.bf16.xpose.msra.mxu0 0
        %2595 = vmatpush.bf16.xpose.msra.mxu0 %v2586
        %2596 = vmatmul.bf16.gmra.mxu0 %v2583
        %v2597 = vpop.f32.mrf.mxu0
        %v2598 = vadd.f32 0.0, %v2597
        %v2599 = vpop.f32.mrf.mxu0
        %v2600 = vadd.f32 0.0, %v2599
        %2601 = vdwg.mxu0
        %v2602 = vmul.f32 %v2520, 0.17677669
        %v2603 = vmul.f32 %v2522, 0.17677669
        %v2604 = vmul.f32 %v2546, 0.17677669
        %v2605 = vmul.f32 %v2548, 0.17677669
        %v2606 = vmul.f32 %v2572, 0.17677669
        %v2607 = vmul.f32 %v2574, 0.17677669
        %v2608 = vmul.f32 %v2598, 0.17677669
        %v2609 = vmul.f32 %v2600, 0.17677669
        %v2610 = vadd.f32 %v2602, %v824
        %v2611 = vadd.f32 %v2603, %v825
        %v2612 = vadd.f32 %v2604, %v824
        %v2613 = vadd.f32 %v2605, %v825
        %v2614 = vadd.f32 %v2606, %v824
        %v2615 = vadd.f32 %v2607, %v825
        %v2616 = vadd.f32 %v2608, %v824
        %v2617 = vadd.f32 %v2609, %v825
        %v2618 = vsel %vm1565, %v2610, -inf
        %2619 = vmax.xlane.f32.xlu0 %v2618
        %v2620 = vpop.xlane.xlu0 %2619
        %v2621 = vsel %vm1565, %v2611, -inf
        %2622 = vmax.xlane.f32.xlu0 %v2621
        %v2623 = vpop.xlane.xlu0 %2622
        %v2624 = vsel %vm1565, %v2612, -inf
        %2625 = vmax.xlane.f32.xlu0 %v2624
        %v2626 = vpop.xlane.xlu0 %2625
        %v2627 = vsel %vm1565, %v2613, -inf
        %2628 = vmax.xlane.f32.xlu0 %v2627
        %v2629 = vpop.xlane.xlu0 %2628
        %v2630 = vsel %vm1565, %v2614, -inf
        %2631 = vmax.xlane.f32.xlu0 %v2630
        %v2632 = vpop.xlane.xlu0 %2631
        %v2633 = vsel %vm1565, %v2615, -inf
        %2634 = vmax.xlane.f32.xlu0 %v2633
        %v2635 = vpop.xlane.xlu0 %2634
        %v2636 = vsel %vm1565, %v2616, -inf
        %2637 = vmax.xlane.f32.xlu0 %v2636
        %v2638 = vpop.xlane.xlu0 %2637
        %v2639 = vsel %vm1565, %v2617, -inf
        %2640 = vmax.xlane.f32.xlu0 %v2639
        %v2641 = vpop.xlane.xlu0 %2640
        %v2642 = vsub.f32 %v2610, %v2620
        %v2643 = vsub.f32 %v2611, %v2623
        %v2644 = vsub.f32 %v2612, %v2626
        %v2645 = vsub.f32 %v2613, %v2629
        %v2646 = vsub.f32 %v2614, %v2632
        %v2647 = vsub.f32 %v2615, %v2635
        %v2648 = vsub.f32 %v2616, %v2638
        %v2649 = vsub.f32 %v2617, %v2641
        %v2650 = vmul.f32 %v2642, 1.442695
        %v2651 = vpow.pop %v2650
        %v2652 = vmul.f32 %v2643, 1.442695
        %v2653 = vpow.pop %v2652
        %v2654 = vmul.f32 %v2644, 1.442695
        %v2655 = vpow.pop %v2654
        %v2656 = vmul.f32 %v2645, 1.442695
        %v2657 = vpow.pop %v2656
        %v2658 = vmul.f32 %v2646, 1.442695
        %v2659 = vpow.pop %v2658
        %v2660 = vmul.f32 %v2647, 1.442695
        %v2661 = vpow.pop %v2660
        %v2662 = vmul.f32 %v2648, 1.442695
        %v2663 = vpow.pop %v2662
        %v2664 = vmul.f32 %v2649, 1.442695
        %v2665 = vpow.pop %v2664
        %v2666 = vsel %vm1565, %v2651, 0.0
        %2667 = vadd.xlane.f32.xlu0 %v2666
        %v2668 = vpop.xlane.xlu0 %2667
        %v2669 = vsel %vm1565, %v2653, 0.0
        %2670 = vadd.xlane.f32.xlu0 %v2669
        %v2671 = vpop.xlane.xlu0 %2670
        %v2672 = vsel %vm1565, %v2655, 0.0
        %2673 = vadd.xlane.f32.xlu0 %v2672
        %v2674 = vpop.xlane.xlu0 %2673
        %v2675 = vsel %vm1565, %v2657, 0.0
        %2676 = vadd.xlane.f32.xlu0 %v2675
        %v2677 = vpop.xlane.xlu0 %2676
        %v2678 = vsel %vm1565, %v2659, 0.0
        %2679 = vadd.xlane.f32.xlu0 %v2678
        %v2680 = vpop.xlane.xlu0 %2679
        %v2681 = vsel %vm1565, %v2661, 0.0
        %2682 = vadd.xlane.f32.xlu0 %v2681
        %v2683 = vpop.xlane.xlu0 %2682
        %v2684 = vsel %vm1565, %v2663, 0.0
        %2685 = vadd.xlane.f32.xlu0 %v2684
        %v2686 = vpop.xlane.xlu0 %2685
        %v2687 = vsel %vm1565, %v2665, 0.0
        %2688 = vadd.xlane.f32.xlu0 %v2687
        %v2689 = vpop.xlane.xlu0 %2688
        %v2690 = vrcp.pop %v2668
        %v2691 = vrcp.pop %v2671
        %v2692 = vrcp.pop %v2674
        %v2693 = vrcp.pop %v2677
        %v2694 = vrcp.pop %v2680
        %v2695 = vrcp.pop %v2683
        %v2696 = vrcp.pop %v2686
        %v2697 = vrcp.pop %v2689
        %v2698 = vmul.f32 %v2651, %v2690
        %v2699 = vmul.f32 %v2653, %v2691
        %v2700 = vmul.f32 %v2655, %v2692
        %v2701 = vmul.f32 %v2657, %v2693
        %v2702 = vmul.f32 %v2659, %v2694
        %v2703 = vmul.f32 %v2661, %v2695
        %v2704 = vmul.f32 %v2663, %v2696
        %v2705 = vmul.f32 %v2665, %v2697
        %v2706 = vpack.c.bf16 %v2698, %v2698
        %v2707 = vpack.c.bf16 %v2699, %v2699
        %v2708 = vpack.c.bf16 %v2700, %v2700
        %v2709 = vpack.c.bf16 %v2701, %v2701
        %v2710 = vpack.c.bf16 %v2702, %v2702
        %v2711 = vpack.c.bf16 %v2703, %v2703
        %v2712 = vpack.c.bf16 %v2704, %v2704
        %v2713 = vpack.c.bf16 %v2705, %v2705
        %v2716 = vunpack.c.l.b16 %v2706
        %v2717 = vunpack.c.l.b16 %v2707
        %v2718 = vpack.c.b16 %v2717, %v2716
        %v2719 = vunpack.c.l.b16 %v1297
        %v2720 = vunpack.c.l.b16 %v1299
        %v2721 = vpack.c.b16 %v2720, %v2719
        %v2724 = vsel %vm1565, %v2718, 0
        %2726 = vmatpush.bf16.msra.mxu0 0
        %2727 = vmatpush.bf16.msra.mxu0 0
        %2728 = vmatpush.bf16.msra.mxu0 0
        %2729 = vmatpush.bf16.msra.mxu0 0
        %2730 = vmatpush.bf16.msra.mxu0 0
        %2731 = vmatpush.bf16.msra.mxu0 0
        %2732 = vmatpush.bf16.msra.mxu0 0
        %2733 = vmatpush.bf16.msra.mxu0 %v2721
        %2734 = vmatmul.bf16.gmra.mxu0 %v2724
        %v2735 = vpop.f32.mrf.mxu0
        %v2736 = vadd.f32 0.0, %v2735
        %v2737 = vpop.f32.mrf.mxu0
        %v2738 = vadd.f32 0.0, %v2737
        %2739 = vdwg.mxu0
        %v2742 = vunpack.c.l.b16 %v2708
        %v2743 = vunpack.c.l.b16 %v2709
        %v2744 = vpack.c.b16 %v2743, %v2742
        %v2745 = vunpack.c.l.b16 %v1409
        %v2746 = vunpack.c.l.b16 %v1411
        %v2747 = vpack.c.b16 %v2746, %v2745
        %v2750 = vsel %vm1565, %v2744, 0
        %2752 = vmatpush.bf16.msra.mxu0 0
        %2753 = vmatpush.bf16.msra.mxu0 0
        %2754 = vmatpush.bf16.msra.mxu0 0
        %2755 = vmatpush.bf16.msra.mxu0 0
        %2756 = vmatpush.bf16.msra.mxu0 0
        %2757 = vmatpush.bf16.msra.mxu0 0
        %2758 = vmatpush.bf16.msra.mxu0 0
        %2759 = vmatpush.bf16.msra.mxu0 %v2747
        %2760 = vmatmul.bf16.gmra.mxu0 %v2750
        %v2761 = vpop.f32.mrf.mxu0
        %v2762 = vadd.f32 0.0, %v2761
        %v2763 = vpop.f32.mrf.mxu0
        %v2764 = vadd.f32 0.0, %v2763
        %2765 = vdwg.mxu0
        %v2768 = vunpack.c.l.b16 %v2710
        %v2769 = vunpack.c.l.b16 %v2711
        %v2770 = vpack.c.b16 %v2769, %v2768
        %v2771 = vunpack.c.l.b16 %v1425
        %v2772 = vunpack.c.l.b16 %v1427
        %v2773 = vpack.c.b16 %v2772, %v2771
        %v2776 = vsel %vm1565, %v2770, 0
        %2778 = vmatpush.bf16.msra.mxu0 0
        %2779 = vmatpush.bf16.msra.mxu0 0
        %2780 = vmatpush.bf16.msra.mxu0 0
        %2781 = vmatpush.bf16.msra.mxu0 0
        %2782 = vmatpush.bf16.msra.mxu0 0
        %2783 = vmatpush.bf16.msra.mxu0 0
        %2784 = vmatpush.bf16.msra.mxu0 0
        %2785 = vmatpush.bf16.msra.mxu0 %v2773
        %2786 = vmatmul.bf16.gmra.mxu0 %v2776
        %v2787 = vpop.f32.mrf.mxu0
        %v2788 = vadd.f32 0.0, %v2787
        %v2789 = vpop.f32.mrf.mxu0
        %v2790 = vadd.f32 0.0, %v2789
        %2791 = vdwg.mxu0
        %v2794 = vunpack.c.l.b16 %v2712
        %v2795 = vunpack.c.l.b16 %v2713
        %v2796 = vpack.c.b16 %v2795, %v2794
        %v2797 = vunpack.c.l.b16 %v1441
        %v2798 = vunpack.c.l.b16 %v1443
        %v2799 = vpack.c.b16 %v2798, %v2797
        %v2802 = vsel %vm1565, %v2796, 0
        %2804 = vmatpush.bf16.msra.mxu0 0
        %2805 = vmatpush.bf16.msra.mxu0 0
        %2806 = vmatpush.bf16.msra.mxu0 0
        %2807 = vmatpush.bf16.msra.mxu0 0
        %2808 = vmatpush.bf16.msra.mxu0 0
        %2809 = vmatpush.bf16.msra.mxu0 0
        %2810 = vmatpush.bf16.msra.mxu0 0
        %2811 = vmatpush.bf16.msra.mxu0 %v2799
        %2812 = vmatmul.bf16.gmra.mxu0 %v2802
        %v2813 = vpop.f32.mrf.mxu0
        %v2814 = vadd.f32 0.0, %v2813
        %v2815 = vpop.f32.mrf.mxu0
        %v2816 = vadd.f32 0.0, %v2815
        %2817 = vdwg.mxu0
        %2820 = vrot.lane.b32.xlu0 %v2762, 32
        %v2821 = vpop.permute.xlu0 %2820
        %2822 = vrot.lane.b32.xlu0 %v2764, 32
        %v2823 = vpop.permute.xlu0 %2822
        %2828 = vrot.lane.b32.xlu0 %v2788, 64
        %v2829 = vpop.permute.xlu0 %2828
        %2830 = vrot.lane.b32.xlu0 %v2790, 64
        %v2831 = vpop.permute.xlu0 %2830
        %2836 = vrot.lane.b32.xlu0 %v2814, 96
        %v2837 = vpop.permute.xlu0 %2836
        %2838 = vrot.lane.b32.xlu0 %v2816, 96
        %v2839 = vpop.permute.xlu0 %2838
        %v2842 = vsel %vm1450, %v2736, %v2821
        %v2843 = vsel %vm1450, %v2738, %v2823
        %v2844 = vsel %vm1792, %v2842, %v2829
        %v2845 = vsel %vm1792, %v2843, %v2831
        %v2846 = vsel %vm1795, %v2844, %v2837
        %v2847 = vsel %vm1795, %v2845, %v2839
        %v2848 = vld [vmem:[%s773] sm:$0xf]
        %v2849 = vld [vmem:[%s773 + $0x4] sm:$0xf]
        %v2850 = vld [vmem:[%s773 + $0x8] sm:$0xf]
        %v2851 = vld [vmem:[%s773 + $0xc] sm:$0xf]
        %v2852 = vld [vmem:[%s773 + $0x10] sm:$0xf]
        %v2853 = vld [vmem:[%s773 + $0x14] sm:$0xf]
        %v2854 = vld [vmem:[%s773 + $0x18] sm:$0xf]
        %v2855 = vld [vmem:[%s773 + $0x1c] sm:$0xf]
        %v2856 = vld [vmem:[%s773 + $0x20] sm:$0xf]
        %v2857 = vld [vmem:[%s773 + $0x24] sm:$0xf]
        %v2858 = vld [vmem:[%s773 + $0x28] sm:$0xf]
        %v2859 = vld [vmem:[%s773 + $0x2c] sm:$0xf]
        %v2860 = vld [vmem:[%s773 + $0x30] sm:$0xf]
        %v2861 = vld [vmem:[%s773 + $0x34] sm:$0xf]
        %v2862 = vld [vmem:[%s773 + $0x38] sm:$0xf]
        %v2863 = vld [vmem:[%s773 + $0x3c] sm:$0xf]
        %v2864 = vld [vmem:[%s776] sm:$0x1]
        %v2865 = vpack.c.bf16 %v1797, %v1796
        %v2866 = vpack.c.bf16 %v2147, %v2146
        %v2867 = vpack.c.bf16 %v2497, %v2496
        %v2868 = vpack.c.bf16 %v2847, %v2846
        %v2870 = vperm.slane %v2864, 0
        %v2888 = vunpack.c.l.b16 %v2848
        %v2889 = vunpack.c.l.b16 %v2849
        %v2890 = vunpack.c.l.b16 %v2850
        %v2891 = vunpack.c.l.b16 %v2851
        %v2892 = vunpack.c.l.b16 %v2852
        %v2893 = vunpack.c.l.b16 %v2853
        %v2894 = vunpack.c.l.b16 %v2854
        %v2895 = vunpack.c.l.b16 %v2855
        %v2896 = vunpack.c.l.b16 %v2856
        %v2897 = vunpack.c.l.b16 %v2857
        %v2898 = vunpack.c.l.b16 %v2858
        %v2899 = vunpack.c.l.b16 %v2859
        %v2900 = vunpack.c.l.b16 %v2860
        %v2901 = vunpack.c.l.b16 %v2861
        %v2902 = vunpack.c.l.b16 %v2862
        %v2903 = vunpack.c.l.b16 %v2863
        %v2904 = vpack.c.b16 %v2889, %v2888
        %v2905 = vpack.c.b16 %v2891, %v2890
        %v2906 = vpack.c.b16 %v2893, %v2892
        %v2907 = vpack.c.b16 %v2895, %v2894
        %v2908 = vpack.c.b16 %v2897, %v2896
        %v2909 = vpack.c.b16 %v2899, %v2898
        %v2910 = vpack.c.b16 %v2901, %v2900
        %v2911 = vpack.c.b16 %v2903, %v2902
        %2920 = vmatpush.bf16.msra.mxu0 %v2911
        %2921 = vmatpush.bf16.msra.mxu0 %v2910
        %2922 = vmatpush.bf16.msra.mxu0 %v2909
        %2923 = vmatpush.bf16.msra.mxu0 %v2908
        %2924 = vmatpush.bf16.msra.mxu0 %v2907
        %2925 = vmatpush.bf16.msra.mxu0 %v2906
        %2926 = vmatpush.bf16.msra.mxu0 %v2905
        %2927 = vmatpush.bf16.msra.mxu0 %v2904
        %2928 = vmatmul.bf16.gmra.mxu0 %v2865
        %v2929 = vpop.f32.mrf.mxu0
        %v2930 = vadd.f32 %v2870, %v2929
        %v2931 = vpop.f32.mrf.mxu0
        %v2932 = vadd.f32 %v2870, %v2931
        %2933 = vmatmul.bf16.gmra.mxu0 %v2866
        %v2934 = vpop.f32.mrf.mxu0
        %v2935 = vadd.f32 %v2870, %v2934
        %v2936 = vpop.f32.mrf.mxu0
        %v2937 = vadd.f32 %v2870, %v2936
        %2938 = vmatmul.bf16.gmra.mxu0 %v2867
        %v2939 = vpop.f32.mrf.mxu0
        %v2940 = vadd.f32 %v2870, %v2939
        %v2941 = vpop.f32.mrf.mxu0
        %v2942 = vadd.f32 %v2870, %v2941
        %2943 = vmatmul.bf16.gmra.mxu0 %v2868
        %v2944 = vpop.f32.mrf.mxu0
        %v2945 = vadd.f32 %v2870, %v2944
        %v2946 = vpop.f32.mrf.mxu0
        %v2947 = vadd.f32 %v2870, %v2946
        %2948 = vdwg.mxu0
        %v2949 = vadd.f32 %v826, %v2930
        %v2950 = vadd.f32 %v827, %v2932
        %v2951 = vadd.f32 %v828, %v2935
        %v2952 = vadd.f32 %v829, %v2937
        %v2953 = vadd.f32 %v830, %v2940
        %v2954 = vadd.f32 %v831, %v2942
        %v2955 = vadd.f32 %v832, %v2945
        %v2956 = vadd.f32 %v833, %v2947
        %v2957 = vld [vmem:[%s779] sm:$0x1]
        %v2958 = vld [vmem:[%s782] sm:$0x1]
        %2959 = vadd.xlane.f32.xlu0 %v2949
        %v2960 = vpop.xlane.xlu0 %2959
        %2961 = vadd.xlane.f32.xlu0 %v2950
        %v2962 = vpop.xlane.xlu0 %2961
        %2963 = vadd.xlane.f32.xlu0 %v2951
        %v2964 = vpop.xlane.xlu0 %2963
        %2965 = vadd.xlane.f32.xlu0 %v2952
        %v2966 = vpop.xlane.xlu0 %2965
        %2967 = vadd.xlane.f32.xlu0 %v2953
        %v2968 = vpop.xlane.xlu0 %2967
        %2969 = vadd.xlane.f32.xlu0 %v2954
        %v2970 = vpop.xlane.xlu0 %2969
        %2971 = vadd.xlane.f32.xlu0 %v2955
        %v2972 = vpop.xlane.xlu0 %2971
        %2973 = vadd.xlane.f32.xlu0 %v2956
        %v2974 = vpop.xlane.xlu0 %2973
        %v2975 = vmul.f32 %v2960, %v858
        %v2976 = vmul.f32 %v2962, %v858
        %v2977 = vmul.f32 %v2964, %v858
        %v2978 = vmul.f32 %v2966, %v858
        %v2979 = vmul.f32 %v2968, %v858
        %v2980 = vmul.f32 %v2970, %v858
        %v2981 = vmul.f32 %v2972, %v858
        %v2982 = vmul.f32 %v2974, %v858
        %v2983 = vsub.f32 %v2949, %v2975
        %v2984 = vsub.f32 %v2950, %v2976
        %v2985 = vsub.f32 %v2951, %v2977
        %v2986 = vsub.f32 %v2952, %v2978
        %v2987 = vsub.f32 %v2953, %v2979
        %v2988 = vsub.f32 %v2954, %v2980
        %v2989 = vsub.f32 %v2955, %v2981
        %v2990 = vsub.f32 %v2956, %v2982
        %v2991 = vmul.f32 %v2983, %v2983
        %v2992 = vmul.f32 %v2984, %v2984
        %v2993 = vmul.f32 %v2985, %v2985
        %v2994 = vmul.f32 %v2986, %v2986
        %v2995 = vmul.f32 %v2987, %v2987
        %v2996 = vmul.f32 %v2988, %v2988
        %v2997 = vmul.f32 %v2989, %v2989
        %v2998 = vmul.f32 %v2990, %v2990
        %2999 = vadd.xlane.f32.xlu0 %v2991
        %v3000 = vpop.xlane.xlu0 %2999
        %3001 = vadd.xlane.f32.xlu0 %v2992
        %v3002 = vpop.xlane.xlu0 %3001
        %3003 = vadd.xlane.f32.xlu0 %v2993
        %v3004 = vpop.xlane.xlu0 %3003
        %3005 = vadd.xlane.f32.xlu0 %v2994
        %v3006 = vpop.xlane.xlu0 %3005
        %3007 = vadd.xlane.f32.xlu0 %v2995
        %v3008 = vpop.xlane.xlu0 %3007
        %3009 = vadd.xlane.f32.xlu0 %v2996
        %v3010 = vpop.xlane.xlu0 %3009
        %3011 = vadd.xlane.f32.xlu0 %v2997
        %v3012 = vpop.xlane.xlu0 %3011
        %3013 = vadd.xlane.f32.xlu0 %v2998
        %v3014 = vpop.xlane.xlu0 %3013
        %v3015 = vmul.f32 %v3000, %v858
        %v3016 = vmul.f32 %v3002, %v858
        %v3017 = vmul.f32 %v3004, %v858
        %v3018 = vmul.f32 %v3006, %v858
        %v3019 = vmul.f32 %v3008, %v858
        %v3020 = vmul.f32 %v3010, %v858
        %v3021 = vmul.f32 %v3012, %v858
        %v3022 = vmul.f32 %v3014, %v858
        %v3023 = vadd.f32 %v3015, 1e-05
        %v3024 = vadd.f32 %v3016, 1e-05
        %v3025 = vadd.f32 %v3017, 1e-05
        %v3026 = vadd.f32 %v3018, 1e-05
        %v3027 = vadd.f32 %v3019, 1e-05
        %v3028 = vadd.f32 %v3020, 1e-05
        %v3029 = vadd.f32 %v3021, 1e-05
        %v3030 = vadd.f32 %v3022, 1e-05
        %v3031 = vrsqrt.pop %v3023
        %v3032 = vmul.f32 %v3031, %v3023
        %v3033 = vmul.f32 %v3032, %v3031
        %v3034 = vmul.f32 0.5, %v3033
        %v3035 = vsub.f32 1.5, %v3034
        %v3036 = vmul.f32 %v3031, %v3035
        %vm3037 = vweird.f32 %v3023
        %vm3038 = vweird.f32 %v3031
        %vm3039 = vmor %vm3037, %vm3038
        %v3040 = vsel %vm3039, %v3031, %v3036
        %v3041 = vrsqrt.pop %v3024
        %v3042 = vmul.f32 %v3041, %v3024
        %v3043 = vmul.f32 %v3042, %v3041
        %v3044 = vmul.f32 0.5, %v3043
        %v3045 = vsub.f32 1.5, %v3044
        %v3046 = vmul.f32 %v3041, %v3045
        %vm3047 = vweird.f32 %v3024
        %vm3048 = vweird.f32 %v3041
        %vm3049 = vmor %vm3047, %vm3048
        %v3050 = vsel %vm3049, %v3041, %v3046
        %v3051 = vrsqrt.pop %v3025
        %v3052 = vmul.f32 %v3051, %v3025
        %v3053 = vmul.f32 %v3052, %v3051
        %v3054 = vmul.f32 0.5, %v3053
        %v3055 = vsub.f32 1.5, %v3054
        %v3056 = vmul.f32 %v3051, %v3055
        %vm3057 = vweird.f32 %v3025
        %vm3058 = vweird.f32 %v3051
        %vm3059 = vmor %vm3057, %vm3058
        %v3060 = vsel %vm3059, %v3051, %v3056
        %v3061 = vrsqrt.pop %v3026
        %v3062 = vmul.f32 %v3061, %v3026
        %v3063 = vmul.f32 %v3062, %v3061
        %v3064 = vmul.f32 0.5, %v3063
        %v3065 = vsub.f32 1.5, %v3064
        %v3066 = vmul.f32 %v3061, %v3065
        %vm3067 = vweird.f32 %v3026
        %vm3068 = vweird.f32 %v3061
        %vm3069 = vmor %vm3067, %vm3068
        %v3070 = vsel %vm3069, %v3061, %v3066
        %v3071 = vrsqrt.pop %v3027
        %v3072 = vmul.f32 %v3071, %v3027
        %v3073 = vmul.f32 %v3072, %v3071
        %v3074 = vmul.f32 0.5, %v3073
        %v3075 = vsub.f32 1.5, %v3074
        %v3076 = vmul.f32 %v3071, %v3075
        %vm3077 = vweird.f32 %v3027
        %vm3078 = vweird.f32 %v3071
        %vm3079 = vmor %vm3077, %vm3078
        %v3080 = vsel %vm3079, %v3071, %v3076
        %v3081 = vrsqrt.pop %v3028
        %v3082 = vmul.f32 %v3081, %v3028
        %v3083 = vmul.f32 %v3082, %v3081
        %v3084 = vmul.f32 0.5, %v3083
        %v3085 = vsub.f32 1.5, %v3084
        %v3086 = vmul.f32 %v3081, %v3085
        %vm3087 = vweird.f32 %v3028
        %vm3088 = vweird.f32 %v3081
        %vm3089 = vmor %vm3087, %vm3088
        %v3090 = vsel %vm3089, %v3081, %v3086
        %v3091 = vrsqrt.pop %v3029
        %v3092 = vmul.f32 %v3091, %v3029
        %v3093 = vmul.f32 %v3092, %v3091
        %v3094 = vmul.f32 0.5, %v3093
        %v3095 = vsub.f32 1.5, %v3094
        %v3096 = vmul.f32 %v3091, %v3095
        %vm3097 = vweird.f32 %v3029
        %vm3098 = vweird.f32 %v3091
        %vm3099 = vmor %vm3097, %vm3098
        %v3100 = vsel %vm3099, %v3091, %v3096
        %v3101 = vrsqrt.pop %v3030
        %v3102 = vmul.f32 %v3101, %v3030
        %v3103 = vmul.f32 %v3102, %v3101
        %v3104 = vmul.f32 0.5, %v3103
        %v3105 = vsub.f32 1.5, %v3104
        %v3106 = vmul.f32 %v3101, %v3105
        %vm3107 = vweird.f32 %v3030
        %vm3108 = vweird.f32 %v3101
        %vm3109 = vmor %vm3107, %vm3108
        %v3110 = vsel %vm3109, %v3101, %v3106
        %v3111 = vmul.f32 %v2983, %v3040
        %v3112 = vmul.f32 %v2984, %v3050
        %v3113 = vmul.f32 %v2985, %v3060
        %v3114 = vmul.f32 %v2986, %v3070
        %v3115 = vmul.f32 %v2987, %v3080
        %v3116 = vmul.f32 %v2988, %v3090
        %v3117 = vmul.f32 %v2989, %v3100
        %v3118 = vmul.f32 %v2990, %v3110
        %v3120 = vperm.slane %v2957, 0
        %v3122 = vmul.f32 %v3111, %v3120
        %v3123 = vmul.f32 %v3112, %v3120
        %v3124 = vmul.f32 %v3113, %v3120
        %v3125 = vmul.f32 %v3114, %v3120
        %v3126 = vmul.f32 %v3115, %v3120
        %v3127 = vmul.f32 %v3116, %v3120
        %v3128 = vmul.f32 %v3117, %v3120
        %v3129 = vmul.f32 %v3118, %v3120
        %v3131 = vperm.slane %v2958, 0
        %v3133 = vadd.f32 %v3122, %v3131
        %v3134 = vadd.f32 %v3123, %v3131
        %v3135 = vadd.f32 %v3124, %v3131
        %v3136 = vadd.f32 %v3125, %v3131
        %v3137 = vadd.f32 %v3126, %v3131
        %v3138 = vadd.f32 %v3127, %v3131
        %v3139 = vadd.f32 %v3128, %v3131
        %v3140 = vadd.f32 %v3129, %v3131
        %v3141 = vld [vmem:[%s654] sm:$0xff]
        %v3142 = vld [vmem:[%s654 + $0x8] sm:$0xff]
        %v3143 = vld [vmem:[%s654 + $0x10] sm:$0xff]
        %v3144 = vld [vmem:[%s654 + $0x18] sm:$0xff]
        %v3145 = vld [vmem:[%s654 + $0x20] sm:$0xff]
        %v3146 = vld [vmem:[%s654 + $0x28] sm:$0xff]
        %v3147 = vld [vmem:[%s654 + $0x30] sm:$0xff]
        %v3148 = vld [vmem:[%s654 + $0x38] sm:$0xff]
        %v3149 = vld [vmem:[%s654 + $0x40] sm:$0xff]
        %v3150 = vld [vmem:[%s654 + $0x48] sm:$0xff]
        %v3151 = vld [vmem:[%s654 + $0x50] sm:$0xff]
        %v3152 = vld [vmem:[%s654 + $0x58] sm:$0xff]
        %v3153 = vld [vmem:[%s654 + $0x60] sm:$0xff]
        %v3154 = vld [vmem:[%s654 + $0x68] sm:$0xff]
        %v3155 = vld [vmem:[%s654 + $0x70] sm:$0xff]
        %v3156 = vld [vmem:[%s654 + $0x78] sm:$0xff]
        %v3157 = vld [vmem:[%s654 + $0x80] sm:$0xff]
        %v3158 = vld [vmem:[%s654 + $0x88] sm:$0xff]
        %v3159 = vld [vmem:[%s654 + $0x90] sm:$0xff]
        %v3160 = vld [vmem:[%s654 + $0x98] sm:$0xff]
        %v3161 = vld [vmem:[%s654 + $0xa0] sm:$0xff]
        %v3162 = vld [vmem:[%s654 + $0xa8] sm:$0xff]
        %v3163 = vld [vmem:[%s654 + $0xb0] sm:$0xff]
        %v3164 = vld [vmem:[%s654 + $0xb8] sm:$0xff]
        %v3165 = vld [vmem:[%s654 + $0xc0] sm:$0xff]
        %v3166 = vld [vmem:[%s654 + $0xc8] sm:$0xff]
        %v3167 = vld [vmem:[%s654 + $0xd0] sm:$0xff]
        %v3168 = vld [vmem:[%s654 + $0xd8] sm:$0xff]
        %v3169 = vld [vmem:[%s654 + $0xe0] sm:$0xff]
        %v3170 = vld [vmem:[%s654 + $0xe8] sm:$0xff]
        %v3171 = vld [vmem:[%s654 + $0xf0] sm:$0xff]
        %v3172 = vld [vmem:[%s654 + $0xf8] sm:$0xff]
        %v3173 = vld [vmem:[%s786] sm:$0xf]
        %v3174 = vpack.c.bf16 %v3134, %v3133
        %v3175 = vpack.c.bf16 %v3136, %v3135
        %v3176 = vpack.c.bf16 %v3138, %v3137
        %v3177 = vpack.c.bf16 %v3140, %v3139
        %v3179 = vperm.slane %v3173, 0
        %v3180 = vperm.slane %v3173, 1
        %v3181 = vperm.slane %v3173, 2
        %v3182 = vperm.slane %v3173, 3
        %v3219 = vunpack.c.l.b16 %v3141
        %v3220 = vunpack.c.h.b16 %v3141
        %v3221 = vunpack.c.l.b16 %v3142
        %v3222 = vunpack.c.h.b16 %v3142
        %v3223 = vunpack.c.l.b16 %v3143
        %v3224 = vunpack.c.h.b16 %v3143
        %v3225 = vunpack.c.l.b16 %v3144
        %v3226 = vunpack.c.h.b16 %v3144
        %v3227 = vunpack.c.l.b16 %v3145
        %v3228 = vunpack.c.h.b16 %v3145
        %v3229 = vunpack.c.l.b16 %v3146
        %v3230 = vunpack.c.h.b16 %v3146
        %v3231 = vunpack.c.l.b16 %v3147
        %v3232 = vunpack.c.h.b16 %v3147
        %v3233 = vunpack.c.l.b16 %v3148
        %v3234 = vunpack.c.h.b16 %v3148
        %v3235 = vunpack.c.l.b16 %v3149
        %v3236 = vunpack.c.h.b16 %v3149
        %v3237 = vunpack.c.l.b16 %v3150
        %v3238 = vunpack.c.h.b16 %v3150
        %v3239 = vunpack.c.l.b16 %v3151
        %v3240 = vunpack.c.h.b16 %v3151
        %v3241 = vunpack.c.l.b16 %v3152
        %v3242 = vunpack.c.h.b16 %v3152
        %v3243 = vunpack.c.l.b16 %v3153
        %v3244 = vunpack.c.h.b16 %v3153
        %v3245 = vunpack.c.l.b16 %v3154
        %v3246 = vunpack.c.h.b16 %v3154
        %v3247 = vunpack.c.l.b16 %v3155
        %v3248 = vunpack.c.h.b16 %v3155
        %v3249 = vunpack.c.l.b16 %v3156
        %v3250 = vunpack.c.h.b16 %v3156
        %v3251 = vunpack.c.l.b16 %v3157
        %v3252 = vunpack.c.h.b16 %v3157
        %v3253 = vunpack.c.l.b16 %v3158
        %v3254 = vunpack.c.h.b16 %v3158
        %v3255 = vunpack.c.l.b16 %v3159
        %v3256 = vunpack.c.h.b16 %v3159
        %v3257 = vunpack.c.l.b16 %v3160
        %v3258 = vunpack.c.h.b16 %v3160
        %v3259 = vunpack.c.l.b16 %v3161
        %v3260 = vunpack.c.h.b16 %v3161
        %v3261 = vunpack.c.l.b16 %v3162
        %v3262 = vunpack.c.h.b16 %v3162
        %v3263 = vunpack.c.l.b16 %v3163
        %v3264 = vunpack.c.h.b16 %v3163
        %v3265 = vunpack.c.l.b16 %v3164
        %v3266 = vunpack.c.h.b16 %v3164
        %v3267 = vunpack.c.l.b16 %v3165
        %v3268 = vunpack.c.h.b16 %v3165
        %v3269 = vunpack.c.l.b16 %v3166
        %v3270 = vunpack.c.h.b16 %v3166
        %v3271 = vunpack.c.l.b16 %v3167
        %v3272 = vunpack.c.h.b16 %v3167
        %v3273 = vunpack.c.l.b16 %v3168
        %v3274 = vunpack.c.h.b16 %v3168
        %v3275 = vunpack.c.l.b16 %v3169
        %v3276 = vunpack.c.h.b16 %v3169
        %v3277 = vunpack.c.l.b16 %v3170
        %v3278 = vunpack.c.h.b16 %v3170
        %v3279 = vunpack.c.l.b16 %v3171
        %v3280 = vunpack.c.h.b16 %v3171
        %v3281 = vunpack.c.l.b16 %v3172
        %v3282 = vunpack.c.h.b16 %v3172
        %v3283 = vpack.c.b16 %v3223, %v3219
        %v3284 = vpack.c.b16 %v3224, %v3220
        %v3285 = vpack.c.b16 %v3225, %v3221
        %v3286 = vpack.c.b16 %v3226, %v3222
        %v3287 = vpack.c.b16 %v3231, %v3227
        %v3288 = vpack.c.b16 %v3232, %v3228
        %v3289 = vpack.c.b16 %v3233, %v3229
        %v3290 = vpack.c.b16 %v3234, %v3230
        %v3291 = vpack.c.b16 %v3239, %v3235
        %v3292 = vpack.c.b16 %v3240, %v3236
        %v3293 = vpack.c.b16 %v3241, %v3237
        %v3294 = vpack.c.b16 %v3242, %v3238
        %v3295 = vpack.c.b16 %v3247, %v3243
        %v3296 = vpack.c.b16 %v3248, %v3244
        %v3297 = vpack.c.b16 %v3249, %v3245
        %v3298 = vpack.c.b16 %v3250, %v3246
        %v3299 = vpack.c.b16 %v3255, %v3251
        %v3300 = vpack.c.b16 %v3256, %v3252
        %v3301 = vpack.c.b16 %v3257, %v3253
        %v3302 = vpack.c.b16 %v3258, %v3254
        %v3303 = vpack.c.b16 %v3263, %v3259
        %v3304 = vpack.c.b16 %v3264, %v3260
        %v3305 = vpack.c.b16 %v3265, %v3261
        %v3306 = vpack.c.b16 %v3266, %v3262
        %v3307 = vpack.c.b16 %v3271, %v3267
        %v3308 = vpack.c.b16 %v3272, %v3268
        %v3309 = vpack.c.b16 %v3273, %v3269
        %v3310 = vpack.c.b16 %v3274, %v3270
        %v3311 = vpack.c.b16 %v3279, %v3275
        %v3312 = vpack.c.b16 %v3280, %v3276
        %v3313 = vpack.c.b16 %v3281, %v3277
        %v3314 = vpack.c.b16 %v3282, %v3278
        %3347 = vmatpush.bf16.msra.mxu0 %v3311
        %3348 = vmatpush.bf16.msra.mxu0 %v3307
        %3349 = vmatpush.bf16.msra.mxu0 %v3303
        %3350 = vmatpush.bf16.msra.mxu0 %v3299
        %3351 = vmatpush.bf16.msra.mxu0 %v3295
        %3352 = vmatpush.bf16.msra.mxu0 %v3291
        %3353 = vmatpush.bf16.msra.mxu0 %v3287
        %3354 = vmatpush.bf16.msra.mxu0 %v3283
        %3355 = vmatmul.bf16.gmra.mxu0 %v3174
        %v3356 = vpop.f32.mrf.mxu0
        %v3357 = vadd.f32 %v3179, %v3356
        %v3358 = vpop.f32.mrf.mxu0
        %v3359 = vadd.f32 %v3179, %v3358
        %3360 = vmatmul.bf16.gmra.mxu0 %v3175
        %v3361 = vpop.f32.mrf.mxu0
        %v3362 = vadd.f32 %v3179, %v3361
        %v3363 = vpop.f32.mrf.mxu0
        %v3364 = vadd.f32 %v3179, %v3363
        %3365 = vmatmul.bf16.gmra.mxu0 %v3176
        %v3366 = vpop.f32.mrf.mxu0
        %v3367 = vadd.f32 %v3179, %v3366
        %v3368 = vpop.f32.mrf.mxu0
        %v3369 = vadd.f32 %v3179, %v3368
        %3370 = vmatmul.bf16.gmra.mxu0 %v3177
        %v3371 = vpop.f32.mrf.mxu0
        %v3372 = vadd.f32 %v3179, %v3371
        %v3373 = vpop.f32.mrf.mxu0
        %v3374 = vadd.f32 %v3179, %v3373
        %3375 = vdwg.mxu0
        %3376 = vmatpush.bf16.msra.mxu0 %v3312
        %3377 = vmatpush.bf16.msra.mxu0 %v3308
        %3378 = vmatpush.bf16.msra.mxu0 %v3304
        %3379 = vmatpush.bf16.msra.mxu0 %v3300
        %3380 = vmatpush.bf16.msra.mxu0 %v3296
        %3381 = vmatpush.bf16.msra.mxu0 %v3292
        %3382 = vmatpush.bf16.msra.mxu0 %v3288
        %3383 = vmatpush.bf16.msra.mxu0 %v3284
        %3384 = vmatmul.bf16.gmra.mxu0 %v3174
        %v3385 = vpop.f32.mrf.mxu0
        %v3386 = vadd.f32 %v3180, %v3385
        %v3387 = vpop.f32.mrf.mxu0
        %v3388 = vadd.f32 %v3180, %v3387
        %3389 = vmatmul.bf16.gmra.mxu0 %v3175
        %v3390 = vpop.f32.mrf.mxu0
        %v3391 = vadd.f32 %v3180, %v3390
        %v3392 = vpop.f32.mrf.mxu0
        %v3393 = vadd.f32 %v3180, %v3392
        %3394 = vmatmul.bf16.gmra.mxu0 %v3176
        %v3395 = vpop.f32.mrf.mxu0
        %v3396 = vadd.f32 %v3180, %v3395
        %v3397 = vpop.f32.mrf.mxu0
        %v3398 = vadd.f32 %v3180, %v3397
        %3399 = vmatmul.bf16.gmra.mxu0 %v3177
        %v3400 = vpop.f32.mrf.mxu0
        %v3401 = vadd.f32 %v3180, %v3400
        %v3402 = vpop.f32.mrf.mxu0
        %v3403 = vadd.f32 %v3180, %v3402
        %3404 = vdwg.mxu0
        %3405 = vmatpush.bf16.msra.mxu0 %v3313
        %3406 = vmatpush.bf16.msra.mxu0 %v3309
        %3407 = vmatpush.bf16.msra.mxu0 %v3305
        %3408 = vmatpush.bf16.msra.mxu0 %v3301
        %3409 = vmatpush.bf16.msra.mxu0 %v3297
        %3410 = vmatpush.bf16.msra.mxu0 %v3293
        %3411 = vmatpush.bf16.msra.mxu0 %v3289
        %3412 = vmatpush.bf16.msra.mxu0 %v3285
        %3413 = vmatmul.bf16.gmra.mxu0 %v3174
        %v3414 = vpop.f32.mrf.mxu0
        %v3415 = vadd.f32 %v3181, %v3414
        %v3416 = vpop.f32.mrf.mxu0
        %v3417 = vadd.f32 %v3181, %v3416
        %3418 = vmatmul.bf16.gmra.mxu0 %v3175
        %v3419 = vpop.f32.mrf.mxu0
        %v3420 = vadd.f32 %v3181, %v3419
        %v3421 = vpop.f32.mrf.mxu0
        %v3422 = vadd.f32 %v3181, %v3421
        %3423 = vmatmul.bf16.gmra.mxu0 %v3176
        %v3424 = vpop.f32.mrf.mxu0
        %v3425 = vadd.f32 %v3181, %v3424
        %v3426 = vpop.f32.mrf.mxu0
        %v3427 = vadd.f32 %v3181, %v3426
        %3428 = vmatmul.bf16.gmra.mxu0 %v3177
        %v3429 = vpop.f32.mrf.mxu0
        %v3430 = vadd.f32 %v3181, %v3429
        %v3431 = vpop.f32.mrf.mxu0
        %v3432 = vadd.f32 %v3181, %v3431
        %3433 = vdwg.mxu0
        %3434 = vmatpush.bf16.msra.mxu0 %v3314
        %3435 = vmatpush.bf16.msra.mxu0 %v3310
        %3436 = vmatpush.bf16.msra.mxu0 %v3306
        %3437 = vmatpush.bf16.msra.mxu0 %v3302
        %3438 = vmatpush.bf16.msra.mxu0 %v3298
        %3439 = vmatpush.bf16.msra.mxu0 %v3294
        %3440 = vmatpush.bf16.msra.mxu0 %v3290
        %3441 = vmatpush.bf16.msra.mxu0 %v3286
        %3442 = vmatmul.bf16.gmra.mxu0 %v3174
        %v3443 = vpop.f32.mrf.mxu0
        %v3444 = vadd.f32 %v3182, %v3443
        %v3445 = vpop.f32.mrf.mxu0
        %v3446 = vadd.f32 %v3182, %v3445
        %3447 = vmatmul.bf16.gmra.mxu0 %v3175
        %v3448 = vpop.f32.mrf.mxu0
        %v3449 = vadd.f32 %v3182, %v3448
        %v3450 = vpop.f32.mrf.mxu0
        %v3451 = vadd.f32 %v3182, %v3450
        %3452 = vmatmul.bf16.gmra.mxu0 %v3176
        %v3453 = vpop.f32.mrf.mxu0
        %v3454 = vadd.f32 %v3182, %v3453
        %v3455 = vpop.f32.mrf.mxu0
        %v3456 = vadd.f32 %v3182, %v3455
        %3457 = vmatmul.bf16.gmra.mxu0 %v3177
        %v3458 = vpop.f32.mrf.mxu0
        %v3459 = vadd.f32 %v3182, %v3458
        %v3460 = vpop.f32.mrf.mxu0
        %v3461 = vadd.f32 %v3182, %v3460
        %3462 = vdwg.mxu0
        %v3463 = vmul.f32 %v3357, %v3357
        %v3464 = vmul.f32 %v3386, %v3386
        %v3465 = vmul.f32 %v3415, %v3415
        %v3466 = vmul.f32 %v3444, %v3444
        %v3467 = vmul.f32 %v3359, %v3359
        %v3468 = vmul.f32 %v3388, %v3388
        %v3469 = vmul.f32 %v3417, %v3417
        %v3470 = vmul.f32 %v3446, %v3446
        %v3471 = vmul.f32 %v3362, %v3362
        %v3472 = vmul.f32 %v3391, %v3391
        %v3473 = vmul.f32 %v3420, %v3420
        %v3474 = vmul.f32 %v3449, %v3449
        %v3475 = vmul.f32 %v3364, %v3364
        %v3476 = vmul.f32 %v3393, %v3393
        %v3477 = vmul.f32 %v3422, %v3422
        %v3478 = vmul.f32 %v3451, %v3451
        %v3479 = vmul.f32 %v3367, %v3367
        %v3480 = vmul.f32 %v3396, %v3396
        %v3481 = vmul.f32 %v3425, %v3425
        %v3482 = vmul.f32 %v3454, %v3454
        %v3483 = vmul.f32 %v3369, %v3369
        %v3484 = vmul.f32 %v3398, %v3398
        %v3485 = vmul.f32 %v3427, %v3427
        %v3486 = vmul.f32 %v3456, %v3456
        %v3487 = vmul.f32 %v3372, %v3372
        %v3488 = vmul.f32 %v3401, %v3401
        %v3489 = vmul.f32 %v3430, %v3430
        %v3490 = vmul.f32 %v3459, %v3459
        %v3491 = vmul.f32 %v3374, %v3374
        %v3492 = vmul.f32 %v3403, %v3403
        %v3493 = vmul.f32 %v3432, %v3432
        %v3494 = vmul.f32 %v3461, %v3461
        %v3495 = vmul.f32 %v3357, %v3463
        %v3496 = vmul.f32 %v3386, %v3464
        %v3497 = vmul.f32 %v3415, %v3465
        %v3498 = vmul.f32 %v3444, %v3466
        %v3499 = vmul.f32 %v3359, %v3467
        %v3500 = vmul.f32 %v3388, %v3468
        %v3501 = vmul.f32 %v3417, %v3469
        %v3502 = vmul.f32 %v3446, %v3470
        %v3503 = vmul.f32 %v3362, %v3471
        %v3504 = vmul.f32 %v3391, %v3472
        %v3505 = vmul.f32 %v3420, %v3473
        %v3506 = vmul.f32 %v3449, %v3474
        %v3507 = vmul.f32 %v3364, %v3475
        %v3508 = vmul.f32 %v3393, %v3476
        %v3509 = vmul.f32 %v3422, %v3477
        %v3510 = vmul.f32 %v3451, %v3478
        %v3511 = vmul.f32 %v3367, %v3479
        %v3512 = vmul.f32 %v3396, %v3480
        %v3513 = vmul.f32 %v3425, %v3481
        %v3514 = vmul.f32 %v3454, %v3482
        %v3515 = vmul.f32 %v3369, %v3483
        %v3516 = vmul.f32 %v3398, %v3484
        %v3517 = vmul.f32 %v3427, %v3485
        %v3518 = vmul.f32 %v3456, %v3486
        %v3519 = vmul.f32 %v3372, %v3487
        %v3520 = vmul.f32 %v3401, %v3488
        %v3521 = vmul.f32 %v3430, %v3489
        %v3522 = vmul.f32 %v3459, %v3490
        %v3523 = vmul.f32 %v3374, %v3491
        %v3524 = vmul.f32 %v3403, %v3492
        %v3525 = vmul.f32 %v3432, %v3493
        %v3526 = vmul.f32 %v3461, %v3494
        %v3527 = vmul.f32 %v3495, 0.044715
        %v3528 = vmul.f32 %v3496, 0.044715
        %v3529 = vmul.f32 %v3497, 0.044715
        %v3530 = vmul.f32 %v3498, 0.044715
        %v3531 = vmul.f32 %v3499, 0.044715
        %v3532 = vmul.f32 %v3500, 0.044715
        %v3533 = vmul.f32 %v3501, 0.044715
        %v3534 = vmul.f32 %v3502, 0.044715
        %v3535 = vmul.f32 %v3503, 0.044715
        %v3536 = vmul.f32 %v3504, 0.044715
        %v3537 = vmul.f32 %v3505, 0.044715
        %v3538 = vmul.f32 %v3506, 0.044715
        %v3539 = vmul.f32 %v3507, 0.044715
        %v3540 = vmul.f32 %v3508, 0.044715
        %v3541 = vmul.f32 %v3509, 0.044715
        %v3542 = vmul.f32 %v3510, 0.044715
        %v3543 = vmul.f32 %v3511, 0.044715
        %v3544 = vmul.f32 %v3512, 0.044715
        %v3545 = vmul.f32 %v3513, 0.044715
        %v3546 = vmul.f32 %v3514, 0.044715
        %v3547 = vmul.f32 %v3515, 0.044715
        %v3548 = vmul.f32 %v3516, 0.044715
        %v3549 = vmul.f32 %v3517, 0.044715
        %v3550 = vmul.f32 %v3518, 0.044715
        %v3551 = vmul.f32 %v3519, 0.044715
        %v3552 = vmul.f32 %v3520, 0.044715
        %v3553 = vmul.f32 %v3521, 0.044715
        %v3554 = vmul.f32 %v3522, 0.044715
        %v3555 = vmul.f32 %v3523, 0.044715
        %v3556 = vmul.f32 %v3524, 0.044715
        %v3557 = vmul.f32 %v3525, 0.044715
        %v3558 = vmul.f32 %v3526, 0.044715
        %v3559 = vadd.f32 %v3357, %v3527
        %v3560 = vadd.f32 %v3386, %v3528
        %v3561 = vadd.f32 %v3415, %v3529
        %v3562 = vadd.f32 %v3444, %v3530
        %v3563 = vadd.f32 %v3359, %v3531
        %v3564 = vadd.f32 %v3388, %v3532
        %v3565 = vadd.f32 %v3417, %v3533
        %v3566 = vadd.f32 %v3446, %v3534
        %v3567 = vadd.f32 %v3362, %v3535
        %v3568 = vadd.f32 %v3391, %v3536
        %v3569 = vadd.f32 %v3420, %v3537
        %v3570 = vadd.f32 %v3449, %v3538
        %v3571 = vadd.f32 %v3364, %v3539
        %v3572 = vadd.f32 %v3393, %v3540
        %v3573 = vadd.f32 %v3422, %v3541
        %v3574 = vadd.f32 %v3451, %v3542
        %v3575 = vadd.f32 %v3367, %v3543
        %v3576 = vadd.f32 %v3396, %v3544
        %v3577 = vadd.f32 %v3425, %v3545
        %v3578 = vadd.f32 %v3454, %v3546
        %v3579 = vadd.f32 %v3369, %v3547
        %v3580 = vadd.f32 %v3398, %v3548
        %v3581 = vadd.f32 %v3427, %v3549
        %v3582 = vadd.f32 %v3456, %v3550
        %v3583 = vadd.f32 %v3372, %v3551
        %v3584 = vadd.f32 %v3401, %v3552
        %v3585 = vadd.f32 %v3430, %v3553
        %v3586 = vadd.f32 %v3459, %v3554
        %v3587 = vadd.f32 %v3374, %v3555
        %v3588 = vadd.f32 %v3403, %v3556
        %v3589 = vadd.f32 %v3432, %v3557
        %v3590 = vadd.f32 %v3461, %v3558
        %v3591 = vmul.f32 %v3559, 0.7978846
        %v3592 = vmul.f32 %v3560, 0.7978846
        %v3593 = vmul.f32 %v3561, 0.7978846
        %v3594 = vmul.f32 %v3562, 0.7978846
        %v3595 = vmul.f32 %v3563, 0.7978846
        %v3596 = vmul.f32 %v3564, 0.7978846
        %v3597 = vmul.f32 %v3565, 0.7978846
        %v3598 = vmul.f32 %v3566, 0.7978846
        %v3599 = vmul.f32 %v3567, 0.7978846
        %v3600 = vmul.f32 %v3568, 0.7978846
        %v3601 = vmul.f32 %v3569, 0.7978846
        %v3602 = vmul.f32 %v3570, 0.7978846
        %v3603 = vmul.f32 %v3571, 0.7978846
        %v3604 = vmul.f32 %v3572, 0.7978846
        %v3605 = vmul.f32 %v3573, 0.7978846
        %v3606 = vmul.f32 %v3574, 0.7978846
        %v3607 = vmul.f32 %v3575, 0.7978846
        %v3608 = vmul.f32 %v3576, 0.7978846
        %v3609 = vmul.f32 %v3577, 0.7978846
        %v3610 = vmul.f32 %v3578, 0.7978846
        %v3611 = vmul.f32 %v3579, 0.7978846
        %v3612 = vmul.f32 %v3580, 0.7978846
        %v3613 = vmul.f32 %v3581, 0.7978846
        %v3614 = vmul.f32 %v3582, 0.7978846
        %v3615 = vmul.f32 %v3583, 0.7978846
        %v3616 = vmul.f32 %v3584, 0.7978846
        %v3617 = vmul.f32 %v3585, 0.7978846
        %v3618 = vmul.f32 %v3586, 0.7978846
        %v3619 = vmul.f32 %v3587, 0.7978846
        %v3620 = vmul.f32 %v3588, 0.7978846
        %v3621 = vmul.f32 %v3589, 0.7978846
        %v3622 = vmul.f32 %v3590, 0.7978846
        %v3623 = vtanh.pop %v3591
        %v3624 = vtanh.pop %v3592
        %v3625 = vtanh.pop %v3593
        %v3626 = vtanh.pop %v3594
        %v3627 = vtanh.pop %v3595
        %v3628 = vtanh.pop %v3596
        %v3629 = vtanh.pop %v3597
        %v3630 = vtanh.pop %v3598
        %v3631 = vtanh.pop %v3599
        %v3632 = vtanh.pop %v3600
        %v3633 = vtanh.pop %v3601
        %v3634 = vtanh.pop %v3602
        %v3635 = vtanh.pop %v3603
        %v3636 = vtanh.pop %v3604
        %v3637 = vtanh.pop %v3605
        %v3638 = vtanh.pop %v3606
        %v3639 = vtanh.pop %v3607
        %v3640 = vtanh.pop %v3608
        %v3641 = vtanh.pop %v3609
        %v3642 = vtanh.pop %v3610
        %v3643 = vtanh.pop %v3611
        %v3644 = vtanh.pop %v3612
        %v3645 = vtanh.pop %v3613
        %v3646 = vtanh.pop %v3614
        %v3647 = vtanh.pop %v3615
        %v3648 = vtanh.pop %v3616
        %v3649 = vtanh.pop %v3617
        %v3650 = vtanh.pop %v3618
        %v3651 = vtanh.pop %v3619
        %v3652 = vtanh.pop %v3620
        %v3653 = vtanh.pop %v3621
        %v3654 = vtanh.pop %v3622
        %v3655 = vadd.f32 %v3623, 1.0
        %v3656 = vadd.f32 %v3624, 1.0
        %v3657 = vadd.f32 %v3625, 1.0
        %v3658 = vadd.f32 %v3626, 1.0
        %v3659 = vadd.f32 %v3627, 1.0
        %v3660 = vadd.f32 %v3628, 1.0
        %v3661 = vadd.f32 %v3629, 1.0
        %v3662 = vadd.f32 %v3630, 1.0
        %v3663 = vadd.f32 %v3631, 1.0
        %v3664 = vadd.f32 %v3632, 1.0
        %v3665 = vadd.f32 %v3633, 1.0
        %v3666 = vadd.f32 %v3634, 1.0
        %v3667 = vadd.f32 %v3635, 1.0
        %v3668 = vadd.f32 %v3636, 1.0
        %v3669 = vadd.f32 %v3637, 1.0
        %v3670 = vadd.f32 %v3638, 1.0
        %v3671 = vadd.f32 %v3639, 1.0
        %v3672 = vadd.f32 %v3640, 1.0
        %v3673 = vadd.f32 %v3641, 1.0
        %v3674 = vadd.f32 %v3642, 1.0
        %v3675 = vadd.f32 %v3643, 1.0
        %v3676 = vadd.f32 %v3644, 1.0
        %v3677 = vadd.f32 %v3645, 1.0
        %v3678 = vadd.f32 %v3646, 1.0
        %v3679 = vadd.f32 %v3647, 1.0
        %v3680 = vadd.f32 %v3648, 1.0
        %v3681 = vadd.f32 %v3649, 1.0
        %v3682 = vadd.f32 %v3650, 1.0
        %v3683 = vadd.f32 %v3651, 1.0
        %v3684 = vadd.f32 %v3652, 1.0
        %v3685 = vadd.f32 %v3653, 1.0
        %v3686 = vadd.f32 %v3654, 1.0
        %v3687 = vmul.f32 %v3655, 0.5
        %v3688 = vmul.f32 %v3656, 0.5
        %v3689 = vmul.f32 %v3657, 0.5
        %v3690 = vmul.f32 %v3658, 0.5
        %v3691 = vmul.f32 %v3659, 0.5
        %v3692 = vmul.f32 %v3660, 0.5
        %v3693 = vmul.f32 %v3661, 0.5
        %v3694 = vmul.f32 %v3662, 0.5
        %v3695 = vmul.f32 %v3663, 0.5
        %v3696 = vmul.f32 %v3664, 0.5
        %v3697 = vmul.f32 %v3665, 0.5
        %v3698 = vmul.f32 %v3666, 0.5
        %v3699 = vmul.f32 %v3667, 0.5
        %v3700 = vmul.f32 %v3668, 0.5
        %v3701 = vmul.f32 %v3669, 0.5
        %v3702 = vmul.f32 %v3670, 0.5
        %v3703 = vmul.f32 %v3671, 0.5
        %v3704 = vmul.f32 %v3672, 0.5
        %v3705 = vmul.f32 %v3673, 0.5
        %v3706 = vmul.f32 %v3674, 0.5
        %v3707 = vmul.f32 %v3675, 0.5
        %v3708 = vmul.f32 %v3676, 0.5
        %v3709 = vmul.f32 %v3677, 0.5
        %v3710 = vmul.f32 %v3678, 0.5
        %v3711 = vmul.f32 %v3679, 0.5
        %v3712 = vmul.f32 %v3680, 0.5
        %v3713 = vmul.f32 %v3681, 0.5
        %v3714 = vmul.f32 %v3682, 0.5
        %v3715 = vmul.f32 %v3683, 0.5
        %v3716 = vmul.f32 %v3684, 0.5
        %v3717 = vmul.f32 %v3685, 0.5
        %v3718 = vmul.f32 %v3686, 0.5
        %v3719 = vmul.f32 %v3357, %v3687
        %v3720 = vmul.f32 %v3386, %v3688
        %v3721 = vmul.f32 %v3415, %v3689
        %v3722 = vmul.f32 %v3444, %v3690
        %v3723 = vmul.f32 %v3359, %v3691
        %v3724 = vmul.f32 %v3388, %v3692
        %v3725 = vmul.f32 %v3417, %v3693
        %v3726 = vmul.f32 %v3446, %v3694
        %v3727 = vmul.f32 %v3362, %v3695
        %v3728 = vmul.f32 %v3391, %v3696
        %v3729 = vmul.f32 %v3420, %v3697
        %v3730 = vmul.f32 %v3449, %v3698
        %v3731 = vmul.f32 %v3364, %v3699
        %v3732 = vmul.f32 %v3393, %v3700
        %v3733 = vmul.f32 %v3422, %v3701
        %v3734 = vmul.f32 %v3451, %v3702
        %v3735 = vmul.f32 %v3367, %v3703
        %v3736 = vmul.f32 %v3396, %v3704
        %v3737 = vmul.f32 %v3425, %v3705
        %v3738 = vmul.f32 %v3454, %v3706
        %v3739 = vmul.f32 %v3369, %v3707
        %v3740 = vmul.f32 %v3398, %v3708
        %v3741 = vmul.f32 %v3427, %v3709
        %v3742 = vmul.f32 %v3456, %v3710
        %v3743 = vmul.f32 %v3372, %v3711
        %v3744 = vmul.f32 %v3401, %v3712
        %v3745 = vmul.f32 %v3430, %v3713
        %v3746 = vmul.f32 %v3459, %v3714
        %v3747 = vmul.f32 %v3374, %v3715
        %v3748 = vmul.f32 %v3403, %v3716
        %v3749 = vmul.f32 %v3432, %v3717
        %v3750 = vmul.f32 %v3461, %v3718
        %v3751 = vld [vmem:[%s664] sm:$0xf]
        %v3752 = vld [vmem:[%s664 + $0x4] sm:$0xf]
        %v3753 = vld [vmem:[%s664 + $0x8] sm:$0xf]
        %v3754 = vld [vmem:[%s664 + $0xc] sm:$0xf]
        %v3755 = vld [vmem:[%s664 + $0x10] sm:$0xf]
        %v3756 = vld [vmem:[%s664 + $0x14] sm:$0xf]
        %v3757 = vld [vmem:[%s664 + $0x18] sm:$0xf]
        %v3758 = vld [vmem:[%s664 + $0x1c] sm:$0xf]
        %v3759 = vld [vmem:[%s664 + $0x20] sm:$0xf]
        %v3760 = vld [vmem:[%s664 + $0x24] sm:$0xf]
        %v3761 = vld [vmem:[%s664 + $0x28] sm:$0xf]
        %v3762 = vld [vmem:[%s664 + $0x2c] sm:$0xf]
        %v3763 = vld [vmem:[%s664 + $0x30] sm:$0xf]
        %v3764 = vld [vmem:[%s664 + $0x34] sm:$0xf]
        %v3765 = vld [vmem:[%s664 + $0x38] sm:$0xf]
        %v3766 = vld [vmem:[%s664 + $0x3c] sm:$0xf]
        %v3767 = vld [vmem:[%s664 + $0x40] sm:$0xf]
        %v3768 = vld [vmem:[%s664 + $0x44] sm:$0xf]
        %v3769 = vld [vmem:[%s664 + $0x48] sm:$0xf]
        %v3770 = vld [vmem:[%s664 + $0x4c] sm:$0xf]
        %v3771 = vld [vmem:[%s664 + $0x50] sm:$0xf]
        %v3772 = vld [vmem:[%s664 + $0x54] sm:$0xf]
        %v3773 = vld [vmem:[%s664 + $0x58] sm:$0xf]
        %v3774 = vld [vmem:[%s664 + $0x5c] sm:$0xf]
        %v3775 = vld [vmem:[%s664 + $0x60] sm:$0xf]
        %v3776 = vld [vmem:[%s664 + $0x64] sm:$0xf]
        %v3777 = vld [vmem:[%s664 + $0x68] sm:$0xf]
        %v3778 = vld [vmem:[%s664 + $0x6c] sm:$0xf]
        %v3779 = vld [vmem:[%s664 + $0x70] sm:$0xf]
        %v3780 = vld [vmem:[%s664 + $0x74] sm:$0xf]
        %v3781 = vld [vmem:[%s664 + $0x78] sm:$0xf]
        %v3782 = vld [vmem:[%s664 + $0x7c] sm:$0xf]
        %v3783 = vld [vmem:[%s664 + $0x80] sm:$0xf]
        %v3784 = vld [vmem:[%s664 + $0x84] sm:$0xf]
        %v3785 = vld [vmem:[%s664 + $0x88] sm:$0xf]
        %v3786 = vld [vmem:[%s664 + $0x8c] sm:$0xf]
        %v3787 = vld [vmem:[%s664 + $0x90] sm:$0xf]
        %v3788 = vld [vmem:[%s664 + $0x94] sm:$0xf]
        %v3789 = vld [vmem:[%s664 + $0x98] sm:$0xf]
        %v3790 = vld [vmem:[%s664 + $0x9c] sm:$0xf]
        %v3791 = vld [vmem:[%s664 + $0xa0] sm:$0xf]
        %v3792 = vld [vmem:[%s664 + $0xa4] sm:$0xf]
        %v3793 = vld [vmem:[%s664 + $0xa8] sm:$0xf]
        %v3794 = vld [vmem:[%s664 + $0xac] sm:$0xf]
        %v3795 = vld [vmem:[%s664 + $0xb0] sm:$0xf]
        %v3796 = vld [vmem:[%s664 + $0xb4] sm:$0xf]
        %v3797 = vld [vmem:[%s664 + $0xb8] sm:$0xf]
        %v3798 = vld [vmem:[%s664 + $0xbc] sm:$0xf]
        %v3799 = vld [vmem:[%s664 + $0xc0] sm:$0xf]
        %v3800 = vld [vmem:[%s664 + $0xc4] sm:$0xf]
        %v3801 = vld [vmem:[%s664 + $0xc8] sm:$0xf]
        %v3802 = vld [vmem:[%s664 + $0xcc] sm:$0xf]
        %v3803 = vld [vmem:[%s664 + $0xd0] sm:$0xf]
        %v3804 = vld [vmem:[%s664 + $0xd4] sm:$0xf]
        %v3805 = vld [vmem:[%s664 + $0xd8] sm:$0xf]
        %v3806 = vld [vmem:[%s664 + $0xdc] sm:$0xf]
        %v3807 = vld [vmem:[%s664 + $0xe0] sm:$0xf]
        %v3808 = vld [vmem:[%s664 + $0xe4] sm:$0xf]
        %v3809 = vld [vmem:[%s664 + $0xe8] sm:$0xf]
        %v3810 = vld [vmem:[%s664 + $0xec] sm:$0xf]
        %v3811 = vld [vmem:[%s664 + $0xf0] sm:$0xf]
        %v3812 = vld [vmem:[%s664 + $0xf4] sm:$0xf]
        %v3813 = vld [vmem:[%s664 + $0xf8] sm:$0xf]
        %v3814 = vld [vmem:[%s664 + $0xfc] sm:$0xf]
        %v3815 = vld [vmem:[%s789] sm:$0x1]
        %v3816 = vpack.c.bf16 %v3723, %v3719
        %v3817 = vpack.c.bf16 %v3724, %v3720
        %v3818 = vpack.c.bf16 %v3725, %v3721
        %v3819 = vpack.c.bf16 %v3726, %v3722
        %v3820 = vpack.c.bf16 %v3731, %v3727
        %v3821 = vpack.c.bf16 %v3732, %v3728
        %v3822 = vpack.c.bf16 %v3733, %v3729
        %v3823 = vpack.c.bf16 %v3734, %v3730
        %v3824 = vpack.c.bf16 %v3739, %v3735
        %v3825 = vpack.c.bf16 %v3740, %v3736
        %v3826 = vpack.c.bf16 %v3741, %v3737
        %v3827 = vpack.c.bf16 %v3742, %v3738
        %v3828 = vpack.c.bf16 %v3747, %v3743
        %v3829 = vpack.c.bf16 %v3748, %v3744
        %v3830 = vpack.c.bf16 %v3749, %v3745
        %v3831 = vpack.c.bf16 %v3750, %v3746
        %v3833 = vperm.slane %v3815, 0
        %v3899 = vunpack.c.l.b16 %v3751
        %v3900 = vunpack.c.l.b16 %v3752
        %v3901 = vunpack.c.l.b16 %v3753
        %v3902 = vunpack.c.l.b16 %v3754
        %v3903 = vunpack.c.l.b16 %v3755
        %v3904 = vunpack.c.l.b16 %v3756
        %v3905 = vunpack.c.l.b16 %v3757
        %v3906 = vunpack.c.l.b16 %v3758
        %v3907 = vunpack.c.l.b16 %v3759
        %v3908 = vunpack.c.l.b16 %v3760
        %v3909 = vunpack.c.l.b16 %v3761
        %v3910 = vunpack.c.l.b16 %v3762
        %v3911 = vunpack.c.l.b16 %v3763
        %v3912 = vunpack.c.l.b16 %v3764
        %v3913 = vunpack.c.l.b16 %v3765
        %v3914 = vunpack.c.l.b16 %v3766
        %v3915 = vunpack.c.l.b16 %v3767
        %v3916 = vunpack.c.l.b16 %v3768
        %v3917 = vunpack.c.l.b16 %v3769
        %v3918 = vunpack.c.l.b16 %v3770
        %v3919 = vunpack.c.l.b16 %v3771
        %v3920 = vunpack.c.l.b16 %v3772
        %v3921 = vunpack.c.l.b16 %v3773
        %v3922 = vunpack.c.l.b16 %v3774
        %v3923 = vunpack.c.l.b16 %v3775
        %v3924 = vunpack.c.l.b16 %v3776
        %v3925 = vunpack.c.l.b16 %v3777
        %v3926 = vunpack.c.l.b16 %v3778
        %v3927 = vunpack.c.l.b16 %v3779
        %v3928 = vunpack.c.l.b16 %v3780
        %v3929 = vunpack.c.l.b16 %v3781
        %v3930 = vunpack.c.l.b16 %v3782
        %v3931 = vunpack.c.l.b16 %v3783
        %v3932 = vunpack.c.l.b16 %v3784
        %v3933 = vunpack.c.l.b16 %v3785
        %v3934 = vunpack.c.l.b16 %v3786
        %v3935 = vunpack.c.l.b16 %v3787
        %v3936 = vunpack.c.l.b16 %v3788
        %v3937 = vunpack.c.l.b16 %v3789
        %v3938 = vunpack.c.l.b16 %v3790
        %v3939 = vunpack.c.l.b16 %v3791
        %v3940 = vunpack.c.l.b16 %v3792
        %v3941 = vunpack.c.l.b16 %v3793
        %v3942 = vunpack.c.l.b16 %v3794
        %v3943 = vunpack.c.l.b16 %v3795
        %v3944 = vunpack.c.l.b16 %v3796
        %v3945 = vunpack.c.l.b16 %v3797
        %v3946 = vunpack.c.l.b16 %v3798
        %v3947 = vunpack.c.l.b16 %v3799
        %v3948 = vunpack.c.l.b16 %v3800
        %v3949 = vunpack.c.l.b16 %v3801
        %v3950 = vunpack.c.l.b16 %v3802
        %v3951 = vunpack.c.l.b16 %v3803
        %v3952 = vunpack.c.l.b16 %v3804
        %v3953 = vunpack.c.l.b16 %v3805
        %v3954 = vunpack.c.l.b16 %v3806
        %v3955 = vunpack.c.l.b16 %v3807
        %v3956 = vunpack.c.l.b16 %v3808
        %v3957 = vunpack.c.l.b16 %v3809
        %v3958 = vunpack.c.l.b16 %v3810
        %v3959 = vunpack.c.l.b16 %v3811
        %v3960 = vunpack.c.l.b16 %v3812
        %v3961 = vunpack.c.l.b16 %v3813
        %v3962 = vunpack.c.l.b16 %v3814
        %v3963 = vpack.c.b16 %v3900, %v3899
        %v3964 = vpack.c.b16 %v3902, %v3901
        %v3965 = vpack.c.b16 %v3904, %v3903
        %v3966 = vpack.c.b16 %v3906, %v3905
        %v3967 = vpack.c.b16 %v3908, %v3907
        %v3968 = vpack.c.b16 %v3910, %v3909
        %v3969 = vpack.c.b16 %v3912, %v3911
        %v3970 = vpack.c.b16 %v3914, %v3913
        %v3971 = vpack.c.b16 %v3916, %v3915
        %v3972 = vpack.c.b16 %v3918, %v3917
        %v3973 = vpack.c.b16 %v3920, %v3919
        %v3974 = vpack.c.b16 %v3922, %v3921
        %v3975 = vpack.c.b16 %v3924, %v3923
        %v3976 = vpack.c.b16 %v3926, %v3925
        %v3977 = vpack.c.b16 %v3928, %v3927
        %v3978 = vpack.c.b16 %v3930, %v3929
        %v3979 = vpack.c.b16 %v3932, %v3931
        %v3980 = vpack.c.b16 %v3934, %v3933
        %v3981 = vpack.c.b16 %v3936, %v3935
        %v3982 = vpack.c.b16 %v3938, %v3937
        %v3983 = vpack.c.b16 %v3940, %v3939
        %v3984 = vpack.c.b16 %v3942, %v3941
        %v3985 = vpack.c.b16 %v3944, %v3943
        %v3986 = vpack.c.b16 %v3946, %v3945
        %v3987 = vpack.c.b16 %v3948, %v3947
        %v3988 = vpack.c.b16 %v3950, %v3949
        %v3989 = vpack.c.b16 %v3952, %v3951
        %v3990 = vpack.c.b16 %v3954, %v3953
        %v3991 = vpack.c.b16 %v3956, %v3955
        %v3992 = vpack.c.b16 %v3958, %v3957
        %v3993 = vpack.c.b16 %v3960, %v3959
        %v3994 = vpack.c.b16 %v3962, %v3961
        %4027 = vmatpush.bf16.msra.mxu0 %v3970
        %4028 = vmatpush.bf16.msra.mxu0 %v3969
        %4029 = vmatpush.bf16.msra.mxu0 %v3968
        %4030 = vmatpush.bf16.msra.mxu0 %v3967
        %4031 = vmatpush.bf16.msra.mxu0 %v3966
        %4032 = vmatpush.bf16.msra.mxu0 %v3965
        %4033 = vmatpush.bf16.msra.mxu0 %v3964
        %4034 = vmatpush.bf16.msra.mxu0 %v3963
        %4035 = vmatmul.bf16.gmra.mxu0 %v3816
        %v4036 = vpop.f32.mrf.mxu0
        %v4037 = vadd.f32 %v3833, %v4036
        %v4038 = vpop.f32.mrf.mxu0
        %v4039 = vadd.f32 %v3833, %v4038
        %4040 = vmatmul.bf16.gmra.mxu0 %v3820
        %v4041 = vpop.f32.mrf.mxu0
        %v4042 = vadd.f32 %v3833, %v4041
        %v4043 = vpop.f32.mrf.mxu0
        %v4044 = vadd.f32 %v3833, %v4043
        %4045 = vmatmul.bf16.gmra.mxu0 %v3824
        %v4046 = vpop.f32.mrf.mxu0
        %v4047 = vadd.f32 %v3833, %v4046
        %v4048 = vpop.f32.mrf.mxu0
        %v4049 = vadd.f32 %v3833, %v4048
        %4050 = vmatmul.bf16.gmra.mxu0 %v3828
        %v4051 = vpop.f32.mrf.mxu0
        %v4052 = vadd.f32 %v3833, %v4051
        %v4053 = vpop.f32.mrf.mxu0
        %v4054 = vadd.f32 %v3833, %v4053
        %4055 = vdwg.mxu0
        %4056 = vmatpush.bf16.msra.mxu0 %v3978
        %4057 = vmatpush.bf16.msra.mxu0 %v3977
        %4058 = vmatpush.bf16.msra.mxu0 %v3976
        %4059 = vmatpush.bf16.msra.mxu0 %v3975
        %4060 = vmatpush.bf16.msra.mxu0 %v3974
        %4061 = vmatpush.bf16.msra.mxu0 %v3973
        %4062 = vmatpush.bf16.msra.mxu0 %v3972
        %4063 = vmatpush.bf16.msra.mxu0 %v3971
        %4064 = vmatmul.bf16.gmra.mxu0 %v3817
        %v4065 = vpop.f32.mrf.mxu0
        %v4066 = vadd.f32 %v4037, %v4065
        %v4067 = vpop.f32.mrf.mxu0
        %v4068 = vadd.f32 %v4039, %v4067
        %4069 = vmatmul.bf16.gmra.mxu0 %v3821
        %v4070 = vpop.f32.mrf.mxu0
        %v4071 = vadd.f32 %v4042, %v4070
        %v4072 = vpop.f32.mrf.mxu0
        %v4073 = vadd.f32 %v4044, %v4072
        %4074 = vmatmul.bf16.gmra.mxu0 %v3825
        %v4075 = vpop.f32.mrf.mxu0
        %v4076 = vadd.f32 %v4047, %v4075
        %v4077 = vpop.f32.mrf.mxu0
        %v4078 = vadd.f32 %v4049, %v4077
        %4079 = vmatmul.bf16.gmra.mxu0 %v3829
        %v4080 = vpop.f32.mrf.mxu0
        %v4081 = vadd.f32 %v4052, %v4080
        %v4082 = vpop.f32.mrf.mxu0
        %v4083 = vadd.f32 %v4054, %v4082
        %4084 = vdwg.mxu0
        %4085 = vmatpush.bf16.msra.mxu0 %v3986
        %4086 = vmatpush.bf16.msra.mxu0 %v3985
        %4087 = vmatpush.bf16.msra.mxu0 %v3984
        %4088 = vmatpush.bf16.msra.mxu0 %v3983
        %4089 = vmatpush.bf16.msra.mxu0 %v3982
        %4090 = vmatpush.bf16.msra.mxu0 %v3981
        %4091 = vmatpush.bf16.msra.mxu0 %v3980
        %4092 = vmatpush.bf16.msra.mxu0 %v3979
        %4093 = vmatmul.bf16.gmra.mxu0 %v3818
        %v4094 = vpop.f32.mrf.mxu0
        %v4095 = vadd.f32 %v4066, %v4094
        %v4096 = vpop.f32.mrf.mxu0
        %v4097 = vadd.f32 %v4068, %v4096
        %4098 = vmatmul.bf16.gmra.mxu0 %v3822
        %v4099 = vpop.f32.mrf.mxu0
        %v4100 = vadd.f32 %v4071, %v4099
        %v4101 = vpop.f32.mrf.mxu0
        %v4102 = vadd.f32 %v4073, %v4101
        %4103 = vmatmul.bf16.gmra.mxu0 %v3826
        %v4104 = vpop.f32.mrf.mxu0
        %v4105 = vadd.f32 %v4076, %v4104
        %v4106 = vpop.f32.mrf.mxu0
        %v4107 = vadd.f32 %v4078, %v4106
        %4108 = vmatmul.bf16.gmra.mxu0 %v3830
        %v4109 = vpop.f32.mrf.mxu0
        %v4110 = vadd.f32 %v4081, %v4109
        %v4111 = vpop.f32.mrf.mxu0
        %v4112 = vadd.f32 %v4083, %v4111
        %4113 = vdwg.mxu0
        %4114 = vmatpush.bf16.msra.mxu0 %v3994
        %4115 = vmatpush.bf16.msra.mxu0 %v3993
        %4116 = vmatpush.bf16.msra.mxu0 %v3992
        %4117 = vmatpush.bf16.msra.mxu0 %v3991
        %4118 = vmatpush.bf16.msra.mxu0 %v3990
        %4119 = vmatpush.bf16.msra.mxu0 %v3989
        %4120 = vmatpush.bf16.msra.mxu0 %v3988
        %4121 = vmatpush.bf16.msra.mxu0 %v3987
        %4122 = vmatmul.bf16.gmra.mxu0 %v3819
        %v4123 = vpop.f32.mrf.mxu0
        %v4124 = vadd.f32 %v4095, %v4123
        %v4125 = vpop.f32.mrf.mxu0
        %v4126 = vadd.f32 %v4097, %v4125
        %4127 = vmatmul.bf16.gmra.mxu0 %v3823
        %v4128 = vpop.f32.mrf.mxu0
        %v4129 = vadd.f32 %v4100, %v4128
        %v4130 = vpop.f32.mrf.mxu0
        %v4131 = vadd.f32 %v4102, %v4130
        %4132 = vmatmul.bf16.gmra.mxu0 %v3827
        %v4133 = vpop.f32.mrf.mxu0
        %v4134 = vadd.f32 %v4105, %v4133
        %v4135 = vpop.f32.mrf.mxu0
        %v4136 = vadd.f32 %v4107, %v4135
        %4137 = vmatmul.bf16.gmra.mxu0 %v3831
        %v4138 = vpop.f32.mrf.mxu0
        %v4139 = vadd.f32 %v4110, %v4138
        %v4140 = vpop.f32.mrf.mxu0
        %v4141 = vadd.f32 %v4112, %v4140
        %4142 = vdwg.mxu0
        %v4143 = vadd.f32 %v2949, %v4124
        %v4144 = vadd.f32 %v2950, %v4126
        %v4145 = vadd.f32 %v2951, %v4129
        %v4146 = vadd.f32 %v2952, %v4131
        %v4147 = vadd.f32 %v2953, %v4134
        %v4148 = vadd.f32 %v2954, %v4136
        %v4149 = vadd.f32 %v2955, %v4139
        %v4150 = vadd.f32 %v2956, %v4141
        %p4151 = scmp.eq.s32.totalorder %s43, 1
        // Predicated region
        $region101: #{tpu_custom_call.1} parent=79 // pred_check
          %p4152 = pneg %p4151
        $region102: #{tpu_custom_call.1} parent=79 // pred_check_branch
          %4154 = sbr.rel (%p4152) target = $region104
        $region103: #{tpu_custom_call.1} parent=79 // pred_region
          %v4155 = vld [vmem:[%s13] sm:$0x1]
          %v4156 = vld [vmem:[%s14] sm:$0x1]
          %4157 = vadd.xlane.f32.xlu0 %v4143
          %v4158 = vpop.xlane.xlu0 %4157
          %4159 = vadd.xlane.f32.xlu0 %v4144
          %v4160 = vpop.xlane.xlu0 %4159
          %4161 = vadd.xlane.f32.xlu0 %v4145
          %v4162 = vpop.xlane.xlu0 %4161
          %4163 = vadd.xlane.f32.xlu0 %v4146
          %v4164 = vpop.xlane.xlu0 %4163
          %4165 = vadd.xlane.f32.xlu0 %v4147
          %v4166 = vpop.xlane.xlu0 %4165
          %4167 = vadd.xlane.f32.xlu0 %v4148
          %v4168 = vpop.xlane.xlu0 %4167
          %4169 = vadd.xlane.f32.xlu0 %v4149
          %v4170 = vpop.xlane.xlu0 %4169
          %4171 = vadd.xlane.f32.xlu0 %v4150
          %v4172 = vpop.xlane.xlu0 %4171
          %v4173 = vmul.f32 %v4158, %v858
          %v4174 = vmul.f32 %v4160, %v858
          %v4175 = vmul.f32 %v4162, %v858
          %v4176 = vmul.f32 %v4164, %v858
          %v4177 = vmul.f32 %v4166, %v858
          %v4178 = vmul.f32 %v4168, %v858
          %v4179 = vmul.f32 %v4170, %v858
          %v4180 = vmul.f32 %v4172, %v858
          %v4181 = vsub.f32 %v4143, %v4173
          %v4182 = vsub.f32 %v4144, %v4174
          %v4183 = vsub.f32 %v4145, %v4175
          %v4184 = vsub.f32 %v4146, %v4176
          %v4185 = vsub.f32 %v4147, %v4177
          %v4186 = vsub.f32 %v4148, %v4178
          %v4187 = vsub.f32 %v4149, %v4179
          %v4188 = vsub.f32 %v4150, %v4180
          %v4189 = vmul.f32 %v4181, %v4181
          %v4190 = vmul.f32 %v4182, %v4182
          %v4191 = vmul.f32 %v4183, %v4183
          %v4192 = vmul.f32 %v4184, %v4184
          %v4193 = vmul.f32 %v4185, %v4185
          %v4194 = vmul.f32 %v4186, %v4186
          %v4195 = vmul.f32 %v4187, %v4187
          %v4196 = vmul.f32 %v4188, %v4188
          %4197 = vadd.xlane.f32.xlu0 %v4189
          %v4198 = vpop.xlane.xlu0 %4197
          %4199 = vadd.xlane.f32.xlu0 %v4190
          %v4200 = vpop.xlane.xlu0 %4199
          %4201 = vadd.xlane.f32.xlu0 %v4191
          %v4202 = vpop.xlane.xlu0 %4201
          %4203 = vadd.xlane.f32.xlu0 %v4192
          %v4204 = vpop.xlane.xlu0 %4203
          %4205 = vadd.xlane.f32.xlu0 %v4193
          %v4206 = vpop.xlane.xlu0 %4205
          %4207 = vadd.xlane.f32.xlu0 %v4194
          %v4208 = vpop.xlane.xlu0 %4207
          %4209 = vadd.xlane.f32.xlu0 %v4195
          %v4210 = vpop.xlane.xlu0 %4209
          %4211 = vadd.xlane.f32.xlu0 %v4196
          %v4212 = vpop.xlane.xlu0 %4211
          %v4213 = vmul.f32 %v4198, %v858
          %v4214 = vmul.f32 %v4200, %v858
          %v4215 = vmul.f32 %v4202, %v858
          %v4216 = vmul.f32 %v4204, %v858
          %v4217 = vmul.f32 %v4206, %v858
          %v4218 = vmul.f32 %v4208, %v858
          %v4219 = vmul.f32 %v4210, %v858
          %v4220 = vmul.f32 %v4212, %v858
          %v4221 = vadd.f32 %v4213, 1e-05
          %v4222 = vadd.f32 %v4214, 1e-05
          %v4223 = vadd.f32 %v4215, 1e-05
          %v4224 = vadd.f32 %v4216, 1e-05
          %v4225 = vadd.f32 %v4217, 1e-05
          %v4226 = vadd.f32 %v4218, 1e-05
          %v4227 = vadd.f32 %v4219, 1e-05
          %v4228 = vadd.f32 %v4220, 1e-05
          %v4229 = vrsqrt.pop %v4221
          %v4230 = vmul.f32 %v4229, %v4221
          %v4231 = vmul.f32 %v4230, %v4229
          %v4232 = vmul.f32 0.5, %v4231
          %v4233 = vsub.f32 1.5, %v4232
          %v4234 = vmul.f32 %v4229, %v4233
          %vm4235 = vweird.f32 %v4221
          %vm4236 = vweird.f32 %v4229
          %vm4237 = vmor %vm4235, %vm4236
          %v4238 = vsel %vm4237, %v4229, %v4234
          %v4239 = vrsqrt.pop %v4222
          %v4240 = vmul.f32 %v4239, %v4222
          %v4241 = vmul.f32 %v4240, %v4239
          %v4242 = vmul.f32 0.5, %v4241
          %v4243 = vsub.f32 1.5, %v4242
          %v4244 = vmul.f32 %v4239, %v4243
          %vm4245 = vweird.f32 %v4222
          %vm4246 = vweird.f32 %v4239
          %vm4247 = vmor %vm4245, %vm4246
          %v4248 = vsel %vm4247, %v4239, %v4244
          %v4249 = vrsqrt.pop %v4223
          %v4250 = vmul.f32 %v4249, %v4223
          %v4251 = vmul.f32 %v4250, %v4249
          %v4252 = vmul.f32 0.5, %v4251
          %v4253 = vsub.f32 1.5, %v4252
          %v4254 = vmul.f32 %v4249, %v4253
          %vm4255 = vweird.f32 %v4223
          %vm4256 = vweird.f32 %v4249
          %vm4257 = vmor %vm4255, %vm4256
          %v4258 = vsel %vm4257, %v4249, %v4254
          %v4259 = vrsqrt.pop %v4224
          %v4260 = vmul.f32 %v4259, %v4224
          %v4261 = vmul.f32 %v4260, %v4259
          %v4262 = vmul.f32 0.5, %v4261
          %v4263 = vsub.f32 1.5, %v4262
          %v4264 = vmul.f32 %v4259, %v4263
          %vm4265 = vweird.f32 %v4224
          %vm4266 = vweird.f32 %v4259
          %vm4267 = vmor %vm4265, %vm4266
          %v4268 = vsel %vm4267, %v4259, %v4264
          %v4269 = vrsqrt.pop %v4225
          %v4270 = vmul.f32 %v4269, %v4225
          %v4271 = vmul.f32 %v4270, %v4269
          %v4272 = vmul.f32 0.5, %v4271
          %v4273 = vsub.f32 1.5, %v4272
          %v4274 = vmul.f32 %v4269, %v4273
          %vm4275 = vweird.f32 %v4225
          %vm4276 = vweird.f32 %v4269
          %vm4277 = vmor %vm4275, %vm4276
          %v4278 = vsel %vm4277, %v4269, %v4274
          %v4279 = vrsqrt.pop %v4226
          %v4280 = vmul.f32 %v4279, %v4226
          %v4281 = vmul.f32 %v4280, %v4279
          %v4282 = vmul.f32 0.5, %v4281
          %v4283 = vsub.f32 1.5, %v4282
          %v4284 = vmul.f32 %v4279, %v4283
          %vm4285 = vweird.f32 %v4226
          %vm4286 = vweird.f32 %v4279
          %vm4287 = vmor %vm4285, %vm4286
          %v4288 = vsel %vm4287, %v4279, %v4284
          %v4289 = vrsqrt.pop %v4227
          %v4290 = vmul.f32 %v4289, %v4227
          %v4291 = vmul.f32 %v4290, %v4289
          %v4292 = vmul.f32 0.5, %v4291
          %v4293 = vsub.f32 1.5, %v4292
          %v4294 = vmul.f32 %v4289, %v4293
          %vm4295 = vweird.f32 %v4227
          %vm4296 = vweird.f32 %v4289
          %vm4297 = vmor %vm4295, %vm4296
          %v4298 = vsel %vm4297, %v4289, %v4294
          %v4299 = vrsqrt.pop %v4228
          %v4300 = vmul.f32 %v4299, %v4228
          %v4301 = vmul.f32 %v4300, %v4299
          %v4302 = vmul.f32 0.5, %v4301
          %v4303 = vsub.f32 1.5, %v4302
          %v4304 = vmul.f32 %v4299, %v4303
          %vm4305 = vweird.f32 %v4228
          %vm4306 = vweird.f32 %v4299
          %vm4307 = vmor %vm4305, %vm4306
          %v4308 = vsel %vm4307, %v4299, %v4304
          %v4309 = vmul.f32 %v4181, %v4238
          %v4310 = vmul.f32 %v4182, %v4248
          %v4311 = vmul.f32 %v4183, %v4258
          %v4312 = vmul.f32 %v4184, %v4268
          %v4313 = vmul.f32 %v4185, %v4278
          %v4314 = vmul.f32 %v4186, %v4288
          %v4315 = vmul.f32 %v4187, %v4298
          %v4316 = vmul.f32 %v4188, %v4308
          %v4318 = vperm.slane %v4155, 0
          %v4320 = vmul.f32 %v4309, %v4318
          %v4321 = vmul.f32 %v4310, %v4318
          %v4322 = vmul.f32 %v4311, %v4318
          %v4323 = vmul.f32 %v4312, %v4318
          %v4324 = vmul.f32 %v4313, %v4318
          %v4325 = vmul.f32 %v4314, %v4318
          %v4326 = vmul.f32 %v4315, %v4318
          %v4327 = vmul.f32 %v4316, %v4318
          %v4329 = vperm.slane %v4156, 0
          %v4331 = vadd.f32 %v4320, %v4329
          %v4332 = vadd.f32 %v4321, %v4329
          %v4333 = vadd.f32 %v4322, %v4329
          %v4334 = vadd.f32 %v4323, %v4329
          %v4335 = vadd.f32 %v4324, %v4329
          %v4336 = vadd.f32 %v4325, %v4329
          %v4337 = vadd.f32 %v4326, %v4329
          %v4338 = vadd.f32 %v4327, %v4329
          %4339 = vst [vmem:[%s757] sm:$0xff] %v4331
          %4340 = vst [vmem:[%s757 + $0x8] sm:$0xff] %v4332
          %4341 = vst [vmem:[%s757 + $0x10] sm:$0xff] %v4333
          %4342 = vst [vmem:[%s757 + $0x18] sm:$0xff] %v4334
          %4343 = vst [vmem:[%s757 + $0x20] sm:$0xff] %v4335
          %4344 = vst [vmem:[%s757 + $0x28] sm:$0xff] %v4336
          %4345 = vst [vmem:[%s757 + $0x30] sm:$0xff] %v4337
          %4346 = vst [vmem:[%s757 + $0x38] sm:$0xff] %v4338
        $region104: #{tpu_custom_call.1} parent=79 // pred_fallthru
          _
        %p4347 = scmp.ne.s32.totalorder %s43, 1
        // Predicated region
        $region105: #{tpu_custom_call.1} parent=79 // pred_check
          %p4348 = pneg %p4347
        $region106: #{tpu_custom_call.1} parent=79 // pred_check_branch
          %4350 = sbr.rel (%p4348) target = $region108
        $region107: #{tpu_custom_call.1} parent=79 // pred_region
          %4351 = vst [vmem:[%s757] sm:$0xff] %v4143
          %4352 = vst [vmem:[%s757 + $0x8] sm:$0xff] %v4144
          %4353 = vst [vmem:[%s757 + $0x10] sm:$0xff] %v4145
          %4354 = vst [vmem:[%s757 + $0x18] sm:$0xff] %v4146
          %4355 = vst [vmem:[%s757 + $0x20] sm:$0xff] %v4147
          %4356 = vst [vmem:[%s757 + $0x28] sm:$0xff] %v4148
          %4357 = vst [vmem:[%s757 + $0x30] sm:$0xff] %v4149
          %4358 = vst [vmem:[%s757 + $0x38] sm:$0xff] %v4150
        $region108: #{tpu_custom_call.1} parent=79 // pred_fallthru
          _
        %s4359 = sand.u32 %s438, 1
        %s4360 = scalar_lea.sflag [#allocation5], %s4359
        %s4361 = sand.u32 %s438, 1
        %s4362 = smul.addr %s4361, 64
        %s4363 = scalar_lea.vmem [#allocation11], %s4362
        // Predicated region
        $region109: #{tpu_custom_call.1} parent=79 // pred_check
          %p4364 = pneg %p448
        $region110: #{tpu_custom_call.1} parent=79 // pred_check_branch
          %4366 = sbr.rel (%p4364) target = $region112
        $region111: #{tpu_custom_call.1} parent=79 // pred_region
          %s4367 = smul.u32 4, %s42
          %4369 = vsyncadd %s4360, 0
          %s4370 = smul.addr %s4367, 2
          %s4371 = smul.addr %s4370, 8
          %s4372 = scalar_lea.hbm %s15, %s4371
          %s4373 = sshll.u32 %s4363, 4
          %s4374 = int_to_ptr.vmem [resolvable:$true] %s4373
          %s4375 = sshll.u32 %s4372, 4
          %s4376 = int_to_ptr.hbm [resolvable:$true] %s4375
          %4381 = dma.vmem_to_hbm [thread:$0]  %s4374, 1024, %s4376, %s4360, 128, 128, 8
        $region112: #{tpu_custom_call.1} parent=79 // pred_fallthru
          _
      $region80: #{tpu_custom_call.1} parent=5 // pred_fallthru
        _
      %p4382 = scmp.le.s32.totalorder 2, %s33
      // Predicated region
      $region113: #{tpu_custom_call.1} parent=5 // pred_check
        %p4383 = pneg %p4382
      $region114: #{tpu_custom_call.1} parent=5 // pred_check_branch
        %4385 = sbr.rel (%p4383) target = $region116
      $region115: #{tpu_custom_call.1} parent=5 // pred_region
        %s4386 = ssub.s32 %s33, 2
        // Predicated region
        $region117: #{tpu_custom_call.1} parent=115 // pred_check
          %p4387 = pneg %p454
        $region118: #{tpu_custom_call.1} parent=115 // pred_check_branch
          %4389 = sbr.rel (%p4387) target = $region120
        $region119: #{tpu_custom_call.1} parent=115 // pred_region
          %s4390 = sand.u32 %s439, 1
          %s4391 = scalar_lea.sflag [#allocation5], %s4390
          %s4392 = sand.u32 %s439, 1
          %s4393 = smul.addr %s4392, 64
          %s4394 = scalar_lea.vmem [#allocation11], %s4393
          %4396 = dma.done %s4391, 1024
        $region120: #{tpu_custom_call.1} parent=115 // pred_fallthru
          _
      $region116: #{tpu_custom_call.1} parent=5 // pred_fallthru
        _
    $region6: #{tpu_custom_call.1} parent=1 // loop_footer
      %s37 = sadd.s32 1, %s33
    $region7: #{tpu_custom_call.1} parent=1 // loop_footer_branch
      %32 = sbr.rel target = $region3
    $region8: #{tpu_custom_call.1} parent=1 // loop_exit
      _
    %4397 = vsyncpa [#allocation4], 1
    %s4398 = scalar_lea.sflag [#allocation4], 1
    %4399 = vsyncpa %s4398, 1
    %4400 = vsyncpa [#allocation7], 1
    %s4401 = scalar_lea.sflag [#allocation7], 1
    %4402 = vsyncpa %s4401, 1
    %4403 = vsyncpa [#allocation10], 1
    %s4404 = scalar_lea.sflag [#allocation10], 1
    %4405 = vsyncpa %s4404, 1
    %4406 = vsyncpa [#allocation5], 1
    %s4407 = scalar_lea.sflag [#allocation5], 1
    %4408 = vsyncpa %s4407, 1

</llo_original>
